<compile_context>
chip_gen: v6e
topology: v6e:2x2x1
jax: 0.10.0
libtpu: 0.0.40
codegen_flags: <defaults>
</compile_context>

<pallas_src>
import jax
import jax.numpy as jnp
from jax.experimental import pallas as pl
from jax.experimental.pallas import tpu as pltpu


# ---------------------------------------------------------------------------
# Pallas kernel: fused GEMM (bf16 in, f32 acc) + per-channel shift (BN) + ReLU
# ---------------------------------------------------------------------------
def _gemm_shift_relu_kernel(x_ref, w_ref, shift_ref, o_ref):
    acc = jnp.dot(x_ref[...], w_ref[...], preferred_element_type=jnp.float32)
    o_ref[...] = jnp.maximum(acc + shift_ref[...], 0.0).astype(o_ref.dtype)


def _round_up(x, m):
    return (x + m - 1) // m * m


def fused_conv_gemm(patches, w_mat, shift, out_dtype=jnp.bfloat16, tm=256):
    """relu(patches @ w_mat + shift).  patches:(M,K)  w_mat:(K,N)  shift:(N,)."""
    M, K = patches.shape
    K2, N = w_mat.shape
    assert K == K2
    Kp = _round_up(K, 128)            # K sits on the lane dim of the LHS block
    Np = _round_up(N, 128)            # lane-dense (unmasked) output stores
    tm = min(tm, _round_up(M, 16))    # M tile; bf16 sublane-packing friendly
    grid_m = pl.cdiv(M, tm)

    xp = patches.astype(jnp.bfloat16)           # bf16 MXU inputs, half HBM bytes
    if Kp > K:
        xp = jnp.pad(xp, ((0, 0), (0, Kp - K)))
    wp = w_mat.astype(jnp.bfloat16)
    if Kp > K or Np > N:
        wp = jnp.pad(wp, ((0, Kp - K), (0, Np - N)))
    sp = shift.astype(jnp.float32).reshape(1, N)
    if Np > N:
        sp = jnp.pad(sp, ((0, 0), (0, Np - N)))

    out_bytes = jnp.dtype(out_dtype).itemsize
    out = pl.pallas_call(
        _gemm_shift_relu_kernel,
        out_shape=jax.ShapeDtypeStruct((M, Np), out_dtype),
        grid_spec=pltpu.PrefetchScalarGridSpec(
            num_scalar_prefetch=0,
            grid=(grid_m,),
            in_specs=[
                pl.BlockSpec((tm, Kp), lambda i: (i, 0)),   # LHS tile, streamed over M
                pl.BlockSpec((Kp, Np), lambda i: (0, 0)),   # full weight resident
                pl.BlockSpec((1, Np), lambda i: (0, 0)),    # BN shift
            ],
            out_specs=pl.BlockSpec((tm, Np), lambda i: (i, 0)),
        ),
        compiler_params=pltpu.CompilerParams(
            dimension_semantics=("parallel",)),
        cost_estimate=pl.CostEstimate(
            flops=2 * M * Kp * Np,
            transcendentals=0,
            bytes_accessed=M * Kp * 2 + Kp * Np * 2 + Np * 4 + M * Np * out_bytes),
    )(xp, wp, sp)
    return out[:, :N] if Np > N else out


# ---------------------------------------------------------------------------
# Plain-JAX glue: channels-last im2col, BN folding, parameter init
# ---------------------------------------------------------------------------
def im2col3d_ndhwc(x, ksize, stride, pad):
    """x: (N, T, H, W, C) -> patches (N*To*Ho*Wo, kd*kh*kw*C), K order (kd,kh,kw,C)."""
    N, T, H, W, C = x.shape
    kd, kh, kw = ksize
    sd, sh, sw = stride
    pd, ph, pw = pad
    xp = jnp.pad(x, ((0, 0), (pd, pd), (ph, ph), (pw, pw), (0, 0)))
    To = (T + 2 * pd - kd) // sd + 1
    Ho = (H + 2 * ph - kh) // sh + 1
    Wo = (W + 2 * pw - kw) // sw + 1
    cols = []
    for dz in range(kd):
        for dy in range(kh):
            for dx in range(kw):
                cols.append(xp[:, dz:dz + sd * To:sd,
                               dy:dy + sh * Ho:sh,
                               dx:dx + sw * Wo:sw, :])
    p = jnp.stack(cols, axis=4)                 # (N, To, Ho, Wo, kd*kh*kw, C)
    p = p.reshape(N * To * Ho * Wo, kd * kh * kw * C)
    return p, (To, Ho, Wo)


def im2col2d_nhwc(x, ksize, stride, pad):
    """x: (N, H, W, C) -> patches (N*Ho*Wo, kh*kw*C), K order (kh,kw,C)."""
    N, H, W, C = x.shape
    kh, kw = ksize
    sh, sw = stride
    ph, pw = pad
    xp = jnp.pad(x, ((0, 0), (ph, ph), (pw, pw), (0, 0)))
    Ho = (H + 2 * ph - kh) // sh + 1
    Wo = (W + 2 * pw - kw) // sw + 1
    cols = []
    for dy in range(kh):
        for dx in range(kw):
            cols.append(xp[:, dy:dy + sh * Ho:sh, dx:dx + sw * Wo:sw, :])
    p = jnp.stack(cols, axis=3)                 # (N, Ho, Wo, kh*kw, C)
    p = p.reshape(N * Ho * Wo, kh * kw * C)
    return p, (Ho, Wo)


def bn_fold(conv_bias, gamma, beta, mean, var, eps=1e-5):
    scale = gamma / jnp.sqrt(var + eps)
    shift = (conv_bias - mean) * scale + beta
    return scale, shift


def conv2d_bn_relu_nhwc(x, w, b, bn, stride, pad, out_dtype=jnp.bfloat16):
    """x: (NB, H, W, Cin) channels-last; w: (Cout, Cin, kh, kw) torch layout."""
    NB = x.shape[0]
    cout = w.shape[0]
    scale, shift = bn_fold(b, bn['gamma'], bn['beta'], bn['mean'], bn['var'])
    w_folded = w * scale[:, None, None, None]           # BN scale into weights
    w_mat = jnp.transpose(w_folded, (2, 3, 1, 0)).reshape(-1, cout)  # (kh*kw*Cin, Cout)
    patches, (Ho, Wo) = im2col2d_nhwc(x, w.shape[2:], stride, pad)
    y = fused_conv_gemm(patches, w_mat, shift, out_dtype=out_dtype)
    return y.reshape(NB, Ho, Wo, cout)


def make_params(key):
    ks = jax.random.split(key, 24)
    p = {}

    def conv_w(k, shape):
        return 0.05 * jax.random.normal(k, shape, dtype=jnp.float32)

    def bn(k, c):
        k1, k2, k3, k4 = jax.random.split(k, 4)
        return dict(
            gamma=1.0 + 0.1 * jax.random.normal(k1, (c,), dtype=jnp.float32),
            beta=0.05 * jax.random.normal(k2, (c,), dtype=jnp.float32),
            mean=0.05 * jax.random.normal(k3, (c,), dtype=jnp.float32),
            var=0.5 + jax.random.uniform(k4, (c,), dtype=jnp.float32),
        )

    # frontend3D: Conv3d(3, 64, k=(5,5,5), s=(1,2,2), p=(2,2,2)) + BN3d(64)
    p['w3d'] = conv_w(ks[0], (64, 3, 5, 5, 5))
    p['b3d'] = 0.01 * jax.random.normal(ks[1], (64,), dtype=jnp.float32)
    p['bn3d'] = bn(ks[2], 64)
    # frontend2D: three Conv2d + BN2d blocks
    p['w2d_1'] = conv_w(ks[3], (128, 64, 3, 3))
    p['b2d_1'] = 0.01 * jax.random.normal(ks[4], (128,), dtype=jnp.float32)
    p['bn2d_1'] = bn(ks[5], 128)
    p['w2d_2'] = conv_w(ks[6], (128, 128, 3, 3))
    p['b2d_2'] = 0.01 * jax.random.normal(ks[7], (128,), dtype=jnp.float32)
    p['bn2d_2'] = bn(ks[8], 128)
    p['w2d_3'] = conv_w(ks[9], (128, 128, 3, 3))
    p['b2d_3'] = 0.01 * jax.random.normal(ks[10], (128,), dtype=jnp.float32)
    p['bn2d_3'] = bn(ks[11], 128)
    return p


def conv_frontend_forward(x, p):
    """x: (N, 3, T, H, W) float32 (PyTorch NCDHW). Returns (N*T, 128, H/4, W/4) f32."""
    N = x.shape[0]
    # Single layout change at the input boundary: channels-last + bf16 activations.
    x = jnp.transpose(x, (0, 2, 3, 4, 1)).astype(jnp.bfloat16)   # (N, T, H, W, 3)

    # ---- frontend3D: Conv3d + BN3d + ReLU (fused Pallas GEMM) ----
    scale, shift = bn_fold(p['b3d'], p['bn3d']['gamma'], p['bn3d']['beta'],
                           p['bn3d']['mean'], p['bn3d']['var'])
    w_folded = p['w3d'] * scale[:, None, None, None, None]
    w_mat = jnp.transpose(w_folded, (2, 3, 4, 1, 0)).reshape(-1, 64)  # (125*3, 64)
    patches, (To, Ho, Wo) = im2col3d_ndhwc(x, (5, 5, 5), (1, 2, 2), (2, 2, 2))
    y = fused_conv_gemm(patches, w_mat, shift)                   # (N*To*Ho*Wo, 64) bf16

    # PyTorch: x.transpose(1,2).contiguous().view(-1, 64, H, W)
    # In channels-last this is a pure reshape (no data movement).
    y = y.reshape(N * To, Ho, Wo, 64)

    # ---- frontend2D: three Conv2d + BN2d + ReLU blocks (NHWC, bf16) ----
    y = conv2d_bn_relu_nhwc(y, p['w2d_1'], p['b2d_1'], p['bn2d_1'],
                            stride=(2, 2), pad=(1, 1))
    y = conv2d_bn_relu_nhwc(y, p['w2d_2'], p['b2d_2'], p['bn2d_2'],
                            stride=(1, 1), pad=(1, 1))
    y = conv2d_bn_relu_nhwc(y, p['w2d_3'], p['b2d_3'], p['bn2d_3'],
                            stride=(1, 1), pad=(1, 1), out_dtype=jnp.float32)

    # Back to PyTorch NCHW only at the output boundary.
    return jnp.transpose(y, (0, 3, 1, 2))                        # (N*T, 128, H/4, W/4)


if __name__ == "__main__":
    key = jax.random.PRNGKey(0)
    k_x, k_p = jax.random.split(key)

    # small input: batch=2, channels=3, time=4, spatial=16x16
    x = jax.random.normal(k_x, (2, 3, 4, 16, 16), dtype=jnp.float32)
    params = make_params(k_p)

    out = jax.jit(conv_frontend_forward)(x, params)
    out = jax.block_until_ready(out)

    expected_shape = (2 * 4, 128, 4, 4)
    assert out.shape == expected_shape, (out.shape, expected_shape)
    assert bool(jnp.all(jnp.isfinite(out)))
    assert bool(jnp.all(out >= 0.0))  # ReLU output
    print("KERNEL_OK")
</pallas_src>

<mosaic_0001>
module attributes {stable_mosaic.version = 11 : i64} {
  func.func @_gemm_shift_relu_kernel(%arg0: i32, %arg1: memref<256x384xbf16, #tpu.memory_space<vmem>>, %arg2: memref<384x128xbf16, #tpu.memory_space<vmem>>, %arg3: memref<1x128xf32, #tpu.memory_space<vmem>>, %arg4: memref<256x128xbf16, #tpu.memory_space<vmem>>) attributes {dimension_semantics = [#tpu.dimension_semantics<parallel>], iteration_bounds = array<i64: 2>, scalar_prefetch = 0 : i64, scratch_operands = 0 : i64, tpu.core_type = #tpu.core_type<tc>, window_params = [{transform_indices = @transform_0, window_bounds = array<i64: 256, 384>}, {pipeline_mode = #tpu.pipeline_mode<synchronous>, transform_indices = @transform_1, window_bounds = array<i64: 384, 128>}, {pipeline_mode = #tpu.pipeline_mode<synchronous>, transform_indices = @transform_2, window_bounds = array<i64: 1, 128>}, {transform_indices = @transform_3, window_bounds = array<i64: 256, 128>}]} {
    %c0 = arith.constant 0 : index
    %c0_0 = arith.constant 0 : index
    %0 = vector.load %arg1[%c0, %c0_0] : memref<256x384xbf16, #tpu.memory_space<vmem>>, vector<256x384xbf16>
    %c0_1 = arith.constant 0 : index
    %c0_2 = arith.constant 0 : index
    %1 = vector.load %arg2[%c0_1, %c0_2] : memref<384x128xbf16, #tpu.memory_space<vmem>>, vector<384x128xbf16>
    %cst = arith.constant dense<0.000000e+00> : vector<256x128xf32>
    %2 = tpu.matmul %0, %1, %cst {dimension_numbers = #tpu.dot_dimension_numbers<[1], [0], [0], [1], [0, 0, 1, 1], [], []>} : vector<256x384xbf16>, vector<384x128xbf16>, vector<256x128xf32> -> vector<256x128xf32>
    %c0_3 = arith.constant 0 : index
    %c0_4 = arith.constant 0 : index
    %3 = vector.load %arg3[%c0_3, %c0_4] : memref<1x128xf32, #tpu.memory_space<vmem>>, vector<1x128xf32>
    %4 = vector.broadcast %3 : vector<1x128xf32> to vector<256x128xf32>
    %5 = arith.addf %2, %4 : vector<256x128xf32>
    %cst_5 = arith.constant 0.000000e+00 : f32
    %6 = vector.broadcast %cst_5 : f32 to vector<256x128xf32>
    %7 = arith.maximumf %5, %6 : vector<256x128xf32>
    %8 = arith.truncf %7 : vector<256x128xf32> to vector<256x128xbf16>
    %c0_6 = arith.constant 0 : index
    %c0_7 = arith.constant 0 : index
    %9 = vector.load %arg4[%c0_6, %c0_7] : memref<256x128xbf16, #tpu.memory_space<vmem>>, vector<256x128xbf16>
    tpu.vector_store %arg4[%c0_6, %c0_7], %8 {strides = array<i32>} : memref<256x128xbf16, #tpu.memory_space<vmem>>, vector<256x128xbf16>,
    return
  }
  func.func @transform_0(%arg0: i32) -> (i32, i32) {
    %c0_i32 = arith.constant 0 : i32
    %c0_i32_0 = arith.constant 0 : i32
    return %arg0, %c0_i32 : i32, i32
  }
  func.func @transform_1(%arg0: i32) -> (i32, i32) {
    %c0_i32 = arith.constant 0 : i32
    %c0_i32_0 = arith.constant 0 : i32
    %c0_i32_1 = arith.constant 0 : i32
    return %c0_i32, %c0_i32_0 : i32, i32
  }
  func.func @transform_2(%arg0: i32) -> (i32, i32) {
    %c0_i32 = arith.constant 0 : i32
    %c0_i32_0 = arith.constant 0 : i32
    %c0_i32_1 = arith.constant 0 : i32
    return %c0_i32, %c0_i32_0 : i32, i32
  }
  func.func @transform_3(%arg0: i32) -> (i32, i32) {
    %c0_i32 = arith.constant 0 : i32
    %c0_i32_0 = arith.constant 0 : i32
    return %arg0, %c0_i32 : i32, i32
  }
}

module attributes {stable_mosaic.version = 11 : i64} {
  func.func @_gemm_shift_relu_kernel(%arg0: i32, %arg1: memref<128x640xbf16, #tpu.memory_space<vmem>>, %arg2: memref<640x128xbf16, #tpu.memory_space<vmem>>, %arg3: memref<1x128xf32, #tpu.memory_space<vmem>>, %arg4: memref<128x128xbf16, #tpu.memory_space<vmem>>) attributes {dimension_semantics = [#tpu.dimension_semantics<parallel>], iteration_bounds = array<i64: 1>, scalar_prefetch = 0 : i64, scratch_operands = 0 : i64, tpu.core_type = #tpu.core_type<tc>, window_params = [{transform_indices = @transform_0, window_bounds = array<i64: 128, 640>}, {pipeline_mode = #tpu.pipeline_mode<synchronous>, transform_indices = @transform_1, window_bounds = array<i64: 640, 128>}, {pipeline_mode = #tpu.pipeline_mode<synchronous>, transform_indices = @transform_2, window_bounds = array<i64: 1, 128>}, {transform_indices = @transform_3, window_bounds = array<i64: 128, 128>}]} {
    %c0 = arith.constant 0 : index
    %c0_0 = arith.constant 0 : index
    %0 = vector.load %arg1[%c0, %c0_0] : memref<128x640xbf16, #tpu.memory_space<vmem>>, vector<128x640xbf16>
    %c0_1 = arith.constant 0 : index
    %c0_2 = arith.constant 0 : index
    %1 = vector.load %arg2[%c0_1, %c0_2] : memref<640x128xbf16, #tpu.memory_space<vmem>>, vector<640x128xbf16>
    %cst = arith.constant dense<0.000000e+00> : vector<128x128xf32>
    %2 = tpu.matmul %0, %1, %cst {dimension_numbers = #tpu.dot_dimension_numbers<[1], [0], [0], [1], [0, 0, 1, 1], [], []>} : vector<128x640xbf16>, vector<640x128xbf16>, vector<128x128xf32> -> vector<128x128xf32>
    %c0_3 = arith.constant 0 : index
    %c0_4 = arith.constant 0 : index
    %3 = vector.load %arg3[%c0_3, %c0_4] : memref<1x128xf32, #tpu.memory_space<vmem>>, vector<1x128xf32>
    %4 = vector.broadcast %3 : vector<1x128xf32> to vector<128x128xf32>
    %5 = arith.addf %2, %4 : vector<128x128xf32>
    %cst_5 = arith.constant 0.000000e+00 : f32
    %6 = vector.broadcast %cst_5 : f32 to vector<128x128xf32>
    %7 = arith.maximumf %5, %6 : vector<128x128xf32>
    %8 = arith.truncf %7 : vector<128x128xf32> to vector<128x128xbf16>
    %c0_6 = arith.constant 0 : index
    %c0_7 = arith.constant 0 : index
    %9 = vector.load %arg4[%c0_6, %c0_7] : memref<128x128xbf16, #tpu.memory_space<vmem>>, vector<128x128xbf16>
    tpu.vector_store %arg4[%c0_6, %c0_7], %8 {strides = array<i32>} : memref<128x128xbf16, #tpu.memory_space<vmem>>, vector<128x128xbf16>,
    return
  }
  func.func @transform_0(%arg0: i32) -> (i32, i32) {
    %c0_i32 = arith.constant 0 : i32
    %c0_i32_0 = arith.constant 0 : i32
    return %arg0, %c0_i32 : i32, i32
  }
  func.func @transform_1(%arg0: i32) -> (i32, i32) {
    %c0_i32 = arith.constant 0 : i32
    %c0_i32_0 = arith.constant 0 : i32
    %c0_i32_1 = arith.constant 0 : i32
    return %c0_i32, %c0_i32_0 : i32, i32
  }
  func.func @transform_2(%arg0: i32) -> (i32, i32) {
    %c0_i32 = arith.constant 0 : i32
    %c0_i32_0 = arith.constant 0 : i32
    %c0_i32_1 = arith.constant 0 : i32
    return %c0_i32, %c0_i32_0 : i32, i32
  }
  func.func @transform_3(%arg0: i32) -> (i32, i32) {
    %c0_i32 = arith.constant 0 : i32
    %c0_i32_0 = arith.constant 0 : i32
    return %arg0, %c0_i32 : i32, i32
  }
}

module attributes {stable_mosaic.version = 11 : i64} {
  func.func @_gemm_shift_relu_kernel(%arg0: i32, %arg1: memref<128x1152xbf16, #tpu.memory_space<vmem>>, %arg2: memref<1152x128xbf16, #tpu.memory_space<vmem>>, %arg3: memref<1x128xf32, #tpu.memory_space<vmem>>, %arg4: memref<128x128xf32, #tpu.memory_space<vmem>>) attributes {dimension_semantics = [#tpu.dimension_semantics<parallel>], iteration_bounds = array<i64: 1>, scalar_prefetch = 0 : i64, scratch_operands = 0 : i64, tpu.core_type = #tpu.core_type<tc>, window_params = [{transform_indices = @transform_0, window_bounds = array<i64: 128, 1152>}, {pipeline_mode = #tpu.pipeline_mode<synchronous>, transform_indices = @transform_1, window_bounds = array<i64: 1152, 128>}, {pipeline_mode = #tpu.pipeline_mode<synchronous>, transform_indices = @transform_2, window_bounds = array<i64: 1, 128>}, {transform_indices = @transform_3, window_bounds = array<i64: 128, 128>}]} {
    %c0 = arith.constant 0 : index
    %c0_0 = arith.constant 0 : index
    %0 = vector.load %arg1[%c0, %c0_0] : memref<128x1152xbf16, #tpu.memory_space<vmem>>, vector<128x1152xbf16>
    %c0_1 = arith.constant 0 : index
    %c0_2 = arith.constant 0 : index
    %1 = vector.load %arg2[%c0_1, %c0_2] : memref<1152x128xbf16, #tpu.memory_space<vmem>>, vector<1152x128xbf16>
    %cst = arith.constant dense<0.000000e+00> : vector<128x128xf32>
    %2 = tpu.matmul %0, %1, %cst {dimension_numbers = #tpu.dot_dimension_numbers<[1], [0], [0], [1], [0, 0, 1, 1], [], []>} : vector<128x1152xbf16>, vector<1152x128xbf16>, vector<128x128xf32> -> vector<128x128xf32>
    %c0_3 = arith.constant 0 : index
    %c0_4 = arith.constant 0 : index
    %3 = vector.load %arg3[%c0_3, %c0_4] : memref<1x128xf32, #tpu.memory_space<vmem>>, vector<1x128xf32>
    %4 = vector.broadcast %3 : vector<1x128xf32> to vector<128x128xf32>
    %5 = arith.addf %2, %4 : vector<128x128xf32>
    %cst_5 = arith.constant 0.000000e+00 : f32
    %6 = vector.broadcast %cst_5 : f32 to vector<128x128xf32>
    %7 = arith.maximumf %5, %6 : vector<128x128xf32>
    %c0_6 = arith.constant 0 : index
    %c0_7 = arith.constant 0 : index
    %8 = vector.load %arg4[%c0_6, %c0_7] : memref<128x128xf32, #tpu.memory_space<vmem>>, vector<128x128xf32>
    tpu.vector_store %arg4[%c0_6, %c0_7], %7 {strides = array<i32>} : memref<128x128xf32, #tpu.memory_space<vmem>>, vector<128x128xf32>,
    return
  }
  func.func @transform_0(%arg0: i32) -> (i32, i32) {
    %c0_i32 = arith.constant 0 : i32
    %c0_i32_0 = arith.constant 0 : i32
    return %arg0, %c0_i32 : i32, i32
  }
  func.func @transform_1(%arg0: i32) -> (i32, i32) {
    %c0_i32 = arith.constant 0 : i32
    %c0_i32_0 = arith.constant 0 : i32
    %c0_i32_1 = arith.constant 0 : i32
    return %c0_i32, %c0_i32_0 : i32, i32
  }
  func.func @transform_2(%arg0: i32) -> (i32, i32) {
    %c0_i32 = arith.constant 0 : i32
    %c0_i32_0 = arith.constant 0 : i32
    %c0_i32_1 = arith.constant 0 : i32
    return %c0_i32, %c0_i32_0 : i32, i32
  }
  func.func @transform_3(%arg0: i32) -> (i32, i32) {
    %c0_i32 = arith.constant 0 : i32
    %c0_i32_0 = arith.constant 0 : i32
    return %arg0, %c0_i32 : i32, i32
  }
}

module attributes {stable_mosaic.version = 11 : i64} {
  func.func @_gemm_shift_relu_kernel(%arg0: i32, %arg1: memref<128x1152xbf16, #tpu.memory_space<vmem>>, %arg2: memref<1152x128xbf16, #tpu.memory_space<vmem>>, %arg3: memref<1x128xf32, #tpu.memory_space<vmem>>, %arg4: memref<128x128xbf16, #tpu.memory_space<vmem>>) attributes {dimension_semantics = [#tpu.dimension_semantics<parallel>], iteration_bounds = array<i64: 1>, scalar_prefetch = 0 : i64, scratch_operands = 0 : i64, tpu.core_type = #tpu.core_type<tc>, window_params = [{transform_indices = @transform_0, window_bounds = array<i64: 128, 1152>}, {pipeline_mode = #tpu.pipeline_mode<synchronous>, transform_indices = @transform_1, window_bounds = array<i64: 1152, 128>}, {pipeline_mode = #tpu.pipeline_mode<synchronous>, transform_indices = @transform_2, window_bounds = array<i64: 1, 128>}, {transform_indices = @transform_3, window_bounds = array<i64: 128, 128>}]} {
    %c0 = arith.constant 0 : index
    %c0_0 = arith.constant 0 : index
    %0 = vector.load %arg1[%c0, %c0_0] : memref<128x1152xbf16, #tpu.memory_space<vmem>>, vector<128x1152xbf16>
    %c0_1 = arith.constant 0 : index
    %c0_2 = arith.constant 0 : index
    %1 = vector.load %arg2[%c0_1, %c0_2] : memref<1152x128xbf16, #tpu.memory_space<vmem>>, vector<1152x128xbf16>
    %cst = arith.constant dense<0.000000e+00> : vector<128x128xf32>
    %2 = tpu.matmul %0, %1, %cst {dimension_numbers = #tpu.dot_dimension_numbers<[1], [0], [0], [1], [0, 0, 1, 1], [], []>} : vector<128x1152xbf16>, vector<1152x128xbf16>, vector<128x128xf32> -> vector<128x128xf32>
    %c0_3 = arith.constant 0 : index
    %c0_4 = arith.constant 0 : index
    %3 = vector.load %arg3[%c0_3, %c0_4] : memref<1x128xf32, #tpu.memory_space<vmem>>, vector<1x128xf32>
    %4 = vector.broadcast %3 : vector<1x128xf32> to vector<128x128xf32>
    %5 = arith.addf %2, %4 : vector<128x128xf32>
    %cst_5 = arith.constant 0.000000e+00 : f32
    %6 = vector.broadcast %cst_5 : f32 to vector<128x128xf32>
    %7 = arith.maximumf %5, %6 : vector<128x128xf32>
    %8 = arith.truncf %7 : vector<128x128xf32> to vector<128x128xbf16>
    %c0_6 = arith.constant 0 : index
    %c0_7 = arith.constant 0 : index
    %9 = vector.load %arg4[%c0_6, %c0_7] : memref<128x128xbf16, #tpu.memory_space<vmem>>, vector<128x128xbf16>
    tpu.vector_store %arg4[%c0_6, %c0_7], %8 {strides = array<i32>} : memref<128x128xbf16, #tpu.memory_space<vmem>>, vector<128x128xbf16>,
    return
  }
  func.func @transform_0(%arg0: i32) -> (i32, i32) {
    %c0_i32 = arith.constant 0 : i32
    %c0_i32_0 = arith.constant 0 : i32
    return %arg0, %c0_i32 : i32, i32
  }
  func.func @transform_1(%arg0: i32) -> (i32, i32) {
    %c0_i32 = arith.constant 0 : i32
    %c0_i32_0 = arith.constant 0 : i32
    %c0_i32_1 = arith.constant 0 : i32
    return %c0_i32, %c0_i32_0 : i32, i32
  }
  func.func @transform_2(%arg0: i32) -> (i32, i32) {
    %c0_i32 = arith.constant 0 : i32
    %c0_i32_0 = arith.constant 0 : i32
    %c0_i32_1 = arith.constant 0 : i32
    return %c0_i32, %c0_i32_0 : i32, i32
  }
  func.func @transform_3(%arg0: i32) -> (i32, i32) {
    %c0_i32 = arith.constant 0 : i32
    %c0_i32_0 = arith.constant 0 : i32
    return %arg0, %c0_i32 : i32, i32
  }
}

</mosaic_0001>

<llo_original>
// kernel: conv_frontend_forward.4
$region0: #{conv_frontend_forward.4}
  #allocation0 [shape = 'u32[]', space=smem, size = 0x4, offset = 0x4, fixed_abs, tag = 'smem constant byte address 0x4 - core index']
  #allocation1 [shape = 'u32[144,128]{1,0:T(1,128)}', space=vmem, size = 0x12000, scoped, tag = 'internal scratch']
  %s0 = inlined_call_operand.vmem [shape: bf16[512,384], index: 0, kind: input, shape index: {}]
  %s1 = inlined_call_operand.vmem [shape: bf16[384,128], index: 1, kind: input, shape index: {}]
  %s2 = inlined_call_operand.vmem [shape: f32[1,128], index: 2, kind: input, shape index: {}]
  %s3 = inlined_call_operand.vmem [shape: bf16[512,128], index: 3, kind: output, shape index: {}]
  %s4 = sld [smem:[#allocation0]]
  $region45: #{conv_frontend_forward.4} parent=0
    _
  %s6 = ssub.s32 1, %s4
  %s7 = scalar_select 0, %s6, %s4
  loop: start=0, step=1, limit=4
  $region2: #{conv_frontend_forward.4} parent=0 // loop_pre_header
    _
  $region3: #{conv_frontend_forward.4} parent=0 // loop_header
    %s9 = sphi 0, %s13
    %p10 = scmp.ge.s32.totalorder %s9, 4
    %s19 = sphi 0, %s21
    %s22 = sphi 0, %s19
    %s23 = sphi 0, %s22
    %s39 = sphi 0, %s23
    %s43 = sphi 0, %s43
    %s45 = sphi 0, %s43
    %s46 = sphi 0, %s45
    %s60 = sphi 0, %s46
    %s64 = sphi 0, %s64
    %s66 = sphi 0, %s64
    %s67 = sphi 0, %s66
    %s81 = sphi 0, %s67
    %s87 = sphi 0, %s89
    %s90 = sphi 0, %s87
    %s91 = sphi 0, %s90
    %s107 = sphi 0, %s91
  $region4: #{conv_frontend_forward.4} parent=0 // loop_header_branch
    %12 = sbr.rel (%p10) target = $region8
  $region5: #{conv_frontend_forward.4} parent=0 // loop_body
    %s14 = ssub.s32 %s9, 1
    %s15 = ssub.s32 %s9, 2
    %s16 = sadd.s32 %s9, 1
    %s17 = ssub.s32 %s9, %s16
    %p18 = scmp.eq.s32.totalorder %s17, 0
    %s20 = sadd.s32 %s19, 1
    %s21 = scalar_select %p18, %s19, %s20
    %p24 = pneg %p18
    %p25 = scmp.eq.s32.totalorder %s9, 1
    %p26 = por %p24, %p25
    %p27 = scmp.ne.s32.totalorder %s19, %s22
    %p28 = scmp.eq.s32.totalorder %s9, 0
    %p29 = por %p27, %p28
    %p30 = scmp.ne.s32.totalorder %s19, %s22
    %p31 = scmp.eq.s32.totalorder %s14, 1
    %p32 = por %p30, %p31
    %p33 = scmp.ne.s32.totalorder %s22, %s23
    %p34 = scmp.eq.s32.totalorder %s14, 0
    %p35 = por %p33, %p34
    %p36 = scmp.ne.s32.totalorder %s22, %s23
    %p37 = scmp.eq.s32.totalorder %s15, 1
    %p38 = por %p36, %p37
    %p40 = scmp.ne.s32.totalorder %s23, %s39
    %p41 = scmp.eq.s32.totalorder %s15, 0
    %p42 = por %p40, %p41
    %s44 = sadd.s32 %s43, 1
    %p47 = scmp.eq.s32.totalorder %s9, 1
    %p48 = scmp.ne.s32.totalorder %s43, %s45
    %p49 = scmp.eq.s32.totalorder %s9, 0
    %p50 = por %p48, %p49
    %p51 = scmp.ne.s32.totalorder %s43, %s45
    %p52 = scmp.eq.s32.totalorder %s14, 1
    %p53 = por %p51, %p52
    %p54 = scmp.ne.s32.totalorder %s45, %s46
    %p55 = scmp.eq.s32.totalorder %s14, 0
    %p56 = por %p54, %p55
    %p57 = scmp.ne.s32.totalorder %s45, %s46
    %p58 = scmp.eq.s32.totalorder %s15, 1
    %p59 = por %p57, %p58
    %p61 = scmp.ne.s32.totalorder %s46, %s60
    %p62 = scmp.eq.s32.totalorder %s15, 0
    %p63 = por %p61, %p62
    %s65 = sadd.s32 %s64, 1
    %p68 = scmp.eq.s32.totalorder %s9, 1
    %p69 = scmp.ne.s32.totalorder %s64, %s66
    %p70 = scmp.eq.s32.totalorder %s9, 0
    %p71 = por %p69, %p70
    %p72 = scmp.ne.s32.totalorder %s64, %s66
    %p73 = scmp.eq.s32.totalorder %s14, 1
    %p74 = por %p72, %p73
    %p75 = scmp.ne.s32.totalorder %s66, %s67
    %p76 = scmp.eq.s32.totalorder %s14, 0
    %p77 = por %p75, %p76
    %p78 = scmp.ne.s32.totalorder %s66, %s67
    %p79 = scmp.eq.s32.totalorder %s15, 1
    %p80 = por %p78, %p79
    %p82 = scmp.ne.s32.totalorder %s67, %s81
    %p83 = scmp.eq.s32.totalorder %s15, 0
    %p84 = por %p82, %p83
    %s85 = ssub.s32 %s9, %s16
    %p86 = scmp.eq.s32.totalorder %s85, 0
    %s88 = sadd.s32 %s87, 1
    %s89 = scalar_select %p86, %s87, %s88
    %p92 = pneg %p86
    %p93 = scmp.eq.s32.totalorder %s9, 1
    %p94 = por %p92, %p93
    %p95 = scmp.ne.s32.totalorder %s87, %s90
    %p96 = scmp.eq.s32.totalorder %s9, 0
    %p97 = por %p95, %p96
    %p98 = scmp.ne.s32.totalorder %s87, %s90
    %p99 = scmp.eq.s32.totalorder %s14, 1
    %p100 = por %p98, %p99
    %p101 = scmp.ne.s32.totalorder %s90, %s91
    %p102 = scmp.eq.s32.totalorder %s14, 0
    %p103 = por %p101, %p102
    %p104 = scmp.ne.s32.totalorder %s90, %s91
    %p105 = scmp.eq.s32.totalorder %s15, 1
    %p106 = por %p104, %p105
    %p108 = scmp.ne.s32.totalorder %s91, %s107
    %p109 = scmp.eq.s32.totalorder %s15, 0
    %p110 = por %p108, %p109
    %p111 = scmp.le.s32.totalorder 1, %s9
    %p112 = scmp.lt.s32.totalorder %s9, 3
    %p113 = pnand %p111, %p112
    %p114 = pneg %p113
    // Predicated region
    $region9: #{conv_frontend_forward.4} parent=5 // pred_check
      _
    $region10: #{conv_frontend_forward.4} parent=5 // pred_check_branch
      %116 = sbr.rel (%p113) target = $region12
    $region11: #{conv_frontend_forward.4} parent=5 // pred_region
      %s117 = ssub.s32 %s9, 1
      // Predicated region
      $region13: #{conv_frontend_forward.4} parent=11 // pred_check
        %p118 = pneg %p56
      $region14: #{conv_frontend_forward.4} parent=11 // pred_check_branch
        %120 = sbr.rel (%p118) target = $region16
      $region15: #{conv_frontend_forward.4} parent=11 // pred_region
        _
      $region16: #{conv_frontend_forward.4} parent=11 // pred_fallthru
        _
      // Predicated region
      $region17: #{conv_frontend_forward.4} parent=11 // pred_check
        %p121 = pneg %p77
      $region18: #{conv_frontend_forward.4} parent=11 // pred_check_branch
        %123 = sbr.rel (%p121) target = $region20
      $region19: #{conv_frontend_forward.4} parent=11 // pred_region
        _
      $region20: #{conv_frontend_forward.4} parent=11 // pred_fallthru
        _
    $region12: #{conv_frontend_forward.4} parent=5 // pred_fallthru
      _
    %p124 = scmp.lt.s32.totalorder %s9, 2
    // Predicated region
    $region21: #{conv_frontend_forward.4} parent=5 // pred_check
      %p125 = pneg %p124
    $region22: #{conv_frontend_forward.4} parent=5 // pred_check_branch
      %127 = sbr.rel (%p125) target = $region24
    $region23: #{conv_frontend_forward.4} parent=5 // pred_region
      // Predicated region
      $region25: #{conv_frontend_forward.4} parent=23 // pred_check
        %p128 = pneg %p29
      $region26: #{conv_frontend_forward.4} parent=23 // pred_check_branch
        %130 = sbr.rel (%p128) target = $region28
      $region27: #{conv_frontend_forward.4} parent=23 // pred_region
        %s131 = smul.u32 32, %s9
        %p132 = scmp.lt.s32.totalorder %s131, 63
        %s133 = scalar_select %p132, %s131, 63
        %s134 = smul.addr %s133, 3
        %s135 = smul.addr %s134, 4
        %s136 = scalar_lea.vmem %s0, %s135
        %s137 = smul.u32 32, %s9
      $region28: #{conv_frontend_forward.4} parent=23 // pred_fallthru
        _
    $region24: #{conv_frontend_forward.4} parent=5 // pred_fallthru
      _
    %p138 = scmp.le.s32.totalorder 1, %s9
    %p139 = scmp.lt.s32.totalorder %s9, 3
    %p140 = pnand %p138, %p139
    %p141 = pneg %p140
    // Predicated region
    $region29: #{conv_frontend_forward.4} parent=5 // pred_check
      _
    $region30: #{conv_frontend_forward.4} parent=5 // pred_check_branch
      %143 = sbr.rel (%p140) target = $region32
    $region31: #{conv_frontend_forward.4} parent=5 // pred_region
      %s144 = ssub.s32 %s9, 1
      %s145 = smul.u32 32, %s14
      %p146 = scmp.lt.s32.totalorder %s145, 63
      %s147 = scalar_select %p146, %s145, 63
      %s148 = smul.addr %s147, 3
      %s149 = smul.addr %s148, 4
      %s150 = scalar_lea.vmem %s0, %s149
      %p151 = pneg %p35
      %p152 = pneg %p32
      %p153 = pneg %p56
      %p154 = pneg %p53
      %p155 = pneg %p77
      %p156 = pneg %p74
      %p157 = pneg %p103
      %p158 = pneg %p100
      %s159 = smul.u32 32, %s14
      %p160 = scmp.lt.s32.totalorder %s159, 63
      %s161 = scalar_select %p160, %s159, 63
      %s162 = smul.addr %s161, 4
      %s163 = scalar_lea.vmem %s3, %s162
      %s164 = smul.u32 32, %s14
      %p165 = scmp.lt.s32.totalorder %s164, 63
      %s166 = scalar_select %p165, %s164, 63
      %s167 = smul.addr %s166, 3
      %s168 = smul.addr %s167, 4
      %s169 = scalar_lea.vmem %s0, %s168
      %s170 = smul.u32 32, %s14
      %s171 = smul.u32 32, %s14
      %p172 = scmp.lt.s32.totalorder %s171, 63
      %s173 = scalar_select %p172, %s171, 63
      %s174 = smul.addr %s173, 4
      %s175 = scalar_lea.vmem %s3, %s174
      %s176 = smul.u32 32, %s14
      %v178 = vld [vmem:[%s169] sm:$0xff]
      %v179 = vld [vmem:[%s169 + $0x8] sm:$0xf]
      %v180 = vld [vmem:[%s169 + $0xc] sm:$0xff]
      %v181 = vld [vmem:[%s169 + $0x14] sm:$0xf]
      %v182 = vld [vmem:[%s169 + $0x18] sm:$0xff]
      %v183 = vld [vmem:[%s169 + $0x20] sm:$0xf]
      %v184 = vld [vmem:[%s169 + $0x24] sm:$0xff]
      %v185 = vld [vmem:[%s169 + $0x2c] sm:$0xf]
      %v186 = vld [vmem:[%s169 + $0x30] sm:$0xff]
      %v187 = vld [vmem:[%s169 + $0x38] sm:$0xf]
      %v188 = vld [vmem:[%s169 + $0x3c] sm:$0xff]
      %v189 = vld [vmem:[%s169 + $0x44] sm:$0xf]
      %v190 = vld [vmem:[%s169 + $0x48] sm:$0xff]
      %v191 = vld [vmem:[%s169 + $0x50] sm:$0xf]
      %v192 = vld [vmem:[%s169 + $0x54] sm:$0xff]
      %v193 = vld [vmem:[%s169 + $0x5c] sm:$0xf]
      %v194 = vld [vmem:[%s169 + $0x60] sm:$0xff]
      %v195 = vld [vmem:[%s169 + $0x68] sm:$0xf]
      %v196 = vld [vmem:[%s169 + $0x6c] sm:$0xff]
      %v197 = vld [vmem:[%s169 + $0x74] sm:$0xf]
      %v198 = vld [vmem:[%s169 + $0x78] sm:$0xff]
      %v199 = vld [vmem:[%s169 + $0x80] sm:$0xf]
      %v200 = vld [vmem:[%s169 + $0x84] sm:$0xff]
      %v201 = vld [vmem:[%s169 + $0x8c] sm:$0xf]
      %v202 = vld [vmem:[%s169 + $0x90] sm:$0xff]
      %v203 = vld [vmem:[%s169 + $0x98] sm:$0xf]
      %v204 = vld [vmem:[%s169 + $0x9c] sm:$0xff]
      %v205 = vld [vmem:[%s169 + $0xa4] sm:$0xf]
      %v206 = vld [vmem:[%s169 + $0xa8] sm:$0xff]
      %v207 = vld [vmem:[%s169 + $0xb0] sm:$0xf]
      %v208 = vld [vmem:[%s169 + $0xb4] sm:$0xff]
      %v209 = vld [vmem:[%s169 + $0xbc] sm:$0xf]
      %v210 = vld [vmem:[%s169 + $0xc0] sm:$0xff]
      %v211 = vld [vmem:[%s169 + $0xc8] sm:$0xf]
      %v212 = vld [vmem:[%s169 + $0xcc] sm:$0xff]
      %v213 = vld [vmem:[%s169 + $0xd4] sm:$0xf]
      %v214 = vld [vmem:[%s169 + $0xd8] sm:$0xff]
      %v215 = vld [vmem:[%s169 + $0xe0] sm:$0xf]
      %v216 = vld [vmem:[%s169 + $0xe4] sm:$0xff]
      %v217 = vld [vmem:[%s169 + $0xec] sm:$0xf]
      %v218 = vld [vmem:[%s169 + $0xf0] sm:$0xff]
      %v219 = vld [vmem:[%s169 + $0xf8] sm:$0xf]
      %v220 = vld [vmem:[%s169 + $0xfc] sm:$0xff]
      %v221 = vld [vmem:[%s169 + $0x104] sm:$0xf]
      %v222 = vld [vmem:[%s169 + $0x108] sm:$0xff]
      %v223 = vld [vmem:[%s169 + $0x110] sm:$0xf]
      %v224 = vld [vmem:[%s169 + $0x114] sm:$0xff]
      %v225 = vld [vmem:[%s169 + $0x11c] sm:$0xf]
      %v226 = vld [vmem:[%s169 + $0x120] sm:$0xff]
      %v227 = vld [vmem:[%s169 + $0x128] sm:$0xf]
      %v228 = vld [vmem:[%s169 + $0x12c] sm:$0xff]
      %v229 = vld [vmem:[%s169 + $0x134] sm:$0xf]
      %v230 = vld [vmem:[%s169 + $0x138] sm:$0xff]
      %v231 = vld [vmem:[%s169 + $0x140] sm:$0xf]
      %v232 = vld [vmem:[%s169 + $0x144] sm:$0xff]
      %v233 = vld [vmem:[%s169 + $0x14c] sm:$0xf]
      %v234 = vld [vmem:[%s169 + $0x150] sm:$0xff]
      %v235 = vld [vmem:[%s169 + $0x158] sm:$0xf]
      %v236 = vld [vmem:[%s169 + $0x15c] sm:$0xff]
      %v237 = vld [vmem:[%s169 + $0x164] sm:$0xf]
      %v238 = vld [vmem:[%s169 + $0x168] sm:$0xff]
      %v239 = vld [vmem:[%s169 + $0x170] sm:$0xf]
      %v240 = vld [vmem:[%s169 + $0x174] sm:$0xff]
      %v241 = vld [vmem:[%s169 + $0x17c] sm:$0xf]
      %v242 = vld [vmem:[%s1] sm:$0xf]
      %v243 = vld [vmem:[%s1 + $0x4] sm:$0xf]
      %v244 = vld [vmem:[%s1 + $0x8] sm:$0xf]
      %v245 = vld [vmem:[%s1 + $0xc] sm:$0xf]
      %v246 = vld [vmem:[%s1 + $0x10] sm:$0xf]
      %v247 = vld [vmem:[%s1 + $0x14] sm:$0xf]
      %v248 = vld [vmem:[%s1 + $0x18] sm:$0xf]
      %v249 = vld [vmem:[%s1 + $0x1c] sm:$0xf]
      %v250 = vld [vmem:[%s1 + $0x20] sm:$0xf]
      %v251 = vld [vmem:[%s1 + $0x24] sm:$0xf]
      %v252 = vld [vmem:[%s1 + $0x28] sm:$0xf]
      %v253 = vld [vmem:[%s1 + $0x2c] sm:$0xf]
      %v254 = vld [vmem:[%s1 + $0x30] sm:$0xf]
      %v255 = vld [vmem:[%s1 + $0x34] sm:$0xf]
      %v256 = vld [vmem:[%s1 + $0x38] sm:$0xf]
      %v257 = vld [vmem:[%s1 + $0x3c] sm:$0xf]
      %v258 = vld [vmem:[%s1 + $0x40] sm:$0xf]
      %v259 = vld [vmem:[%s1 + $0x44] sm:$0xf]
      %v260 = vld [vmem:[%s1 + $0x48] sm:$0xf]
      %v261 = vld [vmem:[%s1 + $0x4c] sm:$0xf]
      %v262 = vld [vmem:[%s1 + $0x50] sm:$0xf]
      %v263 = vld [vmem:[%s1 + $0x54] sm:$0xf]
      %v264 = vld [vmem:[%s1 + $0x58] sm:$0xf]
      %v265 = vld [vmem:[%s1 + $0x5c] sm:$0xf]
      %v266 = vld [vmem:[%s1 + $0x60] sm:$0xf]
      %v267 = vld [vmem:[%s1 + $0x64] sm:$0xf]
      %v268 = vld [vmem:[%s1 + $0x68] sm:$0xf]
      %v269 = vld [vmem:[%s1 + $0x6c] sm:$0xf]
      %v270 = vld [vmem:[%s1 + $0x70] sm:$0xf]
      %v271 = vld [vmem:[%s1 + $0x74] sm:$0xf]
      %v272 = vld [vmem:[%s1 + $0x78] sm:$0xf]
      %v273 = vld [vmem:[%s1 + $0x7c] sm:$0xf]
      %v274 = vld [vmem:[%s1 + $0x80] sm:$0xf]
      %v275 = vld [vmem:[%s1 + $0x84] sm:$0xf]
      %v276 = vld [vmem:[%s1 + $0x88] sm:$0xf]
      %v277 = vld [vmem:[%s1 + $0x8c] sm:$0xf]
      %v278 = vld [vmem:[%s1 + $0x90] sm:$0xf]
      %v279 = vld [vmem:[%s1 + $0x94] sm:$0xf]
      %v280 = vld [vmem:[%s1 + $0x98] sm:$0xf]
      %v281 = vld [vmem:[%s1 + $0x9c] sm:$0xf]
      %v282 = vld [vmem:[%s1 + $0xa0] sm:$0xf]
      %v283 = vld [vmem:[%s1 + $0xa4] sm:$0xf]
      %v284 = vld [vmem:[%s1 + $0xa8] sm:$0xf]
      %v285 = vld [vmem:[%s1 + $0xac] sm:$0xf]
      %v286 = vld [vmem:[%s1 + $0xb0] sm:$0xf]
      %v287 = vld [vmem:[%s1 + $0xb4] sm:$0xf]
      %v288 = vld [vmem:[%s1 + $0xb8] sm:$0xf]
      %v289 = vld [vmem:[%s1 + $0xbc] sm:$0xf]
      %v290 = vld [vmem:[%s2] sm:$0x1]
      %v292 = vlaneseq
      %v293 = vshrl.u32 %v292, 7
      %v294 = vsub.s32 0, %v293
      %v295 = vrot.slane %v290, %v294
      %v361 = vunpack.c.l.b16 %v178
      %v362 = vunpack.c.h.b16 %v178
      %v363 = vunpack.c.l.b16 %v179
      %v364 = vunpack.c.l.b16 %v180
      %v365 = vunpack.c.h.b16 %v180
      %v366 = vunpack.c.l.b16 %v181
      %v367 = vunpack.c.l.b16 %v182
      %v368 = vunpack.c.h.b16 %v182
      %v369 = vunpack.c.l.b16 %v183
      %v370 = vunpack.c.l.b16 %v184
      %v371 = vunpack.c.h.b16 %v184
      %v372 = vunpack.c.l.b16 %v185
      %v373 = vunpack.c.l.b16 %v186
      %v374 = vunpack.c.h.b16 %v186
      %v375 = vunpack.c.l.b16 %v187
      %v376 = vunpack.c.l.b16 %v188
      %v377 = vunpack.c.h.b16 %v188
      %v378 = vunpack.c.l.b16 %v189
      %v379 = vunpack.c.l.b16 %v190
      %v380 = vunpack.c.h.b16 %v190
      %v381 = vunpack.c.l.b16 %v191
      %v382 = vunpack.c.l.b16 %v192
      %v383 = vunpack.c.h.b16 %v192
      %v384 = vunpack.c.l.b16 %v193
      %v385 = vunpack.c.l.b16 %v194
      %v386 = vunpack.c.h.b16 %v194
      %v387 = vunpack.c.l.b16 %v195
      %v388 = vunpack.c.l.b16 %v196
      %v389 = vunpack.c.h.b16 %v196
      %v390 = vunpack.c.l.b16 %v197
      %v391 = vunpack.c.l.b16 %v198
      %v392 = vunpack.c.h.b16 %v198
      %v393 = vunpack.c.l.b16 %v199
      %v394 = vunpack.c.l.b16 %v200
      %v395 = vunpack.c.h.b16 %v200
      %v396 = vunpack.c.l.b16 %v201
      %v397 = vunpack.c.l.b16 %v202
      %v398 = vunpack.c.h.b16 %v202
      %v399 = vunpack.c.l.b16 %v203
      %v400 = vunpack.c.l.b16 %v204
      %v401 = vunpack.c.h.b16 %v204
      %v402 = vunpack.c.l.b16 %v205
      %v403 = vunpack.c.l.b16 %v206
      %v404 = vunpack.c.h.b16 %v206
      %v405 = vunpack.c.l.b16 %v207
      %v406 = vunpack.c.l.b16 %v208
      %v407 = vunpack.c.h.b16 %v208
      %v408 = vunpack.c.l.b16 %v209
      %v409 = vunpack.c.l.b16 %v210
      %v410 = vunpack.c.h.b16 %v210
      %v411 = vunpack.c.l.b16 %v211
      %v412 = vunpack.c.l.b16 %v212
      %v413 = vunpack.c.h.b16 %v212
      %v414 = vunpack.c.l.b16 %v213
      %v415 = vunpack.c.l.b16 %v214
      %v416 = vunpack.c.h.b16 %v214
      %v417 = vunpack.c.l.b16 %v215
      %v418 = vunpack.c.l.b16 %v216
      %v419 = vunpack.c.h.b16 %v216
      %v420 = vunpack.c.l.b16 %v217
      %v421 = vunpack.c.l.b16 %v218
      %v422 = vunpack.c.h.b16 %v218
      %v423 = vunpack.c.l.b16 %v219
      %v424 = vunpack.c.l.b16 %v220
      %v425 = vunpack.c.h.b16 %v220
      %v426 = vunpack.c.l.b16 %v221
      %v427 = vunpack.c.l.b16 %v222
      %v428 = vunpack.c.h.b16 %v222
      %v429 = vunpack.c.l.b16 %v223
      %v430 = vunpack.c.l.b16 %v224
      %v431 = vunpack.c.h.b16 %v224
      %v432 = vunpack.c.l.b16 %v225
      %v433 = vunpack.c.l.b16 %v226
      %v434 = vunpack.c.h.b16 %v226
      %v435 = vunpack.c.l.b16 %v227
      %v436 = vunpack.c.l.b16 %v228
      %v437 = vunpack.c.h.b16 %v228
      %v438 = vunpack.c.l.b16 %v229
      %v439 = vunpack.c.l.b16 %v230
      %v440 = vunpack.c.h.b16 %v230
      %v441 = vunpack.c.l.b16 %v231
      %v442 = vunpack.c.l.b16 %v232
      %v443 = vunpack.c.h.b16 %v232
      %v444 = vunpack.c.l.b16 %v233
      %v445 = vunpack.c.l.b16 %v234
      %v446 = vunpack.c.h.b16 %v234
      %v447 = vunpack.c.l.b16 %v235
      %v448 = vunpack.c.l.b16 %v236
      %v449 = vunpack.c.h.b16 %v236
      %v450 = vunpack.c.l.b16 %v237
      %v451 = vunpack.c.l.b16 %v238
      %v452 = vunpack.c.h.b16 %v238
      %v453 = vunpack.c.l.b16 %v239
      %v454 = vunpack.c.l.b16 %v240
      %v455 = vunpack.c.h.b16 %v240
      %v456 = vunpack.c.l.b16 %v241
      %v457 = vpack.c.b16 %v364, %v361
      %v458 = vpack.c.b16 %v365, %v362
      %v459 = vpack.c.b16 %v366, %v363
      %v460 = vpack.c.b16 %v370, %v367
      %v461 = vpack.c.b16 %v371, %v368
      %v462 = vpack.c.b16 %v372, %v369
      %v463 = vpack.c.b16 %v376, %v373
      %v464 = vpack.c.b16 %v377, %v374
      %v465 = vpack.c.b16 %v378, %v375
      %v466 = vpack.c.b16 %v382, %v379
      %v467 = vpack.c.b16 %v383, %v380
      %v468 = vpack.c.b16 %v384, %v381
      %v469 = vpack.c.b16 %v388, %v385
      %v470 = vpack.c.b16 %v389, %v386
      %v471 = vpack.c.b16 %v390, %v387
      %v472 = vpack.c.b16 %v394, %v391
      %v473 = vpack.c.b16 %v395, %v392
      %v474 = vpack.c.b16 %v396, %v393
      %v475 = vpack.c.b16 %v400, %v397
      %v476 = vpack.c.b16 %v401, %v398
      %v477 = vpack.c.b16 %v402, %v399
      %v478 = vpack.c.b16 %v406, %v403
      %v479 = vpack.c.b16 %v407, %v404
      %v480 = vpack.c.b16 %v408, %v405
      %v481 = vpack.c.b16 %v412, %v409
      %v482 = vpack.c.b16 %v413, %v410
      %v483 = vpack.c.b16 %v414, %v411
      %v484 = vpack.c.b16 %v418, %v415
      %v485 = vpack.c.b16 %v419, %v416
      %v486 = vpack.c.b16 %v420, %v417
      %v487 = vpack.c.b16 %v424, %v421
      %v488 = vpack.c.b16 %v425, %v422
      %v489 = vpack.c.b16 %v426, %v423
      %v490 = vpack.c.b16 %v430, %v427
      %v491 = vpack.c.b16 %v431, %v428
      %v492 = vpack.c.b16 %v432, %v429
      %v493 = vpack.c.b16 %v436, %v433
      %v494 = vpack.c.b16 %v437, %v434
      %v495 = vpack.c.b16 %v438, %v435
      %v496 = vpack.c.b16 %v442, %v439
      %v497 = vpack.c.b16 %v443, %v440
      %v498 = vpack.c.b16 %v444, %v441
      %v499 = vpack.c.b16 %v448, %v445
      %v500 = vpack.c.b16 %v449, %v446
      %v501 = vpack.c.b16 %v450, %v447
      %v502 = vpack.c.b16 %v454, %v451
      %v503 = vpack.c.b16 %v455, %v452
      %v504 = vpack.c.b16 %v456, %v453
      %v601 = vunpack.c.l.b16 %v242
      %v602 = vunpack.c.l.b16 %v243
      %v603 = vunpack.c.l.b16 %v244
      %v604 = vunpack.c.l.b16 %v245
      %v605 = vunpack.c.l.b16 %v246
      %v606 = vunpack.c.l.b16 %v247
      %v607 = vunpack.c.l.b16 %v248
      %v608 = vunpack.c.l.b16 %v249
      %v609 = vunpack.c.l.b16 %v250
      %v610 = vunpack.c.l.b16 %v251
      %v611 = vunpack.c.l.b16 %v252
      %v612 = vunpack.c.l.b16 %v253
      %v613 = vunpack.c.l.b16 %v254
      %v614 = vunpack.c.l.b16 %v255
      %v615 = vunpack.c.l.b16 %v256
      %v616 = vunpack.c.l.b16 %v257
      %v617 = vunpack.c.l.b16 %v258
      %v618 = vunpack.c.l.b16 %v259
      %v619 = vunpack.c.l.b16 %v260
      %v620 = vunpack.c.l.b16 %v261
      %v621 = vunpack.c.l.b16 %v262
      %v622 = vunpack.c.l.b16 %v263
      %v623 = vunpack.c.l.b16 %v264
      %v624 = vunpack.c.l.b16 %v265
      %v625 = vunpack.c.l.b16 %v266
      %v626 = vunpack.c.l.b16 %v267
      %v627 = vunpack.c.l.b16 %v268
      %v628 = vunpack.c.l.b16 %v269
      %v629 = vunpack.c.l.b16 %v270
      %v630 = vunpack.c.l.b16 %v271
      %v631 = vunpack.c.l.b16 %v272
      %v632 = vunpack.c.l.b16 %v273
      %v633 = vunpack.c.l.b16 %v274
      %v634 = vunpack.c.l.b16 %v275
      %v635 = vunpack.c.l.b16 %v276
      %v636 = vunpack.c.l.b16 %v277
      %v637 = vunpack.c.l.b16 %v278
      %v638 = vunpack.c.l.b16 %v279
      %v639 = vunpack.c.l.b16 %v280
      %v640 = vunpack.c.l.b16 %v281
      %v641 = vunpack.c.l.b16 %v282
      %v642 = vunpack.c.l.b16 %v283
      %v643 = vunpack.c.l.b16 %v284
      %v644 = vunpack.c.l.b16 %v285
      %v645 = vunpack.c.l.b16 %v286
      %v646 = vunpack.c.l.b16 %v287
      %v647 = vunpack.c.l.b16 %v288
      %v648 = vunpack.c.l.b16 %v289
      %v649 = vpack.c.b16 %v602, %v601
      %v650 = vpack.c.b16 %v604, %v603
      %v651 = vpack.c.b16 %v606, %v605
      %v652 = vpack.c.b16 %v608, %v607
      %v653 = vpack.c.b16 %v610, %v609
      %v654 = vpack.c.b16 %v612, %v611
      %v655 = vpack.c.b16 %v614, %v613
      %v656 = vpack.c.b16 %v616, %v615
      %v657 = vpack.c.b16 %v618, %v617
      %v658 = vpack.c.b16 %v620, %v619
      %v659 = vpack.c.b16 %v622, %v621
      %v660 = vpack.c.b16 %v624, %v623
      %v661 = vpack.c.b16 %v626, %v625
      %v662 = vpack.c.b16 %v628, %v627
      %v663 = vpack.c.b16 %v630, %v629
      %v664 = vpack.c.b16 %v632, %v631
      %v665 = vpack.c.b16 %v634, %v633
      %v666 = vpack.c.b16 %v636, %v635
      %v667 = vpack.c.b16 %v638, %v637
      %v668 = vpack.c.b16 %v640, %v639
      %v669 = vpack.c.b16 %v642, %v641
      %v670 = vpack.c.b16 %v644, %v643
      %v671 = vpack.c.b16 %v646, %v645
      %v672 = vpack.c.b16 %v648, %v647
      %697 = vmatprep.subr.bf16.mxu0 0
      %698 = vmatpush1.bf16.msra.mxu0 %v656
      %699 = vmatprep.subr.bf16.mxu0 0
      %700 = vmatpush1.bf16.msra.mxu0 %v655
      %701 = vmatprep.subr.bf16.mxu0 0
      %702 = vmatpush1.bf16.msra.mxu0 %v654
      %703 = vmatprep.subr.bf16.mxu0 0
      %704 = vmatpush1.bf16.msra.mxu0 %v653
      %705 = vmatprep.subr.bf16.mxu0 0
      %706 = vmatpush1.bf16.msra.mxu0 %v652
      %707 = vmatprep.subr.bf16.mxu0 0
      %708 = vmatpush1.bf16.msra.mxu0 %v651
      %709 = vmatprep.subr.bf16.mxu0 0
      %710 = vmatpush1.bf16.msra.mxu0 %v650
      %711 = vmatprep.subr.bf16.mxu0 0
      %712 = vmatpush1.bf16.msra.mxu0 %v649
      %713 = vmatprep.subr.bf16.mxu0 0
      %714 = vmatpush2.bf16.msra.mxu0 %v664
      %715 = vmatprep.subr.bf16.mxu0 0
      %716 = vmatpush2.bf16.msra.mxu0 %v663
      %717 = vmatprep.subr.bf16.mxu0 0
      %718 = vmatpush2.bf16.msra.mxu0 %v662
      %719 = vmatprep.subr.bf16.mxu0 0
      %720 = vmatpush2.bf16.msra.mxu0 %v661
      %721 = vmatprep.subr.bf16.mxu0 0
      %722 = vmatpush2.bf16.msra.mxu0 %v660
      %723 = vmatprep.subr.bf16.mxu0 0
      %724 = vmatpush2.bf16.msra.mxu0 %v659
      %725 = vmatprep.subr.bf16.mxu0 0
      %726 = vmatpush2.bf16.msra.mxu0 %v658
      %727 = vmatprep.subr.bf16.mxu0 0
      %728 = vmatpush2.bf16.msra.mxu0 %v657
      %729 = vmatprep.mubr.bf16.mxu0 %v458
      %730 = vmatmul.mubr.bf16.gmra.mxu0 %v457
      %v731 = vpop.f32.mrf.mxu0
      %v732 = vadd.f32 %v295, %v731
      %v733 = vpop.f32.mrf.mxu0
      %v734 = vpop.f32.mrf.mxu0
      %v735 = vadd.f32 %v295, %v734
      %v736 = vpop.f32.mrf.mxu0
      %737 = vmatprep.mubr.bf16.mxu0 %v461
      %738 = vmatmul.mubr.bf16.gmra.mxu0 %v460
      %v739 = vpop.f32.mrf.mxu0
      %v740 = vadd.f32 %v295, %v739
      %v741 = vpop.f32.mrf.mxu0
      %v742 = vpop.f32.mrf.mxu0
      %v743 = vadd.f32 %v295, %v742
      %v744 = vpop.f32.mrf.mxu0
      %745 = vmatprep.mubr.bf16.mxu0 %v464
      %746 = vmatmul.mubr.bf16.gmra.mxu0 %v463
      %v747 = vpop.f32.mrf.mxu0
      %v748 = vadd.f32 %v295, %v747
      %v749 = vpop.f32.mrf.mxu0
      %v750 = vpop.f32.mrf.mxu0
      %v751 = vadd.f32 %v295, %v750
      %v752 = vpop.f32.mrf.mxu0
      %753 = vmatprep.mubr.bf16.mxu0 %v467
      %754 = vmatmul.mubr.bf16.gmra.mxu0 %v466
      %v755 = vpop.f32.mrf.mxu0
      %v756 = vadd.f32 %v295, %v755
      %v757 = vpop.f32.mrf.mxu0
      %v758 = vpop.f32.mrf.mxu0
      %v759 = vadd.f32 %v295, %v758
      %v760 = vpop.f32.mrf.mxu0
      %761 = vmatprep.mubr.bf16.mxu0 %v470
      %762 = vmatmul.mubr.bf16.gmra.mxu0 %v469
      %v763 = vpop.f32.mrf.mxu0
      %v764 = vadd.f32 %v295, %v763
      %v765 = vpop.f32.mrf.mxu0
      %v766 = vpop.f32.mrf.mxu0
      %v767 = vadd.f32 %v295, %v766
      %v768 = vpop.f32.mrf.mxu0
      %769 = vmatprep.mubr.bf16.mxu0 %v473
      %770 = vmatmul.mubr.bf16.gmra.mxu0 %v472
      %v771 = vpop.f32.mrf.mxu0
      %v772 = vadd.f32 %v295, %v771
      %v773 = vpop.f32.mrf.mxu0
      %v774 = vpop.f32.mrf.mxu0
      %v775 = vadd.f32 %v295, %v774
      %v776 = vpop.f32.mrf.mxu0
      %777 = vmatprep.mubr.bf16.mxu0 %v476
      %778 = vmatmul.mubr.bf16.gmra.mxu0 %v475
      %v779 = vpop.f32.mrf.mxu0
      %v780 = vadd.f32 %v295, %v779
      %v781 = vpop.f32.mrf.mxu0
      %v782 = vpop.f32.mrf.mxu0
      %v783 = vadd.f32 %v295, %v782
      %v784 = vpop.f32.mrf.mxu0
      %785 = vmatprep.mubr.bf16.mxu0 %v479
      %786 = vmatmul.mubr.bf16.gmra.mxu0 %v478
      %v787 = vpop.f32.mrf.mxu0
      %v788 = vadd.f32 %v295, %v787
      %v789 = vpop.f32.mrf.mxu0
      %v790 = vpop.f32.mrf.mxu0
      %v791 = vadd.f32 %v295, %v790
      %v792 = vpop.f32.mrf.mxu0
      %793 = vmatprep.mubr.bf16.mxu0 %v482
      %794 = vmatmul.mubr.bf16.gmra.mxu0 %v481
      %v795 = vpop.f32.mrf.mxu0
      %v796 = vadd.f32 %v295, %v795
      %v797 = vpop.f32.mrf.mxu0
      %v798 = vpop.f32.mrf.mxu0
      %v799 = vadd.f32 %v295, %v798
      %v800 = vpop.f32.mrf.mxu0
      %801 = vmatprep.mubr.bf16.mxu0 %v485
      %802 = vmatmul.mubr.bf16.gmra.mxu0 %v484
      %v803 = vpop.f32.mrf.mxu0
      %v804 = vadd.f32 %v295, %v803
      %v805 = vpop.f32.mrf.mxu0
      %v806 = vpop.f32.mrf.mxu0
      %v807 = vadd.f32 %v295, %v806
      %v808 = vpop.f32.mrf.mxu0
      %809 = vmatprep.mubr.bf16.mxu0 %v488
      %810 = vmatmul.mubr.bf16.gmra.mxu0 %v487
      %v811 = vpop.f32.mrf.mxu0
      %v812 = vadd.f32 %v295, %v811
      %v813 = vpop.f32.mrf.mxu0
      %v814 = vpop.f32.mrf.mxu0
      %v815 = vadd.f32 %v295, %v814
      %v816 = vpop.f32.mrf.mxu0
      %817 = vmatprep.mubr.bf16.mxu0 %v491
      %818 = vmatmul.mubr.bf16.gmra.mxu0 %v490
      %v819 = vpop.f32.mrf.mxu0
      %v820 = vadd.f32 %v295, %v819
      %v821 = vpop.f32.mrf.mxu0
      %v822 = vpop.f32.mrf.mxu0
      %v823 = vadd.f32 %v295, %v822
      %v824 = vpop.f32.mrf.mxu0
      %825 = vmatprep.mubr.bf16.mxu0 %v494
      %826 = vmatmul.mubr.bf16.gmra.mxu0 %v493
      %v827 = vpop.f32.mrf.mxu0
      %v828 = vadd.f32 %v295, %v827
      %v829 = vpop.f32.mrf.mxu0
      %v830 = vpop.f32.mrf.mxu0
      %v831 = vadd.f32 %v295, %v830
      %v832 = vpop.f32.mrf.mxu0
      %833 = vmatprep.mubr.bf16.mxu0 %v497
      %834 = vmatmul.mubr.bf16.gmra.mxu0 %v496
      %v835 = vpop.f32.mrf.mxu0
      %v836 = vadd.f32 %v295, %v835
      %v837 = vpop.f32.mrf.mxu0
      %v838 = vpop.f32.mrf.mxu0
      %v839 = vadd.f32 %v295, %v838
      %v840 = vpop.f32.mrf.mxu0
      %841 = vmatprep.mubr.bf16.mxu0 %v500
      %842 = vmatmul.mubr.bf16.gmra.mxu0 %v499
      %v843 = vpop.f32.mrf.mxu0
      %v844 = vadd.f32 %v295, %v843
      %v845 = vpop.f32.mrf.mxu0
      %v846 = vpop.f32.mrf.mxu0
      %v847 = vadd.f32 %v295, %v846
      %v848 = vpop.f32.mrf.mxu0
      %849 = vmatprep.mubr.bf16.mxu0 %v503
      %850 = vmatmul.mubr.bf16.gmra.mxu0 %v502
      %v851 = vpop.f32.mrf.mxu0
      %v852 = vadd.f32 %v295, %v851
      %v853 = vpop.f32.mrf.mxu0
      %v854 = vpop.f32.mrf.mxu0
      %v855 = vadd.f32 %v295, %v854
      %v856 = vpop.f32.mrf.mxu0
      %857 = vdwg.mxu0
      %858 = vmatprep.subr.bf16.mxu0 0
      %859 = vmatpush1.bf16.msra.mxu0 %v672
      %860 = vmatprep.subr.bf16.mxu0 0
      %861 = vmatpush1.bf16.msra.mxu0 %v671
      %862 = vmatprep.subr.bf16.mxu0 0
      %863 = vmatpush1.bf16.msra.mxu0 %v670
      %864 = vmatprep.subr.bf16.mxu0 0
      %865 = vmatpush1.bf16.msra.mxu0 %v669
      %866 = vmatprep.subr.bf16.mxu0 0
      %867 = vmatpush1.bf16.msra.mxu0 %v668
      %868 = vmatprep.subr.bf16.mxu0 0
      %869 = vmatpush1.bf16.msra.mxu0 %v667
      %870 = vmatprep.subr.bf16.mxu0 0
      %871 = vmatpush1.bf16.msra.mxu0 %v666
      %872 = vmatprep.subr.bf16.mxu0 0
      %873 = vmatpush1.bf16.msra.mxu0 %v665
      %874 = vmatprep.subr.bf16.mxu0 0
      %875 = vmatpush2.bf16.msra.mxu0 0
      %876 = vmatprep.subr.bf16.mxu0 0
      %877 = vmatpush2.bf16.msra.mxu0 0
      %878 = vmatprep.subr.bf16.mxu0 0
      %879 = vmatpush2.bf16.msra.mxu0 0
      %880 = vmatprep.subr.bf16.mxu0 0
      %881 = vmatpush2.bf16.msra.mxu0 0
      %882 = vmatprep.subr.bf16.mxu0 0
      %883 = vmatpush2.bf16.msra.mxu0 0
      %884 = vmatprep.subr.bf16.mxu0 0
      %885 = vmatpush2.bf16.msra.mxu0 0
      %886 = vmatprep.subr.bf16.mxu0 0
      %887 = vmatpush2.bf16.msra.mxu0 0
      %888 = vmatprep.subr.bf16.mxu0 0
      %889 = vmatpush2.bf16.msra.mxu0 0
      %890 = vmatprep.mubr.bf16.mxu0 0
      %891 = vmatmul.mubr.bf16.gmra.mxu0 %v459
      %v892 = vpop.f32.mrf.mxu0
      %v893 = vadd.f32 %v732, %v892
      %v894 = vpop.f32.mrf.mxu0
      %v895 = vpop.f32.mrf.mxu0
      %v896 = vadd.f32 %v735, %v895
      %v897 = vpop.f32.mrf.mxu0
      %898 = vmatprep.mubr.bf16.mxu0 0
      %899 = vmatmul.mubr.bf16.gmra.mxu0 %v462
      %v900 = vpop.f32.mrf.mxu0
      %v901 = vadd.f32 %v740, %v900
      %v902 = vpop.f32.mrf.mxu0
      %v903 = vpop.f32.mrf.mxu0
      %v904 = vadd.f32 %v743, %v903
      %v905 = vpop.f32.mrf.mxu0
      %906 = vmatprep.mubr.bf16.mxu0 0
      %907 = vmatmul.mubr.bf16.gmra.mxu0 %v465
      %v908 = vpop.f32.mrf.mxu0
      %v909 = vadd.f32 %v748, %v908
      %v910 = vpop.f32.mrf.mxu0
      %v911 = vpop.f32.mrf.mxu0
      %v912 = vadd.f32 %v751, %v911
      %v913 = vpop.f32.mrf.mxu0
      %914 = vmatprep.mubr.bf16.mxu0 0
      %915 = vmatmul.mubr.bf16.gmra.mxu0 %v468
      %v916 = vpop.f32.mrf.mxu0
      %v917 = vadd.f32 %v756, %v916
      %v918 = vpop.f32.mrf.mxu0
      %v919 = vpop.f32.mrf.mxu0
      %v920 = vadd.f32 %v759, %v919
      %v921 = vpop.f32.mrf.mxu0
      %922 = vmatprep.mubr.bf16.mxu0 0
      %923 = vmatmul.mubr.bf16.gmra.mxu0 %v471
      %v924 = vpop.f32.mrf.mxu0
      %v925 = vadd.f32 %v764, %v924
      %v926 = vpop.f32.mrf.mxu0
      %v927 = vpop.f32.mrf.mxu0
      %v928 = vadd.f32 %v767, %v927
      %v929 = vpop.f32.mrf.mxu0
      %930 = vmatprep.mubr.bf16.mxu0 0
      %931 = vmatmul.mubr.bf16.gmra.mxu0 %v474
      %v932 = vpop.f32.mrf.mxu0
      %v933 = vadd.f32 %v772, %v932
      %v934 = vpop.f32.mrf.mxu0
      %v935 = vpop.f32.mrf.mxu0
      %v936 = vadd.f32 %v775, %v935
      %v937 = vpop.f32.mrf.mxu0
      %938 = vmatprep.mubr.bf16.mxu0 0
      %939 = vmatmul.mubr.bf16.gmra.mxu0 %v477
      %v940 = vpop.f32.mrf.mxu0
      %v941 = vadd.f32 %v780, %v940
      %v942 = vpop.f32.mrf.mxu0
      %v943 = vpop.f32.mrf.mxu0
      %v944 = vadd.f32 %v783, %v943
      %v945 = vpop.f32.mrf.mxu0
      %946 = vmatprep.mubr.bf16.mxu0 0
      %947 = vmatmul.mubr.bf16.gmra.mxu0 %v480
      %v948 = vpop.f32.mrf.mxu0
      %v949 = vadd.f32 %v788, %v948
      %v950 = vpop.f32.mrf.mxu0
      %v951 = vpop.f32.mrf.mxu0
      %v952 = vadd.f32 %v791, %v951
      %v953 = vpop.f32.mrf.mxu0
      %954 = vmatprep.mubr.bf16.mxu0 0
      %955 = vmatmul.mubr.bf16.gmra.mxu0 %v483
      %v956 = vpop.f32.mrf.mxu0
      %v957 = vadd.f32 %v796, %v956
      %v958 = vpop.f32.mrf.mxu0
      %v959 = vpop.f32.mrf.mxu0
      %v960 = vadd.f32 %v799, %v959
      %v961 = vpop.f32.mrf.mxu0
      %962 = vmatprep.mubr.bf16.mxu0 0
      %963 = vmatmul.mubr.bf16.gmra.mxu0 %v486
      %v964 = vpop.f32.mrf.mxu0
      %v965 = vadd.f32 %v804, %v964
      %v966 = vpop.f32.mrf.mxu0
      %v967 = vpop.f32.mrf.mxu0
      %v968 = vadd.f32 %v807, %v967
      %v969 = vpop.f32.mrf.mxu0
      %970 = vmatprep.mubr.bf16.mxu0 0
      %971 = vmatmul.mubr.bf16.gmra.mxu0 %v489
      %v972 = vpop.f32.mrf.mxu0
      %v973 = vadd.f32 %v812, %v972
      %v974 = vpop.f32.mrf.mxu0
      %v975 = vpop.f32.mrf.mxu0
      %v976 = vadd.f32 %v815, %v975
      %v977 = vpop.f32.mrf.mxu0
      %978 = vmatprep.mubr.bf16.mxu0 0
      %979 = vmatmul.mubr.bf16.gmra.mxu0 %v492
      %v980 = vpop.f32.mrf.mxu0
      %v981 = vadd.f32 %v820, %v980
      %v982 = vpop.f32.mrf.mxu0
      %v983 = vpop.f32.mrf.mxu0
      %v984 = vadd.f32 %v823, %v983
      %v985 = vpop.f32.mrf.mxu0
      %986 = vmatprep.mubr.bf16.mxu0 0
      %987 = vmatmul.mubr.bf16.gmra.mxu0 %v495
      %v988 = vpop.f32.mrf.mxu0
      %v989 = vadd.f32 %v828, %v988
      %v990 = vpop.f32.mrf.mxu0
      %v991 = vpop.f32.mrf.mxu0
      %v992 = vadd.f32 %v831, %v991
      %v993 = vpop.f32.mrf.mxu0
      %994 = vmatprep.mubr.bf16.mxu0 0
      %995 = vmatmul.mubr.bf16.gmra.mxu0 %v498
      %v996 = vpop.f32.mrf.mxu0
      %v997 = vadd.f32 %v836, %v996
      %v998 = vpop.f32.mrf.mxu0
      %v999 = vpop.f32.mrf.mxu0
      %v1000 = vadd.f32 %v839, %v999
      %v1001 = vpop.f32.mrf.mxu0
      %1002 = vmatprep.mubr.bf16.mxu0 0
      %1003 = vmatmul.mubr.bf16.gmra.mxu0 %v501
      %v1004 = vpop.f32.mrf.mxu0
      %v1005 = vadd.f32 %v844, %v1004
      %v1006 = vpop.f32.mrf.mxu0
      %v1007 = vpop.f32.mrf.mxu0
      %v1008 = vadd.f32 %v847, %v1007
      %v1009 = vpop.f32.mrf.mxu0
      %1010 = vmatprep.mubr.bf16.mxu0 0
      %1011 = vmatmul.mubr.bf16.gmra.mxu0 %v504
      %v1012 = vpop.f32.mrf.mxu0
      %v1013 = vadd.f32 %v852, %v1012
      %v1014 = vpop.f32.mrf.mxu0
      %v1015 = vpop.f32.mrf.mxu0
      %v1016 = vadd.f32 %v855, %v1015
      %v1017 = vpop.f32.mrf.mxu0
      %1018 = vdwg.mxu0
      %v1019 = vmax.f32 %v893, 0.0
      %v1020 = vmax.f32 %v896, 0.0
      %v1021 = vmax.f32 %v901, 0.0
      %v1022 = vmax.f32 %v904, 0.0
      %v1023 = vmax.f32 %v909, 0.0
      %v1024 = vmax.f32 %v912, 0.0
      %v1025 = vmax.f32 %v917, 0.0
      %v1026 = vmax.f32 %v920, 0.0
      %v1027 = vmax.f32 %v925, 0.0
      %v1028 = vmax.f32 %v928, 0.0
      %v1029 = vmax.f32 %v933, 0.0
      %v1030 = vmax.f32 %v936, 0.0
      %v1031 = vmax.f32 %v941, 0.0
      %v1032 = vmax.f32 %v944, 0.0
      %v1033 = vmax.f32 %v949, 0.0
      %v1034 = vmax.f32 %v952, 0.0
      %v1035 = vmax.f32 %v957, 0.0
      %v1036 = vmax.f32 %v960, 0.0
      %v1037 = vmax.f32 %v965, 0.0
      %v1038 = vmax.f32 %v968, 0.0
      %v1039 = vmax.f32 %v973, 0.0
      %v1040 = vmax.f32 %v976, 0.0
      %v1041 = vmax.f32 %v981, 0.0
      %v1042 = vmax.f32 %v984, 0.0
      %v1043 = vmax.f32 %v989, 0.0
      %v1044 = vmax.f32 %v992, 0.0
      %v1045 = vmax.f32 %v997, 0.0
      %v1046 = vmax.f32 %v1000, 0.0
      %v1047 = vmax.f32 %v1005, 0.0
      %v1048 = vmax.f32 %v1008, 0.0
      %v1049 = vmax.f32 %v1013, 0.0
      %v1050 = vmax.f32 %v1016, 0.0
      %v1051 = vpack.c.bf16 %v1020, %v1019
      %v1052 = vpack.c.bf16 %v1022, %v1021
      %v1053 = vpack.c.bf16 %v1024, %v1023
      %v1054 = vpack.c.bf16 %v1026, %v1025
      %v1055 = vpack.c.bf16 %v1028, %v1027
      %v1056 = vpack.c.bf16 %v1030, %v1029
      %v1057 = vpack.c.bf16 %v1032, %v1031
      %v1058 = vpack.c.bf16 %v1034, %v1033
      %v1059 = vpack.c.bf16 %v1036, %v1035
      %v1060 = vpack.c.bf16 %v1038, %v1037
      %v1061 = vpack.c.bf16 %v1040, %v1039
      %v1062 = vpack.c.bf16 %v1042, %v1041
      %v1063 = vpack.c.bf16 %v1044, %v1043
      %v1064 = vpack.c.bf16 %v1046, %v1045
      %v1065 = vpack.c.bf16 %v1048, %v1047
      %v1066 = vpack.c.bf16 %v1050, %v1049
      %v1083 = vunpack.c.l.b16 %v1051
      %v1084 = vunpack.c.h.b16 %v1051
      %v1085 = vunpack.c.l.b16 %v1052
      %v1086 = vunpack.c.h.b16 %v1052
      %v1087 = vunpack.c.l.b16 %v1053
      %v1088 = vunpack.c.h.b16 %v1053
      %v1089 = vunpack.c.l.b16 %v1054
      %v1090 = vunpack.c.h.b16 %v1054
      %v1091 = vunpack.c.l.b16 %v1055
      %v1092 = vunpack.c.h.b16 %v1055
      %v1093 = vunpack.c.l.b16 %v1056
      %v1094 = vunpack.c.h.b16 %v1056
      %v1095 = vunpack.c.l.b16 %v1057
      %v1096 = vunpack.c.h.b16 %v1057
      %v1097 = vunpack.c.l.b16 %v1058
      %v1098 = vunpack.c.h.b16 %v1058
      %v1099 = vunpack.c.l.b16 %v1059
      %v1100 = vunpack.c.h.b16 %v1059
      %v1101 = vunpack.c.l.b16 %v1060
      %v1102 = vunpack.c.h.b16 %v1060
      %v1103 = vunpack.c.l.b16 %v1061
      %v1104 = vunpack.c.h.b16 %v1061
      %v1105 = vunpack.c.l.b16 %v1062
      %v1106 = vunpack.c.h.b16 %v1062
      %v1107 = vunpack.c.l.b16 %v1063
      %v1108 = vunpack.c.h.b16 %v1063
      %v1109 = vunpack.c.l.b16 %v1064
      %v1110 = vunpack.c.h.b16 %v1064
      %v1111 = vunpack.c.l.b16 %v1065
      %v1112 = vunpack.c.h.b16 %v1065
      %v1113 = vunpack.c.l.b16 %v1066
      %v1114 = vunpack.c.h.b16 %v1066
      %v1115 = vpack.c.b16 %v1083, %v1083
      %v1116 = vpack.c.b16 %v1084, %v1084
      %v1117 = vpack.c.b16 %v1085, %v1085
      %v1118 = vpack.c.b16 %v1086, %v1086
      %v1119 = vpack.c.b16 %v1087, %v1087
      %v1120 = vpack.c.b16 %v1088, %v1088
      %v1121 = vpack.c.b16 %v1089, %v1089
      %v1122 = vpack.c.b16 %v1090, %v1090
      %v1123 = vpack.c.b16 %v1091, %v1091
      %v1124 = vpack.c.b16 %v1092, %v1092
      %v1125 = vpack.c.b16 %v1093, %v1093
      %v1126 = vpack.c.b16 %v1094, %v1094
      %v1127 = vpack.c.b16 %v1095, %v1095
      %v1128 = vpack.c.b16 %v1096, %v1096
      %v1129 = vpack.c.b16 %v1097, %v1097
      %v1130 = vpack.c.b16 %v1098, %v1098
      %v1131 = vpack.c.b16 %v1099, %v1099
      %v1132 = vpack.c.b16 %v1100, %v1100
      %v1133 = vpack.c.b16 %v1101, %v1101
      %v1134 = vpack.c.b16 %v1102, %v1102
      %v1135 = vpack.c.b16 %v1103, %v1103
      %v1136 = vpack.c.b16 %v1104, %v1104
      %v1137 = vpack.c.b16 %v1105, %v1105
      %v1138 = vpack.c.b16 %v1106, %v1106
      %v1139 = vpack.c.b16 %v1107, %v1107
      %v1140 = vpack.c.b16 %v1108, %v1108
      %v1141 = vpack.c.b16 %v1109, %v1109
      %v1142 = vpack.c.b16 %v1110, %v1110
      %v1143 = vpack.c.b16 %v1111, %v1111
      %v1144 = vpack.c.b16 %v1112, %v1112
      %v1145 = vpack.c.b16 %v1113, %v1113
      %v1146 = vpack.c.b16 %v1114, %v1114
      %1179 = vst [vmem:[%s175] sm:$0xf] %v1115
      %1180 = vst [vmem:[%s175 + $0x4] sm:$0xf] %v1116
      %1181 = vst [vmem:[%s175 + $0x8] sm:$0xf] %v1117
      %1182 = vst [vmem:[%s175 + $0xc] sm:$0xf] %v1118
      %1183 = vst [vmem:[%s175 + $0x10] sm:$0xf] %v1119
      %1184 = vst [vmem:[%s175 + $0x14] sm:$0xf] %v1120
      %1185 = vst [vmem:[%s175 + $0x18] sm:$0xf] %v1121
      %1186 = vst [vmem:[%s175 + $0x1c] sm:$0xf] %v1122
      %1187 = vst [vmem:[%s175 + $0x20] sm:$0xf] %v1123
      %1188 = vst [vmem:[%s175 + $0x24] sm:$0xf] %v1124
      %1189 = vst [vmem:[%s175 + $0x28] sm:$0xf] %v1125
      %1190 = vst [vmem:[%s175 + $0x2c] sm:$0xf] %v1126
      %1191 = vst [vmem:[%s175 + $0x30] sm:$0xf] %v1127
      %1192 = vst [vmem:[%s175 + $0x34] sm:$0xf] %v1128
      %1193 = vst [vmem:[%s175 + $0x38] sm:$0xf] %v1129
      %1194 = vst [vmem:[%s175 + $0x3c] sm:$0xf] %v1130
      %1195 = vst [vmem:[%s175 + $0x40] sm:$0xf] %v1131
      %1196 = vst [vmem:[%s175 + $0x44] sm:$0xf] %v1132
      %1197 = vst [vmem:[%s175 + $0x48] sm:$0xf] %v1133
      %1198 = vst [vmem:[%s175 + $0x4c] sm:$0xf] %v1134
      %1199 = vst [vmem:[%s175 + $0x50] sm:$0xf] %v1135
      %1200 = vst [vmem:[%s175 + $0x54] sm:$0xf] %v1136
      %1201 = vst [vmem:[%s175 + $0x58] sm:$0xf] %v1137
      %1202 = vst [vmem:[%s175 + $0x5c] sm:$0xf] %v1138
      %1203 = vst [vmem:[%s175 + $0x60] sm:$0xf] %v1139
      %1204 = vst [vmem:[%s175 + $0x64] sm:$0xf] %v1140
      %1205 = vst [vmem:[%s175 + $0x68] sm:$0xf] %v1141
      %1206 = vst [vmem:[%s175 + $0x6c] sm:$0xf] %v1142
      %1207 = vst [vmem:[%s175 + $0x70] sm:$0xf] %v1143
      %1208 = vst [vmem:[%s175 + $0x74] sm:$0xf] %v1144
      %1209 = vst [vmem:[%s175 + $0x78] sm:$0xf] %v1145
      %1210 = vst [vmem:[%s175 + $0x7c] sm:$0xf] %v1146
      %s1211 = smul.u32 32, %s14
      %p1212 = scmp.lt.s32.totalorder %s1211, 63
      %s1213 = scalar_select %p1212, %s1211, 63
      %s1214 = smul.addr %s1213, 4
      %s1215 = scalar_lea.vmem %s3, %s1214
      // Predicated region
      $region33: #{conv_frontend_forward.4} parent=31 // pred_check
        %p1216 = pneg %p100
      $region34: #{conv_frontend_forward.4} parent=31 // pred_check_branch
        %1218 = sbr.rel (%p1216) target = $region36
      $region35: #{conv_frontend_forward.4} parent=31 // pred_region
        %s1219 = smul.u32 32, %s14
      $region36: #{conv_frontend_forward.4} parent=31 // pred_fallthru
        _
    $region32: #{conv_frontend_forward.4} parent=5 // pred_fallthru
      _
    %p1220 = scmp.le.s32.totalorder 2, %s9
    // Predicated region
    $region37: #{conv_frontend_forward.4} parent=5 // pred_check
      %p1221 = pneg %p1220
    $region38: #{conv_frontend_forward.4} parent=5 // pred_check_branch
      %1223 = sbr.rel (%p1221) target = $region40
    $region39: #{conv_frontend_forward.4} parent=5 // pred_region
      %s1224 = ssub.s32 %s9, 2
      // Predicated region
      $region41: #{conv_frontend_forward.4} parent=39 // pred_check
        %p1225 = pneg %p106
      $region42: #{conv_frontend_forward.4} parent=39 // pred_check_branch
        %1227 = sbr.rel (%p1225) target = $region44
      $region43: #{conv_frontend_forward.4} parent=39 // pred_region
        %s1228 = smul.u32 32, %s15
        %p1229 = scmp.lt.s32.totalorder %s1228, 63
        %s1230 = scalar_select %p1229, %s1228, 63
        %s1231 = smul.addr %s1230, 4
        %s1232 = scalar_lea.vmem %s3, %s1231
      $region44: #{conv_frontend_forward.4} parent=39 // pred_fallthru
        _
    $region40: #{conv_frontend_forward.4} parent=5 // pred_fallthru
      _
  $region6: #{conv_frontend_forward.4} parent=0 // loop_footer
    %s13 = sadd.s32 1, %s9
  $region7: #{conv_frontend_forward.4} parent=0 // loop_footer_branch
    %8 = sbr.rel target = $region3
  $region8: #{conv_frontend_forward.4} parent=0 // loop_exit
    _

// kernel: conv_frontend_forward.5
$region0: #{conv_frontend_forward.5}
  #allocation0 [shape = 'u32[]', space=smem, size = 0x4, offset = 0x4, fixed_abs, tag = 'smem constant byte address 0x4 - core index']
  #allocation1 [shape = 'u32[144,128]{1,0:T(1,128)}', space=vmem, size = 0x12000, scoped, tag = 'internal scratch']
  %s0 = inlined_call_operand.vmem [shape: bf16[128,640], index: 0, kind: input, shape index: {}]
  %s1 = inlined_call_operand.vmem [shape: bf16[640,128], index: 1, kind: input, shape index: {}]
  %s2 = inlined_call_operand.vmem [shape: f32[1,128], index: 2, kind: input, shape index: {}]
  %s3 = inlined_call_operand.vmem [shape: bf16[128,128], index: 3, kind: output, shape index: {}]
  %s4 = sld [smem:[#allocation0]]
  $region22: #{conv_frontend_forward.5} parent=0
    _
  %s6 = ssub.s32 1, %s4
  %s7 = scalar_select 0, %s6, %s4
  // Predicated region
  $region2: #{conv_frontend_forward.5} parent=0 // pred_check
    _
  $region3: #{conv_frontend_forward.5} parent=0 // pred_check_branch
    %9 = sbr.rel (0) target = $region5
  $region4: #{conv_frontend_forward.5} parent=0 // pred_region
    _
  $region5: #{conv_frontend_forward.5} parent=0 // pred_fallthru
    _
  // Predicated region
  $region6: #{conv_frontend_forward.5} parent=0 // pred_check
    _
  $region7: #{conv_frontend_forward.5} parent=0 // pred_check_branch
    %11 = sbr.rel (0) target = $region9
  $region8: #{conv_frontend_forward.5} parent=0 // pred_region
    _
  $region9: #{conv_frontend_forward.5} parent=0 // pred_fallthru
    _
  // Predicated region
  $region10: #{conv_frontend_forward.5} parent=0 // pred_check
    _
  $region11: #{conv_frontend_forward.5} parent=0 // pred_check_branch
    %13 = sbr.rel (0) target = $region13
  $region12: #{conv_frontend_forward.5} parent=0 // pred_region
    _
  $region13: #{conv_frontend_forward.5} parent=0 // pred_fallthru
    _
  %v15 = vld [vmem:[%s0] sm:$0xff]
  %v16 = vld [vmem:[%s0 + $0x8] sm:$0xff]
  %v17 = vld [vmem:[%s0 + $0x10] sm:$0xf]
  %v18 = vld [vmem:[%s0 + $0x14] sm:$0xff]
  %v19 = vld [vmem:[%s0 + $0x1c] sm:$0xff]
  %v20 = vld [vmem:[%s0 + $0x24] sm:$0xf]
  %v21 = vld [vmem:[%s0 + $0x28] sm:$0xff]
  %v22 = vld [vmem:[%s0 + $0x30] sm:$0xff]
  %v23 = vld [vmem:[%s0 + $0x38] sm:$0xf]
  %v24 = vld [vmem:[%s0 + $0x3c] sm:$0xff]
  %v25 = vld [vmem:[%s0 + $0x44] sm:$0xff]
  %v26 = vld [vmem:[%s0 + $0x4c] sm:$0xf]
  %v27 = vld [vmem:[%s0 + $0x50] sm:$0xff]
  %v28 = vld [vmem:[%s0 + $0x58] sm:$0xff]
  %v29 = vld [vmem:[%s0 + $0x60] sm:$0xf]
  %v30 = vld [vmem:[%s0 + $0x64] sm:$0xff]
  %v31 = vld [vmem:[%s0 + $0x6c] sm:$0xff]
  %v32 = vld [vmem:[%s0 + $0x74] sm:$0xf]
  %v33 = vld [vmem:[%s0 + $0x78] sm:$0xff]
  %v34 = vld [vmem:[%s0 + $0x80] sm:$0xff]
  %v35 = vld [vmem:[%s0 + $0x88] sm:$0xf]
  %v36 = vld [vmem:[%s0 + $0x8c] sm:$0xff]
  %v37 = vld [vmem:[%s0 + $0x94] sm:$0xff]
  %v38 = vld [vmem:[%s0 + $0x9c] sm:$0xf]
  %v39 = vld [vmem:[%s0 + $0xa0] sm:$0xff]
  %v40 = vld [vmem:[%s0 + $0xa8] sm:$0xff]
  %v41 = vld [vmem:[%s0 + $0xb0] sm:$0xf]
  %v42 = vld [vmem:[%s0 + $0xb4] sm:$0xff]
  %v43 = vld [vmem:[%s0 + $0xbc] sm:$0xff]
  %v44 = vld [vmem:[%s0 + $0xc4] sm:$0xf]
  %v45 = vld [vmem:[%s0 + $0xc8] sm:$0xff]
  %v46 = vld [vmem:[%s0 + $0xd0] sm:$0xff]
  %v47 = vld [vmem:[%s0 + $0xd8] sm:$0xf]
  %v48 = vld [vmem:[%s0 + $0xdc] sm:$0xff]
  %v49 = vld [vmem:[%s0 + $0xe4] sm:$0xff]
  %v50 = vld [vmem:[%s0 + $0xec] sm:$0xf]
  %v51 = vld [vmem:[%s0 + $0xf0] sm:$0xff]
  %v52 = vld [vmem:[%s0 + $0xf8] sm:$0xff]
  %v53 = vld [vmem:[%s0 + $0x100] sm:$0xf]
  %v54 = vld [vmem:[%s0 + $0x104] sm:$0xff]
  %v55 = vld [vmem:[%s0 + $0x10c] sm:$0xff]
  %v56 = vld [vmem:[%s0 + $0x114] sm:$0xf]
  %v57 = vld [vmem:[%s0 + $0x118] sm:$0xff]
  %v58 = vld [vmem:[%s0 + $0x120] sm:$0xff]
  %v59 = vld [vmem:[%s0 + $0x128] sm:$0xf]
  %v60 = vld [vmem:[%s0 + $0x12c] sm:$0xff]
  %v61 = vld [vmem:[%s0 + $0x134] sm:$0xff]
  %v62 = vld [vmem:[%s0 + $0x13c] sm:$0xf]
  %v63 = vld [vmem:[%s1] sm:$0xf]
  %v64 = vld [vmem:[%s1 + $0x4] sm:$0xf]
  %v65 = vld [vmem:[%s1 + $0x8] sm:$0xf]
  %v66 = vld [vmem:[%s1 + $0xc] sm:$0xf]
  %v67 = vld [vmem:[%s1 + $0x10] sm:$0xf]
  %v68 = vld [vmem:[%s1 + $0x14] sm:$0xf]
  %v69 = vld [vmem:[%s1 + $0x18] sm:$0xf]
  %v70 = vld [vmem:[%s1 + $0x1c] sm:$0xf]
  %v71 = vld [vmem:[%s1 + $0x20] sm:$0xf]
  %v72 = vld [vmem:[%s1 + $0x24] sm:$0xf]
  %v73 = vld [vmem:[%s1 + $0x28] sm:$0xf]
  %v74 = vld [vmem:[%s1 + $0x2c] sm:$0xf]
  %v75 = vld [vmem:[%s1 + $0x30] sm:$0xf]
  %v76 = vld [vmem:[%s1 + $0x34] sm:$0xf]
  %v77 = vld [vmem:[%s1 + $0x38] sm:$0xf]
  %v78 = vld [vmem:[%s1 + $0x3c] sm:$0xf]
  %v79 = vld [vmem:[%s1 + $0x40] sm:$0xf]
  %v80 = vld [vmem:[%s1 + $0x44] sm:$0xf]
  %v81 = vld [vmem:[%s1 + $0x48] sm:$0xf]
  %v82 = vld [vmem:[%s1 + $0x4c] sm:$0xf]
  %v83 = vld [vmem:[%s1 + $0x50] sm:$0xf]
  %v84 = vld [vmem:[%s1 + $0x54] sm:$0xf]
  %v85 = vld [vmem:[%s1 + $0x58] sm:$0xf]
  %v86 = vld [vmem:[%s1 + $0x5c] sm:$0xf]
  %v87 = vld [vmem:[%s1 + $0x60] sm:$0xf]
  %v88 = vld [vmem:[%s1 + $0x64] sm:$0xf]
  %v89 = vld [vmem:[%s1 + $0x68] sm:$0xf]
  %v90 = vld [vmem:[%s1 + $0x6c] sm:$0xf]
  %v91 = vld [vmem:[%s1 + $0x70] sm:$0xf]
  %v92 = vld [vmem:[%s1 + $0x74] sm:$0xf]
  %v93 = vld [vmem:[%s1 + $0x78] sm:$0xf]
  %v94 = vld [vmem:[%s1 + $0x7c] sm:$0xf]
  %v95 = vld [vmem:[%s1 + $0x80] sm:$0xf]
  %v96 = vld [vmem:[%s1 + $0x84] sm:$0xf]
  %v97 = vld [vmem:[%s1 + $0x88] sm:$0xf]
  %v98 = vld [vmem:[%s1 + $0x8c] sm:$0xf]
  %v99 = vld [vmem:[%s1 + $0x90] sm:$0xf]
  %v100 = vld [vmem:[%s1 + $0x94] sm:$0xf]
  %v101 = vld [vmem:[%s1 + $0x98] sm:$0xf]
  %v102 = vld [vmem:[%s1 + $0x9c] sm:$0xf]
  %v103 = vld [vmem:[%s1 + $0xa0] sm:$0xf]
  %v104 = vld [vmem:[%s1 + $0xa4] sm:$0xf]
  %v105 = vld [vmem:[%s1 + $0xa8] sm:$0xf]
  %v106 = vld [vmem:[%s1 + $0xac] sm:$0xf]
  %v107 = vld [vmem:[%s1 + $0xb0] sm:$0xf]
  %v108 = vld [vmem:[%s1 + $0xb4] sm:$0xf]
  %v109 = vld [vmem:[%s1 + $0xb8] sm:$0xf]
  %v110 = vld [vmem:[%s1 + $0xbc] sm:$0xf]
  %v111 = vld [vmem:[%s1 + $0xc0] sm:$0xf]
  %v112 = vld [vmem:[%s1 + $0xc4] sm:$0xf]
  %v113 = vld [vmem:[%s1 + $0xc8] sm:$0xf]
  %v114 = vld [vmem:[%s1 + $0xcc] sm:$0xf]
  %v115 = vld [vmem:[%s1 + $0xd0] sm:$0xf]
  %v116 = vld [vmem:[%s1 + $0xd4] sm:$0xf]
  %v117 = vld [vmem:[%s1 + $0xd8] sm:$0xf]
  %v118 = vld [vmem:[%s1 + $0xdc] sm:$0xf]
  %v119 = vld [vmem:[%s1 + $0xe0] sm:$0xf]
  %v120 = vld [vmem:[%s1 + $0xe4] sm:$0xf]
  %v121 = vld [vmem:[%s1 + $0xe8] sm:$0xf]
  %v122 = vld [vmem:[%s1 + $0xec] sm:$0xf]
  %v123 = vld [vmem:[%s1 + $0xf0] sm:$0xf]
  %v124 = vld [vmem:[%s1 + $0xf4] sm:$0xf]
  %v125 = vld [vmem:[%s1 + $0xf8] sm:$0xf]
  %v126 = vld [vmem:[%s1 + $0xfc] sm:$0xf]
  %v127 = vld [vmem:[%s1 + $0x100] sm:$0xf]
  %v128 = vld [vmem:[%s1 + $0x104] sm:$0xf]
  %v129 = vld [vmem:[%s1 + $0x108] sm:$0xf]
  %v130 = vld [vmem:[%s1 + $0x10c] sm:$0xf]
  %v131 = vld [vmem:[%s1 + $0x110] sm:$0xf]
  %v132 = vld [vmem:[%s1 + $0x114] sm:$0xf]
  %v133 = vld [vmem:[%s1 + $0x118] sm:$0xf]
  %v134 = vld [vmem:[%s1 + $0x11c] sm:$0xf]
  %v135 = vld [vmem:[%s1 + $0x120] sm:$0xf]
  %v136 = vld [vmem:[%s1 + $0x124] sm:$0xf]
  %v137 = vld [vmem:[%s1 + $0x128] sm:$0xf]
  %v138 = vld [vmem:[%s1 + $0x12c] sm:$0xf]
  %v139 = vld [vmem:[%s1 + $0x130] sm:$0xf]
  %v140 = vld [vmem:[%s1 + $0x134] sm:$0xf]
  %v141 = vld [vmem:[%s1 + $0x138] sm:$0xf]
  %v142 = vld [vmem:[%s1 + $0x13c] sm:$0xf]
  %v143 = vld [vmem:[%s2] sm:$0x1]
  %v145 = vlaneseq
  %v146 = vshrl.u32 %v145, 7
  %v147 = vsub.s32 0, %v146
  %v148 = vrot.slane %v143, %v147
  %v198 = vunpack.c.l.b16 %v15
  %v199 = vunpack.c.h.b16 %v15
  %v200 = vunpack.c.l.b16 %v16
  %v201 = vunpack.c.h.b16 %v16
  %v202 = vunpack.c.l.b16 %v17
  %v203 = vunpack.c.l.b16 %v18
  %v204 = vunpack.c.h.b16 %v18
  %v205 = vunpack.c.l.b16 %v19
  %v206 = vunpack.c.h.b16 %v19
  %v207 = vunpack.c.l.b16 %v20
  %v208 = vunpack.c.l.b16 %v21
  %v209 = vunpack.c.h.b16 %v21
  %v210 = vunpack.c.l.b16 %v22
  %v211 = vunpack.c.h.b16 %v22
  %v212 = vunpack.c.l.b16 %v23
  %v213 = vunpack.c.l.b16 %v24
  %v214 = vunpack.c.h.b16 %v24
  %v215 = vunpack.c.l.b16 %v25
  %v216 = vunpack.c.h.b16 %v25
  %v217 = vunpack.c.l.b16 %v26
  %v218 = vunpack.c.l.b16 %v27
  %v219 = vunpack.c.h.b16 %v27
  %v220 = vunpack.c.l.b16 %v28
  %v221 = vunpack.c.h.b16 %v28
  %v222 = vunpack.c.l.b16 %v29
  %v223 = vunpack.c.l.b16 %v30
  %v224 = vunpack.c.h.b16 %v30
  %v225 = vunpack.c.l.b16 %v31
  %v226 = vunpack.c.h.b16 %v31
  %v227 = vunpack.c.l.b16 %v32
  %v228 = vunpack.c.l.b16 %v33
  %v229 = vunpack.c.h.b16 %v33
  %v230 = vunpack.c.l.b16 %v34
  %v231 = vunpack.c.h.b16 %v34
  %v232 = vunpack.c.l.b16 %v35
  %v233 = vunpack.c.l.b16 %v36
  %v234 = vunpack.c.h.b16 %v36
  %v235 = vunpack.c.l.b16 %v37
  %v236 = vunpack.c.h.b16 %v37
  %v237 = vunpack.c.l.b16 %v38
  %v238 = vunpack.c.l.b16 %v39
  %v239 = vunpack.c.h.b16 %v39
  %v240 = vunpack.c.l.b16 %v40
  %v241 = vunpack.c.h.b16 %v40
  %v242 = vunpack.c.l.b16 %v41
  %v243 = vunpack.c.l.b16 %v42
  %v244 = vunpack.c.h.b16 %v42
  %v245 = vunpack.c.l.b16 %v43
  %v246 = vunpack.c.h.b16 %v43
  %v247 = vunpack.c.l.b16 %v44
  %v248 = vunpack.c.l.b16 %v45
  %v249 = vunpack.c.h.b16 %v45
  %v250 = vunpack.c.l.b16 %v46
  %v251 = vunpack.c.h.b16 %v46
  %v252 = vunpack.c.l.b16 %v47
  %v253 = vunpack.c.l.b16 %v48
  %v254 = vunpack.c.h.b16 %v48
  %v255 = vunpack.c.l.b16 %v49
  %v256 = vunpack.c.h.b16 %v49
  %v257 = vunpack.c.l.b16 %v50
  %v258 = vunpack.c.l.b16 %v51
  %v259 = vunpack.c.h.b16 %v51
  %v260 = vunpack.c.l.b16 %v52
  %v261 = vunpack.c.h.b16 %v52
  %v262 = vunpack.c.l.b16 %v53
  %v263 = vunpack.c.l.b16 %v54
  %v264 = vunpack.c.h.b16 %v54
  %v265 = vunpack.c.l.b16 %v55
  %v266 = vunpack.c.h.b16 %v55
  %v267 = vunpack.c.l.b16 %v56
  %v268 = vunpack.c.l.b16 %v57
  %v269 = vunpack.c.h.b16 %v57
  %v270 = vunpack.c.l.b16 %v58
  %v271 = vunpack.c.h.b16 %v58
  %v272 = vunpack.c.l.b16 %v59
  %v273 = vunpack.c.l.b16 %v60
  %v274 = vunpack.c.h.b16 %v60
  %v275 = vunpack.c.l.b16 %v61
  %v276 = vunpack.c.h.b16 %v61
  %v277 = vunpack.c.l.b16 %v62
  %v278 = vpack.c.b16 %v203, %v198
  %v279 = vpack.c.b16 %v204, %v199
  %v280 = vpack.c.b16 %v205, %v200
  %v281 = vpack.c.b16 %v206, %v201
  %v282 = vpack.c.b16 %v207, %v202
  %v283 = vpack.c.b16 %v213, %v208
  %v284 = vpack.c.b16 %v214, %v209
  %v285 = vpack.c.b16 %v215, %v210
  %v286 = vpack.c.b16 %v216, %v211
  %v287 = vpack.c.b16 %v217, %v212
  %v288 = vpack.c.b16 %v223, %v218
  %v289 = vpack.c.b16 %v224, %v219
  %v290 = vpack.c.b16 %v225, %v220
  %v291 = vpack.c.b16 %v226, %v221
  %v292 = vpack.c.b16 %v227, %v222
  %v293 = vpack.c.b16 %v233, %v228
  %v294 = vpack.c.b16 %v234, %v229
  %v295 = vpack.c.b16 %v235, %v230
  %v296 = vpack.c.b16 %v236, %v231
  %v297 = vpack.c.b16 %v237, %v232
  %v298 = vpack.c.b16 %v243, %v238
  %v299 = vpack.c.b16 %v244, %v239
  %v300 = vpack.c.b16 %v245, %v240
  %v301 = vpack.c.b16 %v246, %v241
  %v302 = vpack.c.b16 %v247, %v242
  %v303 = vpack.c.b16 %v253, %v248
  %v304 = vpack.c.b16 %v254, %v249
  %v305 = vpack.c.b16 %v255, %v250
  %v306 = vpack.c.b16 %v256, %v251
  %v307 = vpack.c.b16 %v257, %v252
  %v308 = vpack.c.b16 %v263, %v258
  %v309 = vpack.c.b16 %v264, %v259
  %v310 = vpack.c.b16 %v265, %v260
  %v311 = vpack.c.b16 %v266, %v261
  %v312 = vpack.c.b16 %v267, %v262
  %v313 = vpack.c.b16 %v273, %v268
  %v314 = vpack.c.b16 %v274, %v269
  %v315 = vpack.c.b16 %v275, %v270
  %v316 = vpack.c.b16 %v276, %v271
  %v317 = vpack.c.b16 %v277, %v272
  %v438 = vunpack.c.l.b16 %v63
  %v439 = vunpack.c.l.b16 %v64
  %v440 = vunpack.c.l.b16 %v65
  %v441 = vunpack.c.l.b16 %v66
  %v442 = vunpack.c.l.b16 %v67
  %v443 = vunpack.c.l.b16 %v68
  %v444 = vunpack.c.l.b16 %v69
  %v445 = vunpack.c.l.b16 %v70
  %v446 = vunpack.c.l.b16 %v71
  %v447 = vunpack.c.l.b16 %v72
  %v448 = vunpack.c.l.b16 %v73
  %v449 = vunpack.c.l.b16 %v74
  %v450 = vunpack.c.l.b16 %v75
  %v451 = vunpack.c.l.b16 %v76
  %v452 = vunpack.c.l.b16 %v77
  %v453 = vunpack.c.l.b16 %v78
  %v454 = vunpack.c.l.b16 %v79
  %v455 = vunpack.c.l.b16 %v80
  %v456 = vunpack.c.l.b16 %v81
  %v457 = vunpack.c.l.b16 %v82
  %v458 = vunpack.c.l.b16 %v83
  %v459 = vunpack.c.l.b16 %v84
  %v460 = vunpack.c.l.b16 %v85
  %v461 = vunpack.c.l.b16 %v86
  %v462 = vunpack.c.l.b16 %v87
  %v463 = vunpack.c.l.b16 %v88
  %v464 = vunpack.c.l.b16 %v89
  %v465 = vunpack.c.l.b16 %v90
  %v466 = vunpack.c.l.b16 %v91
  %v467 = vunpack.c.l.b16 %v92
  %v468 = vunpack.c.l.b16 %v93
  %v469 = vunpack.c.l.b16 %v94
  %v470 = vunpack.c.l.b16 %v95
  %v471 = vunpack.c.l.b16 %v96
  %v472 = vunpack.c.l.b16 %v97
  %v473 = vunpack.c.l.b16 %v98
  %v474 = vunpack.c.l.b16 %v99
  %v475 = vunpack.c.l.b16 %v100
  %v476 = vunpack.c.l.b16 %v101
  %v477 = vunpack.c.l.b16 %v102
  %v478 = vunpack.c.l.b16 %v103
  %v479 = vunpack.c.l.b16 %v104
  %v480 = vunpack.c.l.b16 %v105
  %v481 = vunpack.c.l.b16 %v106
  %v482 = vunpack.c.l.b16 %v107
  %v483 = vunpack.c.l.b16 %v108
  %v484 = vunpack.c.l.b16 %v109
  %v485 = vunpack.c.l.b16 %v110
  %v486 = vunpack.c.l.b16 %v111
  %v487 = vunpack.c.l.b16 %v112
  %v488 = vunpack.c.l.b16 %v113
  %v489 = vunpack.c.l.b16 %v114
  %v490 = vunpack.c.l.b16 %v115
  %v491 = vunpack.c.l.b16 %v116
  %v492 = vunpack.c.l.b16 %v117
  %v493 = vunpack.c.l.b16 %v118
  %v494 = vunpack.c.l.b16 %v119
  %v495 = vunpack.c.l.b16 %v120
  %v496 = vunpack.c.l.b16 %v121
  %v497 = vunpack.c.l.b16 %v122
  %v498 = vunpack.c.l.b16 %v123
  %v499 = vunpack.c.l.b16 %v124
  %v500 = vunpack.c.l.b16 %v125
  %v501 = vunpack.c.l.b16 %v126
  %v502 = vunpack.c.l.b16 %v127
  %v503 = vunpack.c.l.b16 %v128
  %v504 = vunpack.c.l.b16 %v129
  %v505 = vunpack.c.l.b16 %v130
  %v506 = vunpack.c.l.b16 %v131
  %v507 = vunpack.c.l.b16 %v132
  %v508 = vunpack.c.l.b16 %v133
  %v509 = vunpack.c.l.b16 %v134
  %v510 = vunpack.c.l.b16 %v135
  %v511 = vunpack.c.l.b16 %v136
  %v512 = vunpack.c.l.b16 %v137
  %v513 = vunpack.c.l.b16 %v138
  %v514 = vunpack.c.l.b16 %v139
  %v515 = vunpack.c.l.b16 %v140
  %v516 = vunpack.c.l.b16 %v141
  %v517 = vunpack.c.l.b16 %v142
  %v518 = vpack.c.b16 %v439, %v438
  %v519 = vpack.c.b16 %v441, %v440
  %v520 = vpack.c.b16 %v443, %v442
  %v521 = vpack.c.b16 %v445, %v444
  %v522 = vpack.c.b16 %v447, %v446
  %v523 = vpack.c.b16 %v449, %v448
  %v524 = vpack.c.b16 %v451, %v450
  %v525 = vpack.c.b16 %v453, %v452
  %v526 = vpack.c.b16 %v455, %v454
  %v527 = vpack.c.b16 %v457, %v456
  %v528 = vpack.c.b16 %v459, %v458
  %v529 = vpack.c.b16 %v461, %v460
  %v530 = vpack.c.b16 %v463, %v462
  %v531 = vpack.c.b16 %v465, %v464
  %v532 = vpack.c.b16 %v467, %v466
  %v533 = vpack.c.b16 %v469, %v468
  %v534 = vpack.c.b16 %v471, %v470
  %v535 = vpack.c.b16 %v473, %v472
  %v536 = vpack.c.b16 %v475, %v474
  %v537 = vpack.c.b16 %v477, %v476
  %v538 = vpack.c.b16 %v479, %v478
  %v539 = vpack.c.b16 %v481, %v480
  %v540 = vpack.c.b16 %v483, %v482
  %v541 = vpack.c.b16 %v485, %v484
  %v542 = vpack.c.b16 %v487, %v486
  %v543 = vpack.c.b16 %v489, %v488
  %v544 = vpack.c.b16 %v491, %v490
  %v545 = vpack.c.b16 %v493, %v492
  %v546 = vpack.c.b16 %v495, %v494
  %v547 = vpack.c.b16 %v497, %v496
  %v548 = vpack.c.b16 %v499, %v498
  %v549 = vpack.c.b16 %v501, %v500
  %v550 = vpack.c.b16 %v503, %v502
  %v551 = vpack.c.b16 %v505, %v504
  %v552 = vpack.c.b16 %v507, %v506
  %v553 = vpack.c.b16 %v509, %v508
  %v554 = vpack.c.b16 %v511, %v510
  %v555 = vpack.c.b16 %v513, %v512
  %v556 = vpack.c.b16 %v515, %v514
  %v557 = vpack.c.b16 %v517, %v516
  %598 = vmatprep.subr.bf16.mxu0 0
  %599 = vmatpush1.bf16.msra.mxu0 %v525
  %600 = vmatprep.subr.bf16.mxu0 0
  %601 = vmatpush1.bf16.msra.mxu0 %v524
  %602 = vmatprep.subr.bf16.mxu0 0
  %603 = vmatpush1.bf16.msra.mxu0 %v523
  %604 = vmatprep.subr.bf16.mxu0 0
  %605 = vmatpush1.bf16.msra.mxu0 %v522
  %606 = vmatprep.subr.bf16.mxu0 0
  %607 = vmatpush1.bf16.msra.mxu0 %v521
  %608 = vmatprep.subr.bf16.mxu0 0
  %609 = vmatpush1.bf16.msra.mxu0 %v520
  %610 = vmatprep.subr.bf16.mxu0 0
  %611 = vmatpush1.bf16.msra.mxu0 %v519
  %612 = vmatprep.subr.bf16.mxu0 0
  %613 = vmatpush1.bf16.msra.mxu0 %v518
  %614 = vmatprep.subr.bf16.mxu0 0
  %615 = vmatpush2.bf16.msra.mxu0 %v533
  %616 = vmatprep.subr.bf16.mxu0 0
  %617 = vmatpush2.bf16.msra.mxu0 %v532
  %618 = vmatprep.subr.bf16.mxu0 0
  %619 = vmatpush2.bf16.msra.mxu0 %v531
  %620 = vmatprep.subr.bf16.mxu0 0
  %621 = vmatpush2.bf16.msra.mxu0 %v530
  %622 = vmatprep.subr.bf16.mxu0 0
  %623 = vmatpush2.bf16.msra.mxu0 %v529
  %624 = vmatprep.subr.bf16.mxu0 0
  %625 = vmatpush2.bf16.msra.mxu0 %v528
  %626 = vmatprep.subr.bf16.mxu0 0
  %627 = vmatpush2.bf16.msra.mxu0 %v527
  %628 = vmatprep.subr.bf16.mxu0 0
  %629 = vmatpush2.bf16.msra.mxu0 %v526
  %630 = vmatprep.mubr.bf16.mxu0 %v279
  %631 = vmatmul.mubr.bf16.gmra.mxu0 %v278
  %v632 = vpop.f32.mrf.mxu0
  %v633 = vadd.f32 %v148, %v632
  %v634 = vpop.f32.mrf.mxu0
  %v635 = vpop.f32.mrf.mxu0
  %v636 = vadd.f32 %v148, %v635
  %v637 = vpop.f32.mrf.mxu0
  %638 = vmatprep.mubr.bf16.mxu0 %v284
  %639 = vmatmul.mubr.bf16.gmra.mxu0 %v283
  %v640 = vpop.f32.mrf.mxu0
  %v641 = vadd.f32 %v148, %v640
  %v642 = vpop.f32.mrf.mxu0
  %v643 = vpop.f32.mrf.mxu0
  %v644 = vadd.f32 %v148, %v643
  %v645 = vpop.f32.mrf.mxu0
  %646 = vmatprep.mubr.bf16.mxu0 %v289
  %647 = vmatmul.mubr.bf16.gmra.mxu0 %v288
  %v648 = vpop.f32.mrf.mxu0
  %v649 = vadd.f32 %v148, %v648
  %v650 = vpop.f32.mrf.mxu0
  %v651 = vpop.f32.mrf.mxu0
  %v652 = vadd.f32 %v148, %v651
  %v653 = vpop.f32.mrf.mxu0
  %654 = vmatprep.mubr.bf16.mxu0 %v294
  %655 = vmatmul.mubr.bf16.gmra.mxu0 %v293
  %v656 = vpop.f32.mrf.mxu0
  %v657 = vadd.f32 %v148, %v656
  %v658 = vpop.f32.mrf.mxu0
  %v659 = vpop.f32.mrf.mxu0
  %v660 = vadd.f32 %v148, %v659
  %v661 = vpop.f32.mrf.mxu0
  %662 = vmatprep.mubr.bf16.mxu0 %v299
  %663 = vmatmul.mubr.bf16.gmra.mxu0 %v298
  %v664 = vpop.f32.mrf.mxu0
  %v665 = vadd.f32 %v148, %v664
  %v666 = vpop.f32.mrf.mxu0
  %v667 = vpop.f32.mrf.mxu0
  %v668 = vadd.f32 %v148, %v667
  %v669 = vpop.f32.mrf.mxu0
  %670 = vmatprep.mubr.bf16.mxu0 %v304
  %671 = vmatmul.mubr.bf16.gmra.mxu0 %v303
  %v672 = vpop.f32.mrf.mxu0
  %v673 = vadd.f32 %v148, %v672
  %v674 = vpop.f32.mrf.mxu0
  %v675 = vpop.f32.mrf.mxu0
  %v676 = vadd.f32 %v148, %v675
  %v677 = vpop.f32.mrf.mxu0
  %678 = vmatprep.mubr.bf16.mxu0 %v309
  %679 = vmatmul.mubr.bf16.gmra.mxu0 %v308
  %v680 = vpop.f32.mrf.mxu0
  %v681 = vadd.f32 %v148, %v680
  %v682 = vpop.f32.mrf.mxu0
  %v683 = vpop.f32.mrf.mxu0
  %v684 = vadd.f32 %v148, %v683
  %v685 = vpop.f32.mrf.mxu0
  %686 = vmatprep.mubr.bf16.mxu0 %v314
  %687 = vmatmul.mubr.bf16.gmra.mxu0 %v313
  %v688 = vpop.f32.mrf.mxu0
  %v689 = vadd.f32 %v148, %v688
  %v690 = vpop.f32.mrf.mxu0
  %v691 = vpop.f32.mrf.mxu0
  %v692 = vadd.f32 %v148, %v691
  %v693 = vpop.f32.mrf.mxu0
  %694 = vdwg.mxu0
  %695 = vmatprep.subr.bf16.mxu0 0
  %696 = vmatpush1.bf16.msra.mxu0 %v541
  %697 = vmatprep.subr.bf16.mxu0 0
  %698 = vmatpush1.bf16.msra.mxu0 %v540
  %699 = vmatprep.subr.bf16.mxu0 0
  %700 = vmatpush1.bf16.msra.mxu0 %v539
  %701 = vmatprep.subr.bf16.mxu0 0
  %702 = vmatpush1.bf16.msra.mxu0 %v538
  %703 = vmatprep.subr.bf16.mxu0 0
  %704 = vmatpush1.bf16.msra.mxu0 %v537
  %705 = vmatprep.subr.bf16.mxu0 0
  %706 = vmatpush1.bf16.msra.mxu0 %v536
  %707 = vmatprep.subr.bf16.mxu0 0
  %708 = vmatpush1.bf16.msra.mxu0 %v535
  %709 = vmatprep.subr.bf16.mxu0 0
  %710 = vmatpush1.bf16.msra.mxu0 %v534
  %711 = vmatprep.subr.bf16.mxu0 0
  %712 = vmatpush2.bf16.msra.mxu0 %v549
  %713 = vmatprep.subr.bf16.mxu0 0
  %714 = vmatpush2.bf16.msra.mxu0 %v548
  %715 = vmatprep.subr.bf16.mxu0 0
  %716 = vmatpush2.bf16.msra.mxu0 %v547
  %717 = vmatprep.subr.bf16.mxu0 0
  %718 = vmatpush2.bf16.msra.mxu0 %v546
  %719 = vmatprep.subr.bf16.mxu0 0
  %720 = vmatpush2.bf16.msra.mxu0 %v545
  %721 = vmatprep.subr.bf16.mxu0 0
  %722 = vmatpush2.bf16.msra.mxu0 %v544
  %723 = vmatprep.subr.bf16.mxu0 0
  %724 = vmatpush2.bf16.msra.mxu0 %v543
  %725 = vmatprep.subr.bf16.mxu0 0
  %726 = vmatpush2.bf16.msra.mxu0 %v542
  %727 = vmatprep.mubr.bf16.mxu0 %v281
  %728 = vmatmul.mubr.bf16.gmra.mxu0 %v280
  %v729 = vpop.f32.mrf.mxu0
  %v730 = vadd.f32 %v633, %v729
  %v731 = vpop.f32.mrf.mxu0
  %v732 = vpop.f32.mrf.mxu0
  %v733 = vadd.f32 %v636, %v732
  %v734 = vpop.f32.mrf.mxu0
  %735 = vmatprep.mubr.bf16.mxu0 %v286
  %736 = vmatmul.mubr.bf16.gmra.mxu0 %v285
  %v737 = vpop.f32.mrf.mxu0
  %v738 = vadd.f32 %v641, %v737
  %v739 = vpop.f32.mrf.mxu0
  %v740 = vpop.f32.mrf.mxu0
  %v741 = vadd.f32 %v644, %v740
  %v742 = vpop.f32.mrf.mxu0
  %743 = vmatprep.mubr.bf16.mxu0 %v291
  %744 = vmatmul.mubr.bf16.gmra.mxu0 %v290
  %v745 = vpop.f32.mrf.mxu0
  %v746 = vadd.f32 %v649, %v745
  %v747 = vpop.f32.mrf.mxu0
  %v748 = vpop.f32.mrf.mxu0
  %v749 = vadd.f32 %v652, %v748
  %v750 = vpop.f32.mrf.mxu0
  %751 = vmatprep.mubr.bf16.mxu0 %v296
  %752 = vmatmul.mubr.bf16.gmra.mxu0 %v295
  %v753 = vpop.f32.mrf.mxu0
  %v754 = vadd.f32 %v657, %v753
  %v755 = vpop.f32.mrf.mxu0
  %v756 = vpop.f32.mrf.mxu0
  %v757 = vadd.f32 %v660, %v756
  %v758 = vpop.f32.mrf.mxu0
  %759 = vmatprep.mubr.bf16.mxu0 %v301
  %760 = vmatmul.mubr.bf16.gmra.mxu0 %v300
  %v761 = vpop.f32.mrf.mxu0
  %v762 = vadd.f32 %v665, %v761
  %v763 = vpop.f32.mrf.mxu0
  %v764 = vpop.f32.mrf.mxu0
  %v765 = vadd.f32 %v668, %v764
  %v766 = vpop.f32.mrf.mxu0
  %767 = vmatprep.mubr.bf16.mxu0 %v306
  %768 = vmatmul.mubr.bf16.gmra.mxu0 %v305
  %v769 = vpop.f32.mrf.mxu0
  %v770 = vadd.f32 %v673, %v769
  %v771 = vpop.f32.mrf.mxu0
  %v772 = vpop.f32.mrf.mxu0
  %v773 = vadd.f32 %v676, %v772
  %v774 = vpop.f32.mrf.mxu0
  %775 = vmatprep.mubr.bf16.mxu0 %v311
  %776 = vmatmul.mubr.bf16.gmra.mxu0 %v310
  %v777 = vpop.f32.mrf.mxu0
  %v778 = vadd.f32 %v681, %v777
  %v779 = vpop.f32.mrf.mxu0
  %v780 = vpop.f32.mrf.mxu0
  %v781 = vadd.f32 %v684, %v780
  %v782 = vpop.f32.mrf.mxu0
  %783 = vmatprep.mubr.bf16.mxu0 %v316
  %784 = vmatmul.mubr.bf16.gmra.mxu0 %v315
  %v785 = vpop.f32.mrf.mxu0
  %v786 = vadd.f32 %v689, %v785
  %v787 = vpop.f32.mrf.mxu0
  %v788 = vpop.f32.mrf.mxu0
  %v789 = vadd.f32 %v692, %v788
  %v790 = vpop.f32.mrf.mxu0
  %791 = vdwg.mxu0
  %792 = vmatprep.subr.bf16.mxu0 0
  %793 = vmatpush1.bf16.msra.mxu0 %v557
  %794 = vmatprep.subr.bf16.mxu0 0
  %795 = vmatpush1.bf16.msra.mxu0 %v556
  %796 = vmatprep.subr.bf16.mxu0 0
  %797 = vmatpush1.bf16.msra.mxu0 %v555
  %798 = vmatprep.subr.bf16.mxu0 0
  %799 = vmatpush1.bf16.msra.mxu0 %v554
  %800 = vmatprep.subr.bf16.mxu0 0
  %801 = vmatpush1.bf16.msra.mxu0 %v553
  %802 = vmatprep.subr.bf16.mxu0 0
  %803 = vmatpush1.bf16.msra.mxu0 %v552
  %804 = vmatprep.subr.bf16.mxu0 0
  %805 = vmatpush1.bf16.msra.mxu0 %v551
  %806 = vmatprep.subr.bf16.mxu0 0
  %807 = vmatpush1.bf16.msra.mxu0 %v550
  %808 = vmatprep.subr.bf16.mxu0 0
  %809 = vmatpush2.bf16.msra.mxu0 0
  %810 = vmatprep.subr.bf16.mxu0 0
  %811 = vmatpush2.bf16.msra.mxu0 0
  %812 = vmatprep.subr.bf16.mxu0 0
  %813 = vmatpush2.bf16.msra.mxu0 0
  %814 = vmatprep.subr.bf16.mxu0 0
  %815 = vmatpush2.bf16.msra.mxu0 0
  %816 = vmatprep.subr.bf16.mxu0 0
  %817 = vmatpush2.bf16.msra.mxu0 0
  %818 = vmatprep.subr.bf16.mxu0 0
  %819 = vmatpush2.bf16.msra.mxu0 0
  %820 = vmatprep.subr.bf16.mxu0 0
  %821 = vmatpush2.bf16.msra.mxu0 0
  %822 = vmatprep.subr.bf16.mxu0 0
  %823 = vmatpush2.bf16.msra.mxu0 0
  %824 = vmatprep.mubr.bf16.mxu0 0
  %825 = vmatmul.mubr.bf16.gmra.mxu0 %v282
  %v826 = vpop.f32.mrf.mxu0
  %v827 = vadd.f32 %v730, %v826
  %v828 = vpop.f32.mrf.mxu0
  %v829 = vpop.f32.mrf.mxu0
  %v830 = vadd.f32 %v733, %v829
  %v831 = vpop.f32.mrf.mxu0
  %832 = vmatprep.mubr.bf16.mxu0 0
  %833 = vmatmul.mubr.bf16.gmra.mxu0 %v287
  %v834 = vpop.f32.mrf.mxu0
  %v835 = vadd.f32 %v738, %v834
  %v836 = vpop.f32.mrf.mxu0
  %v837 = vpop.f32.mrf.mxu0
  %v838 = vadd.f32 %v741, %v837
  %v839 = vpop.f32.mrf.mxu0
  %840 = vmatprep.mubr.bf16.mxu0 0
  %841 = vmatmul.mubr.bf16.gmra.mxu0 %v292
  %v842 = vpop.f32.mrf.mxu0
  %v843 = vadd.f32 %v746, %v842
  %v844 = vpop.f32.mrf.mxu0
  %v845 = vpop.f32.mrf.mxu0
  %v846 = vadd.f32 %v749, %v845
  %v847 = vpop.f32.mrf.mxu0
  %848 = vmatprep.mubr.bf16.mxu0 0
  %849 = vmatmul.mubr.bf16.gmra.mxu0 %v297
  %v850 = vpop.f32.mrf.mxu0
  %v851 = vadd.f32 %v754, %v850
  %v852 = vpop.f32.mrf.mxu0
  %v853 = vpop.f32.mrf.mxu0
  %v854 = vadd.f32 %v757, %v853
  %v855 = vpop.f32.mrf.mxu0
  %856 = vmatprep.mubr.bf16.mxu0 0
  %857 = vmatmul.mubr.bf16.gmra.mxu0 %v302
  %v858 = vpop.f32.mrf.mxu0
  %v859 = vadd.f32 %v762, %v858
  %v860 = vpop.f32.mrf.mxu0
  %v861 = vpop.f32.mrf.mxu0
  %v862 = vadd.f32 %v765, %v861
  %v863 = vpop.f32.mrf.mxu0
  %864 = vmatprep.mubr.bf16.mxu0 0
  %865 = vmatmul.mubr.bf16.gmra.mxu0 %v307
  %v866 = vpop.f32.mrf.mxu0
  %v867 = vadd.f32 %v770, %v866
  %v868 = vpop.f32.mrf.mxu0
  %v869 = vpop.f32.mrf.mxu0
  %v870 = vadd.f32 %v773, %v869
  %v871 = vpop.f32.mrf.mxu0
  %872 = vmatprep.mubr.bf16.mxu0 0
  %873 = vmatmul.mubr.bf16.gmra.mxu0 %v312
  %v874 = vpop.f32.mrf.mxu0
  %v875 = vadd.f32 %v778, %v874
  %v876 = vpop.f32.mrf.mxu0
  %v877 = vpop.f32.mrf.mxu0
  %v878 = vadd.f32 %v781, %v877
  %v879 = vpop.f32.mrf.mxu0
  %880 = vmatprep.mubr.bf16.mxu0 0
  %881 = vmatmul.mubr.bf16.gmra.mxu0 %v317
  %v882 = vpop.f32.mrf.mxu0
  %v883 = vadd.f32 %v786, %v882
  %v884 = vpop.f32.mrf.mxu0
  %v885 = vpop.f32.mrf.mxu0
  %v886 = vadd.f32 %v789, %v885
  %v887 = vpop.f32.mrf.mxu0
  %888 = vdwg.mxu0
  %v889 = vmax.f32 %v827, 0.0
  %v890 = vmax.f32 %v830, 0.0
  %v891 = vmax.f32 %v835, 0.0
  %v892 = vmax.f32 %v838, 0.0
  %v893 = vmax.f32 %v843, 0.0
  %v894 = vmax.f32 %v846, 0.0
  %v895 = vmax.f32 %v851, 0.0
  %v896 = vmax.f32 %v854, 0.0
  %v897 = vmax.f32 %v859, 0.0
  %v898 = vmax.f32 %v862, 0.0
  %v899 = vmax.f32 %v867, 0.0
  %v900 = vmax.f32 %v870, 0.0
  %v901 = vmax.f32 %v875, 0.0
  %v902 = vmax.f32 %v878, 0.0
  %v903 = vmax.f32 %v883, 0.0
  %v904 = vmax.f32 %v886, 0.0
  %v905 = vpack.c.bf16 %v890, %v889
  %v906 = vpack.c.bf16 %v892, %v891
  %v907 = vpack.c.bf16 %v894, %v893
  %v908 = vpack.c.bf16 %v896, %v895
  %v909 = vpack.c.bf16 %v898, %v897
  %v910 = vpack.c.bf16 %v900, %v899
  %v911 = vpack.c.bf16 %v902, %v901
  %v912 = vpack.c.bf16 %v904, %v903
  %v921 = vunpack.c.l.b16 %v905
  %v922 = vunpack.c.h.b16 %v905
  %v923 = vunpack.c.l.b16 %v906
  %v924 = vunpack.c.h.b16 %v906
  %v925 = vunpack.c.l.b16 %v907
  %v926 = vunpack.c.h.b16 %v907
  %v927 = vunpack.c.l.b16 %v908
  %v928 = vunpack.c.h.b16 %v908
  %v929 = vunpack.c.l.b16 %v909
  %v930 = vunpack.c.h.b16 %v909
  %v931 = vunpack.c.l.b16 %v910
  %v932 = vunpack.c.h.b16 %v910
  %v933 = vunpack.c.l.b16 %v911
  %v934 = vunpack.c.h.b16 %v911
  %v935 = vunpack.c.l.b16 %v912
  %v936 = vunpack.c.h.b16 %v912
  %v937 = vpack.c.b16 %v921, %v921
  %v938 = vpack.c.b16 %v922, %v922
  %v939 = vpack.c.b16 %v923, %v923
  %v940 = vpack.c.b16 %v924, %v924
  %v941 = vpack.c.b16 %v925, %v925
  %v942 = vpack.c.b16 %v926, %v926
  %v943 = vpack.c.b16 %v927, %v927
  %v944 = vpack.c.b16 %v928, %v928
  %v945 = vpack.c.b16 %v929, %v929
  %v946 = vpack.c.b16 %v930, %v930
  %v947 = vpack.c.b16 %v931, %v931
  %v948 = vpack.c.b16 %v932, %v932
  %v949 = vpack.c.b16 %v933, %v933
  %v950 = vpack.c.b16 %v934, %v934
  %v951 = vpack.c.b16 %v935, %v935
  %v952 = vpack.c.b16 %v936, %v936
  %969 = vst [vmem:[%s3] sm:$0xf] %v937
  %970 = vst [vmem:[%s3 + $0x4] sm:$0xf] %v938
  %971 = vst [vmem:[%s3 + $0x8] sm:$0xf] %v939
  %972 = vst [vmem:[%s3 + $0xc] sm:$0xf] %v940
  %973 = vst [vmem:[%s3 + $0x10] sm:$0xf] %v941
  %974 = vst [vmem:[%s3 + $0x14] sm:$0xf] %v942
  %975 = vst [vmem:[%s3 + $0x18] sm:$0xf] %v943
  %976 = vst [vmem:[%s3 + $0x1c] sm:$0xf] %v944
  %977 = vst [vmem:[%s3 + $0x20] sm:$0xf] %v945
  %978 = vst [vmem:[%s3 + $0x24] sm:$0xf] %v946
  %979 = vst [vmem:[%s3 + $0x28] sm:$0xf] %v947
  %980 = vst [vmem:[%s3 + $0x2c] sm:$0xf] %v948
  %981 = vst [vmem:[%s3 + $0x30] sm:$0xf] %v949
  %982 = vst [vmem:[%s3 + $0x34] sm:$0xf] %v950
  %983 = vst [vmem:[%s3 + $0x38] sm:$0xf] %v951
  %984 = vst [vmem:[%s3 + $0x3c] sm:$0xf] %v952
  // Predicated region
  $region14: #{conv_frontend_forward.5} parent=0 // pred_check
    _
  $region15: #{conv_frontend_forward.5} parent=0 // pred_check_branch
    %986 = sbr.rel (0) target = $region17
  $region16: #{conv_frontend_forward.5} parent=0 // pred_region
    _
  $region17: #{conv_frontend_forward.5} parent=0 // pred_fallthru
    _
  // Predicated region
  $region18: #{conv_frontend_forward.5} parent=0 // pred_check
    _
  $region19: #{conv_frontend_forward.5} parent=0 // pred_check_branch
    %988 = sbr.rel (0) target = $region21
  $region20: #{conv_frontend_forward.5} parent=0 // pred_region
    _
  $region21: #{conv_frontend_forward.5} parent=0 // pred_fallthru
    _

// kernel: conv_frontend_forward.7
$region0: #{conv_frontend_forward.7}
  #allocation0 [shape = 'u32[]', space=smem, size = 0x4, offset = 0x4, fixed_abs, tag = 'smem constant byte address 0x4 - core index']
  #allocation1 [shape = 'u32[144,128]{1,0:T(1,128)}', space=vmem, size = 0x12000, scoped, tag = 'internal scratch']
  %s0 = inlined_call_operand.vmem [shape: bf16[128,1152], index: 0, kind: input, shape index: {}]
  %s1 = inlined_call_operand.vmem [shape: bf16[1152,128], index: 1, kind: input, shape index: {}]
  %s2 = inlined_call_operand.vmem [shape: f32[1,128], index: 2, kind: input, shape index: {}]
  %s3 = inlined_call_operand.hbm [shape: f32[128,128], index: 3, kind: output, shape index: {}]
  %s4 = sld [smem:[#allocation0]]
  $region22: #{conv_frontend_forward.7} parent=0
    _
  %s6 = ssub.s32 1, %s4
  %s7 = scalar_select 0, %s6, %s4
  $region1: #{conv_frontend_forward.7} parent=0
    #allocation2 [shape = 'u8[65536]{0}', space=vmem, size = 0x10000, scoped, tag = 'output window, operand 0, single buffered']
    #allocation3 [shape = 's32[1]{0}', space=sflag, size = 0x4, scoped, tag = 'scoped memory for conv_frontend_forward.7']
    %8 = vsyncpa [#allocation3], 0
    // Predicated region
    $region2: #{conv_frontend_forward.7} parent=1 // pred_check
      _
    $region3: #{conv_frontend_forward.7} parent=1 // pred_check_branch
      %10 = sbr.rel (0) target = $region5
    $region4: #{conv_frontend_forward.7} parent=1 // pred_region
      _
    $region5: #{conv_frontend_forward.7} parent=1 // pred_fallthru
      _
    // Predicated region
    $region6: #{conv_frontend_forward.7} parent=1 // pred_check
      _
    $region7: #{conv_frontend_forward.7} parent=1 // pred_check_branch
      %12 = sbr.rel (0) target = $region9
    $region8: #{conv_frontend_forward.7} parent=1 // pred_region
      _
    $region9: #{conv_frontend_forward.7} parent=1 // pred_fallthru
      _
    // Predicated region
    $region10: #{conv_frontend_forward.7} parent=1 // pred_check
      _
    $region11: #{conv_frontend_forward.7} parent=1 // pred_check_branch
      %14 = sbr.rel (0) target = $region13
    $region12: #{conv_frontend_forward.7} parent=1 // pred_region
      _
    $region13: #{conv_frontend_forward.7} parent=1 // pred_fallthru
      _
    %v16 = vld [vmem:[%s0] sm:$0xff]
    %v17 = vld [vmem:[%s0 + $0x8] sm:$0xff]
    %v18 = vld [vmem:[%s0 + $0x10] sm:$0xff]
    %v19 = vld [vmem:[%s0 + $0x18] sm:$0xff]
    %v20 = vld [vmem:[%s0 + $0x20] sm:$0xf]
    %v21 = vld [vmem:[%s0 + $0x24] sm:$0xff]
    %v22 = vld [vmem:[%s0 + $0x2c] sm:$0xff]
    %v23 = vld [vmem:[%s0 + $0x34] sm:$0xff]
    %v24 = vld [vmem:[%s0 + $0x3c] sm:$0xff]
    %v25 = vld [vmem:[%s0 + $0x44] sm:$0xf]
    %v26 = vld [vmem:[%s0 + $0x48] sm:$0xff]
    %v27 = vld [vmem:[%s0 + $0x50] sm:$0xff]
    %v28 = vld [vmem:[%s0 + $0x58] sm:$0xff]
    %v29 = vld [vmem:[%s0 + $0x60] sm:$0xff]
    %v30 = vld [vmem:[%s0 + $0x68] sm:$0xf]
    %v31 = vld [vmem:[%s0 + $0x6c] sm:$0xff]
    %v32 = vld [vmem:[%s0 + $0x74] sm:$0xff]
    %v33 = vld [vmem:[%s0 + $0x7c] sm:$0xff]
    %v34 = vld [vmem:[%s0 + $0x84] sm:$0xff]
    %v35 = vld [vmem:[%s0 + $0x8c] sm:$0xf]
    %v36 = vld [vmem:[%s0 + $0x90] sm:$0xff]
    %v37 = vld [vmem:[%s0 + $0x98] sm:$0xff]
    %v38 = vld [vmem:[%s0 + $0xa0] sm:$0xff]
    %v39 = vld [vmem:[%s0 + $0xa8] sm:$0xff]
    %v40 = vld [vmem:[%s0 + $0xb0] sm:$0xf]
    %v41 = vld [vmem:[%s0 + $0xb4] sm:$0xff]
    %v42 = vld [vmem:[%s0 + $0xbc] sm:$0xff]
    %v43 = vld [vmem:[%s0 + $0xc4] sm:$0xff]
    %v44 = vld [vmem:[%s0 + $0xcc] sm:$0xff]
    %v45 = vld [vmem:[%s0 + $0xd4] sm:$0xf]
    %v46 = vld [vmem:[%s0 + $0xd8] sm:$0xff]
    %v47 = vld [vmem:[%s0 + $0xe0] sm:$0xff]
    %v48 = vld [vmem:[%s0 + $0xe8] sm:$0xff]
    %v49 = vld [vmem:[%s0 + $0xf0] sm:$0xff]
    %v50 = vld [vmem:[%s0 + $0xf8] sm:$0xf]
    %v51 = vld [vmem:[%s0 + $0xfc] sm:$0xff]
    %v52 = vld [vmem:[%s0 + $0x104] sm:$0xff]
    %v53 = vld [vmem:[%s0 + $0x10c] sm:$0xff]
    %v54 = vld [vmem:[%s0 + $0x114] sm:$0xff]
    %v55 = vld [vmem:[%s0 + $0x11c] sm:$0xf]
    %v56 = vld [vmem:[%s0 + $0x120] sm:$0xff]
    %v57 = vld [vmem:[%s0 + $0x128] sm:$0xff]
    %v58 = vld [vmem:[%s0 + $0x130] sm:$0xff]
    %v59 = vld [vmem:[%s0 + $0x138] sm:$0xff]
    %v60 = vld [vmem:[%s0 + $0x140] sm:$0xf]
    %v61 = vld [vmem:[%s0 + $0x144] sm:$0xff]
    %v62 = vld [vmem:[%s0 + $0x14c] sm:$0xff]
    %v63 = vld [vmem:[%s0 + $0x154] sm:$0xff]
    %v64 = vld [vmem:[%s0 + $0x15c] sm:$0xff]
    %v65 = vld [vmem:[%s0 + $0x164] sm:$0xf]
    %v66 = vld [vmem:[%s0 + $0x168] sm:$0xff]
    %v67 = vld [vmem:[%s0 + $0x170] sm:$0xff]
    %v68 = vld [vmem:[%s0 + $0x178] sm:$0xff]
    %v69 = vld [vmem:[%s0 + $0x180] sm:$0xff]
    %v70 = vld [vmem:[%s0 + $0x188] sm:$0xf]
    %v71 = vld [vmem:[%s0 + $0x18c] sm:$0xff]
    %v72 = vld [vmem:[%s0 + $0x194] sm:$0xff]
    %v73 = vld [vmem:[%s0 + $0x19c] sm:$0xff]
    %v74 = vld [vmem:[%s0 + $0x1a4] sm:$0xff]
    %v75 = vld [vmem:[%s0 + $0x1ac] sm:$0xf]
    %v76 = vld [vmem:[%s0 + $0x1b0] sm:$0xff]
    %v77 = vld [vmem:[%s0 + $0x1b8] sm:$0xff]
    %v78 = vld [vmem:[%s0 + $0x1c0] sm:$0xff]
    %v79 = vld [vmem:[%s0 + $0x1c8] sm:$0xff]
    %v80 = vld [vmem:[%s0 + $0x1d0] sm:$0xf]
    %v81 = vld [vmem:[%s0 + $0x1d4] sm:$0xff]
    %v82 = vld [vmem:[%s0 + $0x1dc] sm:$0xff]
    %v83 = vld [vmem:[%s0 + $0x1e4] sm:$0xff]
    %v84 = vld [vmem:[%s0 + $0x1ec] sm:$0xff]
    %v85 = vld [vmem:[%s0 + $0x1f4] sm:$0xf]
    %v86 = vld [vmem:[%s0 + $0x1f8] sm:$0xff]
    %v87 = vld [vmem:[%s0 + $0x200] sm:$0xff]
    %v88 = vld [vmem:[%s0 + $0x208] sm:$0xff]
    %v89 = vld [vmem:[%s0 + $0x210] sm:$0xff]
    %v90 = vld [vmem:[%s0 + $0x218] sm:$0xf]
    %v91 = vld [vmem:[%s0 + $0x21c] sm:$0xff]
    %v92 = vld [vmem:[%s0 + $0x224] sm:$0xff]
    %v93 = vld [vmem:[%s0 + $0x22c] sm:$0xff]
    %v94 = vld [vmem:[%s0 + $0x234] sm:$0xff]
    %v95 = vld [vmem:[%s0 + $0x23c] sm:$0xf]
    %v96 = vld [vmem:[%s1] sm:$0xf]
    %v97 = vld [vmem:[%s1 + $0x4] sm:$0xf]
    %v98 = vld [vmem:[%s1 + $0x8] sm:$0xf]
    %v99 = vld [vmem:[%s1 + $0xc] sm:$0xf]
    %v100 = vld [vmem:[%s1 + $0x10] sm:$0xf]
    %v101 = vld [vmem:[%s1 + $0x14] sm:$0xf]
    %v102 = vld [vmem:[%s1 + $0x18] sm:$0xf]
    %v103 = vld [vmem:[%s1 + $0x1c] sm:$0xf]
    %v104 = vld [vmem:[%s1 + $0x20] sm:$0xf]
    %v105 = vld [vmem:[%s1 + $0x24] sm:$0xf]
    %v106 = vld [vmem:[%s1 + $0x28] sm:$0xf]
    %v107 = vld [vmem:[%s1 + $0x2c] sm:$0xf]
    %v108 = vld [vmem:[%s1 + $0x30] sm:$0xf]
    %v109 = vld [vmem:[%s1 + $0x34] sm:$0xf]
    %v110 = vld [vmem:[%s1 + $0x38] sm:$0xf]
    %v111 = vld [vmem:[%s1 + $0x3c] sm:$0xf]
    %v112 = vld [vmem:[%s1 + $0x40] sm:$0xf]
    %v113 = vld [vmem:[%s1 + $0x44] sm:$0xf]
    %v114 = vld [vmem:[%s1 + $0x48] sm:$0xf]
    %v115 = vld [vmem:[%s1 + $0x4c] sm:$0xf]
    %v116 = vld [vmem:[%s1 + $0x50] sm:$0xf]
    %v117 = vld [vmem:[%s1 + $0x54] sm:$0xf]
    %v118 = vld [vmem:[%s1 + $0x58] sm:$0xf]
    %v119 = vld [vmem:[%s1 + $0x5c] sm:$0xf]
    %v120 = vld [vmem:[%s1 + $0x60] sm:$0xf]
    %v121 = vld [vmem:[%s1 + $0x64] sm:$0xf]
    %v122 = vld [vmem:[%s1 + $0x68] sm:$0xf]
    %v123 = vld [vmem:[%s1 + $0x6c] sm:$0xf]
    %v124 = vld [vmem:[%s1 + $0x70] sm:$0xf]
    %v125 = vld [vmem:[%s1 + $0x74] sm:$0xf]
    %v126 = vld [vmem:[%s1 + $0x78] sm:$0xf]
    %v127 = vld [vmem:[%s1 + $0x7c] sm:$0xf]
    %v128 = vld [vmem:[%s1 + $0x80] sm:$0xf]
    %v129 = vld [vmem:[%s1 + $0x84] sm:$0xf]
    %v130 = vld [vmem:[%s1 + $0x88] sm:$0xf]
    %v131 = vld [vmem:[%s1 + $0x8c] sm:$0xf]
    %v132 = vld [vmem:[%s1 + $0x90] sm:$0xf]
    %v133 = vld [vmem:[%s1 + $0x94] sm:$0xf]
    %v134 = vld [vmem:[%s1 + $0x98] sm:$0xf]
    %v135 = vld [vmem:[%s1 + $0x9c] sm:$0xf]
    %v136 = vld [vmem:[%s1 + $0xa0] sm:$0xf]
    %v137 = vld [vmem:[%s1 + $0xa4] sm:$0xf]
    %v138 = vld [vmem:[%s1 + $0xa8] sm:$0xf]
    %v139 = vld [vmem:[%s1 + $0xac] sm:$0xf]
    %v140 = vld [vmem:[%s1 + $0xb0] sm:$0xf]
    %v141 = vld [vmem:[%s1 + $0xb4] sm:$0xf]
    %v142 = vld [vmem:[%s1 + $0xb8] sm:$0xf]
    %v143 = vld [vmem:[%s1 + $0xbc] sm:$0xf]
    %v144 = vld [vmem:[%s1 + $0xc0] sm:$0xf]
    %v145 = vld [vmem:[%s1 + $0xc4] sm:$0xf]
    %v146 = vld [vmem:[%s1 + $0xc8] sm:$0xf]
    %v147 = vld [vmem:[%s1 + $0xcc] sm:$0xf]
    %v148 = vld [vmem:[%s1 + $0xd0] sm:$0xf]
    %v149 = vld [vmem:[%s1 + $0xd4] sm:$0xf]
    %v150 = vld [vmem:[%s1 + $0xd8] sm:$0xf]
    %v151 = vld [vmem:[%s1 + $0xdc] sm:$0xf]
    %v152 = vld [vmem:[%s1 + $0xe0] sm:$0xf]
    %v153 = vld [vmem:[%s1 + $0xe4] sm:$0xf]
    %v154 = vld [vmem:[%s1 + $0xe8] sm:$0xf]
    %v155 = vld [vmem:[%s1 + $0xec] sm:$0xf]
    %v156 = vld [vmem:[%s1 + $0xf0] sm:$0xf]
    %v157 = vld [vmem:[%s1 + $0xf4] sm:$0xf]
    %v158 = vld [vmem:[%s1 + $0xf8] sm:$0xf]
    %v159 = vld [vmem:[%s1 + $0xfc] sm:$0xf]
    %v160 = vld [vmem:[%s1 + $0x100] sm:$0xf]
    %v161 = vld [vmem:[%s1 + $0x104] sm:$0xf]
    %v162 = vld [vmem:[%s1 + $0x108] sm:$0xf]
    %v163 = vld [vmem:[%s1 + $0x10c] sm:$0xf]
    %v164 = vld [vmem:[%s1 + $0x110] sm:$0xf]
    %v165 = vld [vmem:[%s1 + $0x114] sm:$0xf]
    %v166 = vld [vmem:[%s1 + $0x118] sm:$0xf]
    %v167 = vld [vmem:[%s1 + $0x11c] sm:$0xf]
    %v168 = vld [vmem:[%s1 + $0x120] sm:$0xf]
    %v169 = vld [vmem:[%s1 + $0x124] sm:$0xf]
    %v170 = vld [vmem:[%s1 + $0x128] sm:$0xf]
    %v171 = vld [vmem:[%s1 + $0x12c] sm:$0xf]
    %v172 = vld [vmem:[%s1 + $0x130] sm:$0xf]
    %v173 = vld [vmem:[%s1 + $0x134] sm:$0xf]
    %v174 = vld [vmem:[%s1 + $0x138] sm:$0xf]
    %v175 = vld [vmem:[%s1 + $0x13c] sm:$0xf]
    %v176 = vld [vmem:[%s1 + $0x140] sm:$0xf]
    %v177 = vld [vmem:[%s1 + $0x144] sm:$0xf]
    %v178 = vld [vmem:[%s1 + $0x148] sm:$0xf]
    %v179 = vld [vmem:[%s1 + $0x14c] sm:$0xf]
    %v180 = vld [vmem:[%s1 + $0x150] sm:$0xf]
    %v181 = vld [vmem:[%s1 + $0x154] sm:$0xf]
    %v182 = vld [vmem:[%s1 + $0x158] sm:$0xf]
    %v183 = vld [vmem:[%s1 + $0x15c] sm:$0xf]
    %v184 = vld [vmem:[%s1 + $0x160] sm:$0xf]
    %v185 = vld [vmem:[%s1 + $0x164] sm:$0xf]
    %v186 = vld [vmem:[%s1 + $0x168] sm:$0xf]
    %v187 = vld [vmem:[%s1 + $0x16c] sm:$0xf]
    %v188 = vld [vmem:[%s1 + $0x170] sm:$0xf]
    %v189 = vld [vmem:[%s1 + $0x174] sm:$0xf]
    %v190 = vld [vmem:[%s1 + $0x178] sm:$0xf]
    %v191 = vld [vmem:[%s1 + $0x17c] sm:$0xf]
    %v192 = vld [vmem:[%s1 + $0x180] sm:$0xf]
    %v193 = vld [vmem:[%s1 + $0x184] sm:$0xf]
    %v194 = vld [vmem:[%s1 + $0x188] sm:$0xf]
    %v195 = vld [vmem:[%s1 + $0x18c] sm:$0xf]
    %v196 = vld [vmem:[%s1 + $0x190] sm:$0xf]
    %v197 = vld [vmem:[%s1 + $0x194] sm:$0xf]
    %v198 = vld [vmem:[%s1 + $0x198] sm:$0xf]
    %v199 = vld [vmem:[%s1 + $0x19c] sm:$0xf]
    %v200 = vld [vmem:[%s1 + $0x1a0] sm:$0xf]
    %v201 = vld [vmem:[%s1 + $0x1a4] sm:$0xf]
    %v202 = vld [vmem:[%s1 + $0x1a8] sm:$0xf]
    %v203 = vld [vmem:[%s1 + $0x1ac] sm:$0xf]
    %v204 = vld [vmem:[%s1 + $0x1b0] sm:$0xf]
    %v205 = vld [vmem:[%s1 + $0x1b4] sm:$0xf]
    %v206 = vld [vmem:[%s1 + $0x1b8] sm:$0xf]
    %v207 = vld [vmem:[%s1 + $0x1bc] sm:$0xf]
    %v208 = vld [vmem:[%s1 + $0x1c0] sm:$0xf]
    %v209 = vld [vmem:[%s1 + $0x1c4] sm:$0xf]
    %v210 = vld [vmem:[%s1 + $0x1c8] sm:$0xf]
    %v211 = vld [vmem:[%s1 + $0x1cc] sm:$0xf]
    %v212 = vld [vmem:[%s1 + $0x1d0] sm:$0xf]
    %v213 = vld [vmem:[%s1 + $0x1d4] sm:$0xf]
    %v214 = vld [vmem:[%s1 + $0x1d8] sm:$0xf]
    %v215 = vld [vmem:[%s1 + $0x1dc] sm:$0xf]
    %v216 = vld [vmem:[%s1 + $0x1e0] sm:$0xf]
    %v217 = vld [vmem:[%s1 + $0x1e4] sm:$0xf]
    %v218 = vld [vmem:[%s1 + $0x1e8] sm:$0xf]
    %v219 = vld [vmem:[%s1 + $0x1ec] sm:$0xf]
    %v220 = vld [vmem:[%s1 + $0x1f0] sm:$0xf]
    %v221 = vld [vmem:[%s1 + $0x1f4] sm:$0xf]
    %v222 = vld [vmem:[%s1 + $0x1f8] sm:$0xf]
    %v223 = vld [vmem:[%s1 + $0x1fc] sm:$0xf]
    %v224 = vld [vmem:[%s1 + $0x200] sm:$0xf]
    %v225 = vld [vmem:[%s1 + $0x204] sm:$0xf]
    %v226 = vld [vmem:[%s1 + $0x208] sm:$0xf]
    %v227 = vld [vmem:[%s1 + $0x20c] sm:$0xf]
    %v228 = vld [vmem:[%s1 + $0x210] sm:$0xf]
    %v229 = vld [vmem:[%s1 + $0x214] sm:$0xf]
    %v230 = vld [vmem:[%s1 + $0x218] sm:$0xf]
    %v231 = vld [vmem:[%s1 + $0x21c] sm:$0xf]
    %v232 = vld [vmem:[%s1 + $0x220] sm:$0xf]
    %v233 = vld [vmem:[%s1 + $0x224] sm:$0xf]
    %v234 = vld [vmem:[%s1 + $0x228] sm:$0xf]
    %v235 = vld [vmem:[%s1 + $0x22c] sm:$0xf]
    %v236 = vld [vmem:[%s1 + $0x230] sm:$0xf]
    %v237 = vld [vmem:[%s1 + $0x234] sm:$0xf]
    %v238 = vld [vmem:[%s1 + $0x238] sm:$0xf]
    %v239 = vld [vmem:[%s1 + $0x23c] sm:$0xf]
    %v240 = vld [vmem:[%s2] sm:$0x1]
    %v242 = vlaneseq
    %v243 = vshrl.u32 %v242, 7
    %v244 = vsub.s32 0, %v243
    %v245 = vrot.slane %v240, %v244
    %v327 = vunpack.c.l.b16 %v16
    %v328 = vunpack.c.h.b16 %v16
    %v329 = vunpack.c.l.b16 %v17
    %v330 = vunpack.c.h.b16 %v17
    %v331 = vunpack.c.l.b16 %v18
    %v332 = vunpack.c.h.b16 %v18
    %v333 = vunpack.c.l.b16 %v19
    %v334 = vunpack.c.h.b16 %v19
    %v335 = vunpack.c.l.b16 %v20
    %v336 = vunpack.c.l.b16 %v21
    %v337 = vunpack.c.h.b16 %v21
    %v338 = vunpack.c.l.b16 %v22
    %v339 = vunpack.c.h.b16 %v22
    %v340 = vunpack.c.l.b16 %v23
    %v341 = vunpack.c.h.b16 %v23
    %v342 = vunpack.c.l.b16 %v24
    %v343 = vunpack.c.h.b16 %v24
    %v344 = vunpack.c.l.b16 %v25
    %v345 = vunpack.c.l.b16 %v26
    %v346 = vunpack.c.h.b16 %v26
    %v347 = vunpack.c.l.b16 %v27
    %v348 = vunpack.c.h.b16 %v27
    %v349 = vunpack.c.l.b16 %v28
    %v350 = vunpack.c.h.b16 %v28
    %v351 = vunpack.c.l.b16 %v29
    %v352 = vunpack.c.h.b16 %v29
    %v353 = vunpack.c.l.b16 %v30
    %v354 = vunpack.c.l.b16 %v31
    %v355 = vunpack.c.h.b16 %v31
    %v356 = vunpack.c.l.b16 %v32
    %v357 = vunpack.c.h.b16 %v32
    %v358 = vunpack.c.l.b16 %v33
    %v359 = vunpack.c.h.b16 %v33
    %v360 = vunpack.c.l.b16 %v34
    %v361 = vunpack.c.h.b16 %v34
    %v362 = vunpack.c.l.b16 %v35
    %v363 = vunpack.c.l.b16 %v36
    %v364 = vunpack.c.h.b16 %v36
    %v365 = vunpack.c.l.b16 %v37
    %v366 = vunpack.c.h.b16 %v37
    %v367 = vunpack.c.l.b16 %v38
    %v368 = vunpack.c.h.b16 %v38
    %v369 = vunpack.c.l.b16 %v39
    %v370 = vunpack.c.h.b16 %v39
    %v371 = vunpack.c.l.b16 %v40
    %v372 = vunpack.c.l.b16 %v41
    %v373 = vunpack.c.h.b16 %v41
    %v374 = vunpack.c.l.b16 %v42
    %v375 = vunpack.c.h.b16 %v42
    %v376 = vunpack.c.l.b16 %v43
    %v377 = vunpack.c.h.b16 %v43
    %v378 = vunpack.c.l.b16 %v44
    %v379 = vunpack.c.h.b16 %v44
    %v380 = vunpack.c.l.b16 %v45
    %v381 = vunpack.c.l.b16 %v46
    %v382 = vunpack.c.h.b16 %v46
    %v383 = vunpack.c.l.b16 %v47
    %v384 = vunpack.c.h.b16 %v47
    %v385 = vunpack.c.l.b16 %v48
    %v386 = vunpack.c.h.b16 %v48
    %v387 = vunpack.c.l.b16 %v49
    %v388 = vunpack.c.h.b16 %v49
    %v389 = vunpack.c.l.b16 %v50
    %v390 = vunpack.c.l.b16 %v51
    %v391 = vunpack.c.h.b16 %v51
    %v392 = vunpack.c.l.b16 %v52
    %v393 = vunpack.c.h.b16 %v52
    %v394 = vunpack.c.l.b16 %v53
    %v395 = vunpack.c.h.b16 %v53
    %v396 = vunpack.c.l.b16 %v54
    %v397 = vunpack.c.h.b16 %v54
    %v398 = vunpack.c.l.b16 %v55
    %v399 = vunpack.c.l.b16 %v56
    %v400 = vunpack.c.h.b16 %v56
    %v401 = vunpack.c.l.b16 %v57
    %v402 = vunpack.c.h.b16 %v57
    %v403 = vunpack.c.l.b16 %v58
    %v404 = vunpack.c.h.b16 %v58
    %v405 = vunpack.c.l.b16 %v59
    %v406 = vunpack.c.h.b16 %v59
    %v407 = vunpack.c.l.b16 %v60
    %v408 = vunpack.c.l.b16 %v61
    %v409 = vunpack.c.h.b16 %v61
    %v410 = vunpack.c.l.b16 %v62
    %v411 = vunpack.c.h.b16 %v62
    %v412 = vunpack.c.l.b16 %v63
    %v413 = vunpack.c.h.b16 %v63
    %v414 = vunpack.c.l.b16 %v64
    %v415 = vunpack.c.h.b16 %v64
    %v416 = vunpack.c.l.b16 %v65
    %v417 = vunpack.c.l.b16 %v66
    %v418 = vunpack.c.h.b16 %v66
    %v419 = vunpack.c.l.b16 %v67
    %v420 = vunpack.c.h.b16 %v67
    %v421 = vunpack.c.l.b16 %v68
    %v422 = vunpack.c.h.b16 %v68
    %v423 = vunpack.c.l.b16 %v69
    %v424 = vunpack.c.h.b16 %v69
    %v425 = vunpack.c.l.b16 %v70
    %v426 = vunpack.c.l.b16 %v71
    %v427 = vunpack.c.h.b16 %v71
    %v428 = vunpack.c.l.b16 %v72
    %v429 = vunpack.c.h.b16 %v72
    %v430 = vunpack.c.l.b16 %v73
    %v431 = vunpack.c.h.b16 %v73
    %v432 = vunpack.c.l.b16 %v74
    %v433 = vunpack.c.h.b16 %v74
    %v434 = vunpack.c.l.b16 %v75
    %v435 = vunpack.c.l.b16 %v76
    %v436 = vunpack.c.h.b16 %v76
    %v437 = vunpack.c.l.b16 %v77
    %v438 = vunpack.c.h.b16 %v77
    %v439 = vunpack.c.l.b16 %v78
    %v440 = vunpack.c.h.b16 %v78
    %v441 = vunpack.c.l.b16 %v79
    %v442 = vunpack.c.h.b16 %v79
    %v443 = vunpack.c.l.b16 %v80
    %v444 = vunpack.c.l.b16 %v81
    %v445 = vunpack.c.h.b16 %v81
    %v446 = vunpack.c.l.b16 %v82
    %v447 = vunpack.c.h.b16 %v82
    %v448 = vunpack.c.l.b16 %v83
    %v449 = vunpack.c.h.b16 %v83
    %v450 = vunpack.c.l.b16 %v84
    %v451 = vunpack.c.h.b16 %v84
    %v452 = vunpack.c.l.b16 %v85
    %v453 = vunpack.c.l.b16 %v86
    %v454 = vunpack.c.h.b16 %v86
    %v455 = vunpack.c.l.b16 %v87
    %v456 = vunpack.c.h.b16 %v87
    %v457 = vunpack.c.l.b16 %v88
    %v458 = vunpack.c.h.b16 %v88
    %v459 = vunpack.c.l.b16 %v89
    %v460 = vunpack.c.h.b16 %v89
    %v461 = vunpack.c.l.b16 %v90
    %v462 = vunpack.c.l.b16 %v91
    %v463 = vunpack.c.h.b16 %v91
    %v464 = vunpack.c.l.b16 %v92
    %v465 = vunpack.c.h.b16 %v92
    %v466 = vunpack.c.l.b16 %v93
    %v467 = vunpack.c.h.b16 %v93
    %v468 = vunpack.c.l.b16 %v94
    %v469 = vunpack.c.h.b16 %v94
    %v470 = vunpack.c.l.b16 %v95
    %v471 = vpack.c.b16 %v336, %v327
    %v472 = vpack.c.b16 %v337, %v328
    %v473 = vpack.c.b16 %v338, %v329
    %v474 = vpack.c.b16 %v339, %v330
    %v475 = vpack.c.b16 %v340, %v331
    %v476 = vpack.c.b16 %v341, %v332
    %v477 = vpack.c.b16 %v342, %v333
    %v478 = vpack.c.b16 %v343, %v334
    %v479 = vpack.c.b16 %v344, %v335
    %v480 = vpack.c.b16 %v354, %v345
    %v481 = vpack.c.b16 %v355, %v346
    %v482 = vpack.c.b16 %v356, %v347
    %v483 = vpack.c.b16 %v357, %v348
    %v484 = vpack.c.b16 %v358, %v349
    %v485 = vpack.c.b16 %v359, %v350
    %v486 = vpack.c.b16 %v360, %v351
    %v487 = vpack.c.b16 %v361, %v352
    %v488 = vpack.c.b16 %v362, %v353
    %v489 = vpack.c.b16 %v372, %v363
    %v490 = vpack.c.b16 %v373, %v364
    %v491 = vpack.c.b16 %v374, %v365
    %v492 = vpack.c.b16 %v375, %v366
    %v493 = vpack.c.b16 %v376, %v367
    %v494 = vpack.c.b16 %v377, %v368
    %v495 = vpack.c.b16 %v378, %v369
    %v496 = vpack.c.b16 %v379, %v370
    %v497 = vpack.c.b16 %v380, %v371
    %v498 = vpack.c.b16 %v390, %v381
    %v499 = vpack.c.b16 %v391, %v382
    %v500 = vpack.c.b16 %v392, %v383
    %v501 = vpack.c.b16 %v393, %v384
    %v502 = vpack.c.b16 %v394, %v385
    %v503 = vpack.c.b16 %v395, %v386
    %v504 = vpack.c.b16 %v396, %v387
    %v505 = vpack.c.b16 %v397, %v388
    %v506 = vpack.c.b16 %v398, %v389
    %v507 = vpack.c.b16 %v408, %v399
    %v508 = vpack.c.b16 %v409, %v400
    %v509 = vpack.c.b16 %v410, %v401
    %v510 = vpack.c.b16 %v411, %v402
    %v511 = vpack.c.b16 %v412, %v403
    %v512 = vpack.c.b16 %v413, %v404
    %v513 = vpack.c.b16 %v414, %v405
    %v514 = vpack.c.b16 %v415, %v406
    %v515 = vpack.c.b16 %v416, %v407
    %v516 = vpack.c.b16 %v426, %v417
    %v517 = vpack.c.b16 %v427, %v418
    %v518 = vpack.c.b16 %v428, %v419
    %v519 = vpack.c.b16 %v429, %v420
    %v520 = vpack.c.b16 %v430, %v421
    %v521 = vpack.c.b16 %v431, %v422
    %v522 = vpack.c.b16 %v432, %v423
    %v523 = vpack.c.b16 %v433, %v424
    %v524 = vpack.c.b16 %v434, %v425
    %v525 = vpack.c.b16 %v444, %v435
    %v526 = vpack.c.b16 %v445, %v436
    %v527 = vpack.c.b16 %v446, %v437
    %v528 = vpack.c.b16 %v447, %v438
    %v529 = vpack.c.b16 %v448, %v439
    %v530 = vpack.c.b16 %v449, %v440
    %v531 = vpack.c.b16 %v450, %v441
    %v532 = vpack.c.b16 %v451, %v442
    %v533 = vpack.c.b16 %v452, %v443
    %v534 = vpack.c.b16 %v462, %v453
    %v535 = vpack.c.b16 %v463, %v454
    %v536 = vpack.c.b16 %v464, %v455
    %v537 = vpack.c.b16 %v465, %v456
    %v538 = vpack.c.b16 %v466, %v457
    %v539 = vpack.c.b16 %v467, %v458
    %v540 = vpack.c.b16 %v468, %v459
    %v541 = vpack.c.b16 %v469, %v460
    %v542 = vpack.c.b16 %v470, %v461
    %v759 = vunpack.c.l.b16 %v96
    %v760 = vunpack.c.l.b16 %v97
    %v761 = vunpack.c.l.b16 %v98
    %v762 = vunpack.c.l.b16 %v99
    %v763 = vunpack.c.l.b16 %v100
    %v764 = vunpack.c.l.b16 %v101
    %v765 = vunpack.c.l.b16 %v102
    %v766 = vunpack.c.l.b16 %v103
    %v767 = vunpack.c.l.b16 %v104
    %v768 = vunpack.c.l.b16 %v105
    %v769 = vunpack.c.l.b16 %v106
    %v770 = vunpack.c.l.b16 %v107
    %v771 = vunpack.c.l.b16 %v108
    %v772 = vunpack.c.l.b16 %v109
    %v773 = vunpack.c.l.b16 %v110
    %v774 = vunpack.c.l.b16 %v111
    %v775 = vunpack.c.l.b16 %v112
    %v776 = vunpack.c.l.b16 %v113
    %v777 = vunpack.c.l.b16 %v114
    %v778 = vunpack.c.l.b16 %v115
    %v779 = vunpack.c.l.b16 %v116
    %v780 = vunpack.c.l.b16 %v117
    %v781 = vunpack.c.l.b16 %v118
    %v782 = vunpack.c.l.b16 %v119
    %v783 = vunpack.c.l.b16 %v120
    %v784 = vunpack.c.l.b16 %v121
    %v785 = vunpack.c.l.b16 %v122
    %v786 = vunpack.c.l.b16 %v123
    %v787 = vunpack.c.l.b16 %v124
    %v788 = vunpack.c.l.b16 %v125
    %v789 = vunpack.c.l.b16 %v126
    %v790 = vunpack.c.l.b16 %v127
    %v791 = vunpack.c.l.b16 %v128
    %v792 = vunpack.c.l.b16 %v129
    %v793 = vunpack.c.l.b16 %v130
    %v794 = vunpack.c.l.b16 %v131
    %v795 = vunpack.c.l.b16 %v132
    %v796 = vunpack.c.l.b16 %v133
    %v797 = vunpack.c.l.b16 %v134
    %v798 = vunpack.c.l.b16 %v135
    %v799 = vunpack.c.l.b16 %v136
    %v800 = vunpack.c.l.b16 %v137
    %v801 = vunpack.c.l.b16 %v138
    %v802 = vunpack.c.l.b16 %v139
    %v803 = vunpack.c.l.b16 %v140
    %v804 = vunpack.c.l.b16 %v141
    %v805 = vunpack.c.l.b16 %v142
    %v806 = vunpack.c.l.b16 %v143
    %v807 = vunpack.c.l.b16 %v144
    %v808 = vunpack.c.l.b16 %v145
    %v809 = vunpack.c.l.b16 %v146
    %v810 = vunpack.c.l.b16 %v147
    %v811 = vunpack.c.l.b16 %v148
    %v812 = vunpack.c.l.b16 %v149
    %v813 = vunpack.c.l.b16 %v150
    %v814 = vunpack.c.l.b16 %v151
    %v815 = vunpack.c.l.b16 %v152
    %v816 = vunpack.c.l.b16 %v153
    %v817 = vunpack.c.l.b16 %v154
    %v818 = vunpack.c.l.b16 %v155
    %v819 = vunpack.c.l.b16 %v156
    %v820 = vunpack.c.l.b16 %v157
    %v821 = vunpack.c.l.b16 %v158
    %v822 = vunpack.c.l.b16 %v159
    %v823 = vunpack.c.l.b16 %v160
    %v824 = vunpack.c.l.b16 %v161
    %v825 = vunpack.c.l.b16 %v162
    %v826 = vunpack.c.l.b16 %v163
    %v827 = vunpack.c.l.b16 %v164
    %v828 = vunpack.c.l.b16 %v165
    %v829 = vunpack.c.l.b16 %v166
    %v830 = vunpack.c.l.b16 %v167
    %v831 = vunpack.c.l.b16 %v168
    %v832 = vunpack.c.l.b16 %v169
    %v833 = vunpack.c.l.b16 %v170
    %v834 = vunpack.c.l.b16 %v171
    %v835 = vunpack.c.l.b16 %v172
    %v836 = vunpack.c.l.b16 %v173
    %v837 = vunpack.c.l.b16 %v174
    %v838 = vunpack.c.l.b16 %v175
    %v839 = vunpack.c.l.b16 %v176
    %v840 = vunpack.c.l.b16 %v177
    %v841 = vunpack.c.l.b16 %v178
    %v842 = vunpack.c.l.b16 %v179
    %v843 = vunpack.c.l.b16 %v180
    %v844 = vunpack.c.l.b16 %v181
    %v845 = vunpack.c.l.b16 %v182
    %v846 = vunpack.c.l.b16 %v183
    %v847 = vunpack.c.l.b16 %v184
    %v848 = vunpack.c.l.b16 %v185
    %v849 = vunpack.c.l.b16 %v186
    %v850 = vunpack.c.l.b16 %v187
    %v851 = vunpack.c.l.b16 %v188
    %v852 = vunpack.c.l.b16 %v189
    %v853 = vunpack.c.l.b16 %v190
    %v854 = vunpack.c.l.b16 %v191
    %v855 = vunpack.c.l.b16 %v192
    %v856 = vunpack.c.l.b16 %v193
    %v857 = vunpack.c.l.b16 %v194
    %v858 = vunpack.c.l.b16 %v195
    %v859 = vunpack.c.l.b16 %v196
    %v860 = vunpack.c.l.b16 %v197
    %v861 = vunpack.c.l.b16 %v198
    %v862 = vunpack.c.l.b16 %v199
    %v863 = vunpack.c.l.b16 %v200
    %v864 = vunpack.c.l.b16 %v201
    %v865 = vunpack.c.l.b16 %v202
    %v866 = vunpack.c.l.b16 %v203
    %v867 = vunpack.c.l.b16 %v204
    %v868 = vunpack.c.l.b16 %v205
    %v869 = vunpack.c.l.b16 %v206
    %v870 = vunpack.c.l.b16 %v207
    %v871 = vunpack.c.l.b16 %v208
    %v872 = vunpack.c.l.b16 %v209
    %v873 = vunpack.c.l.b16 %v210
    %v874 = vunpack.c.l.b16 %v211
    %v875 = vunpack.c.l.b16 %v212
    %v876 = vunpack.c.l.b16 %v213
    %v877 = vunpack.c.l.b16 %v214
    %v878 = vunpack.c.l.b16 %v215
    %v879 = vunpack.c.l.b16 %v216
    %v880 = vunpack.c.l.b16 %v217
    %v881 = vunpack.c.l.b16 %v218
    %v882 = vunpack.c.l.b16 %v219
    %v883 = vunpack.c.l.b16 %v220
    %v884 = vunpack.c.l.b16 %v221
    %v885 = vunpack.c.l.b16 %v222
    %v886 = vunpack.c.l.b16 %v223
    %v887 = vunpack.c.l.b16 %v224
    %v888 = vunpack.c.l.b16 %v225
    %v889 = vunpack.c.l.b16 %v226
    %v890 = vunpack.c.l.b16 %v227
    %v891 = vunpack.c.l.b16 %v228
    %v892 = vunpack.c.l.b16 %v229
    %v893 = vunpack.c.l.b16 %v230
    %v894 = vunpack.c.l.b16 %v231
    %v895 = vunpack.c.l.b16 %v232
    %v896 = vunpack.c.l.b16 %v233
    %v897 = vunpack.c.l.b16 %v234
    %v898 = vunpack.c.l.b16 %v235
    %v899 = vunpack.c.l.b16 %v236
    %v900 = vunpack.c.l.b16 %v237
    %v901 = vunpack.c.l.b16 %v238
    %v902 = vunpack.c.l.b16 %v239
    %v903 = vpack.c.b16 %v760, %v759
    %v904 = vpack.c.b16 %v762, %v761
    %v905 = vpack.c.b16 %v764, %v763
    %v906 = vpack.c.b16 %v766, %v765
    %v907 = vpack.c.b16 %v768, %v767
    %v908 = vpack.c.b16 %v770, %v769
    %v909 = vpack.c.b16 %v772, %v771
    %v910 = vpack.c.b16 %v774, %v773
    %v911 = vpack.c.b16 %v776, %v775
    %v912 = vpack.c.b16 %v778, %v777
    %v913 = vpack.c.b16 %v780, %v779
    %v914 = vpack.c.b16 %v782, %v781
    %v915 = vpack.c.b16 %v784, %v783
    %v916 = vpack.c.b16 %v786, %v785
    %v917 = vpack.c.b16 %v788, %v787
    %v918 = vpack.c.b16 %v790, %v789
    %v919 = vpack.c.b16 %v792, %v791
    %v920 = vpack.c.b16 %v794, %v793
    %v921 = vpack.c.b16 %v796, %v795
    %v922 = vpack.c.b16 %v798, %v797
    %v923 = vpack.c.b16 %v800, %v799
    %v924 = vpack.c.b16 %v802, %v801
    %v925 = vpack.c.b16 %v804, %v803
    %v926 = vpack.c.b16 %v806, %v805
    %v927 = vpack.c.b16 %v808, %v807
    %v928 = vpack.c.b16 %v810, %v809
    %v929 = vpack.c.b16 %v812, %v811
    %v930 = vpack.c.b16 %v814, %v813
    %v931 = vpack.c.b16 %v816, %v815
    %v932 = vpack.c.b16 %v818, %v817
    %v933 = vpack.c.b16 %v820, %v819
    %v934 = vpack.c.b16 %v822, %v821
    %v935 = vpack.c.b16 %v824, %v823
    %v936 = vpack.c.b16 %v826, %v825
    %v937 = vpack.c.b16 %v828, %v827
    %v938 = vpack.c.b16 %v830, %v829
    %v939 = vpack.c.b16 %v832, %v831
    %v940 = vpack.c.b16 %v834, %v833
    %v941 = vpack.c.b16 %v836, %v835
    %v942 = vpack.c.b16 %v838, %v837
    %v943 = vpack.c.b16 %v840, %v839
    %v944 = vpack.c.b16 %v842, %v841
    %v945 = vpack.c.b16 %v844, %v843
    %v946 = vpack.c.b16 %v846, %v845
    %v947 = vpack.c.b16 %v848, %v847
    %v948 = vpack.c.b16 %v850, %v849
    %v949 = vpack.c.b16 %v852, %v851
    %v950 = vpack.c.b16 %v854, %v853
    %v951 = vpack.c.b16 %v856, %v855
    %v952 = vpack.c.b16 %v858, %v857
    %v953 = vpack.c.b16 %v860, %v859
    %v954 = vpack.c.b16 %v862, %v861
    %v955 = vpack.c.b16 %v864, %v863
    %v956 = vpack.c.b16 %v866, %v865
    %v957 = vpack.c.b16 %v868, %v867
    %v958 = vpack.c.b16 %v870, %v869
    %v959 = vpack.c.b16 %v872, %v871
    %v960 = vpack.c.b16 %v874, %v873
    %v961 = vpack.c.b16 %v876, %v875
    %v962 = vpack.c.b16 %v878, %v877
    %v963 = vpack.c.b16 %v880, %v879
    %v964 = vpack.c.b16 %v882, %v881
    %v965 = vpack.c.b16 %v884, %v883
    %v966 = vpack.c.b16 %v886, %v885
    %v967 = vpack.c.b16 %v888, %v887
    %v968 = vpack.c.b16 %v890, %v889
    %v969 = vpack.c.b16 %v892, %v891
    %v970 = vpack.c.b16 %v894, %v893
    %v971 = vpack.c.b16 %v896, %v895
    %v972 = vpack.c.b16 %v898, %v897
    %v973 = vpack.c.b16 %v900, %v899
    %v974 = vpack.c.b16 %v902, %v901
    %1047 = vmatprep.subr.bf16.mxu0 0
    %1048 = vmatpush1.bf16.msra.mxu0 %v910
    %1049 = vmatprep.subr.bf16.mxu0 0
    %1050 = vmatpush1.bf16.msra.mxu0 %v909
    %1051 = vmatprep.subr.bf16.mxu0 0
    %1052 = vmatpush1.bf16.msra.mxu0 %v908
    %1053 = vmatprep.subr.bf16.mxu0 0
    %1054 = vmatpush1.bf16.msra.mxu0 %v907
    %1055 = vmatprep.subr.bf16.mxu0 0
    %1056 = vmatpush1.bf16.msra.mxu0 %v906
    %1057 = vmatprep.subr.bf16.mxu0 0
    %1058 = vmatpush1.bf16.msra.mxu0 %v905
    %1059 = vmatprep.subr.bf16.mxu0 0
    %1060 = vmatpush1.bf16.msra.mxu0 %v904
    %1061 = vmatprep.subr.bf16.mxu0 0
    %1062 = vmatpush1.bf16.msra.mxu0 %v903
    %1063 = vmatprep.subr.bf16.mxu0 0
    %1064 = vmatpush2.bf16.msra.mxu0 %v918
    %1065 = vmatprep.subr.bf16.mxu0 0
    %1066 = vmatpush2.bf16.msra.mxu0 %v917
    %1067 = vmatprep.subr.bf16.mxu0 0
    %1068 = vmatpush2.bf16.msra.mxu0 %v916
    %1069 = vmatprep.subr.bf16.mxu0 0
    %1070 = vmatpush2.bf16.msra.mxu0 %v915
    %1071 = vmatprep.subr.bf16.mxu0 0
    %1072 = vmatpush2.bf16.msra.mxu0 %v914
    %1073 = vmatprep.subr.bf16.mxu0 0
    %1074 = vmatpush2.bf16.msra.mxu0 %v913
    %1075 = vmatprep.subr.bf16.mxu0 0
    %1076 = vmatpush2.bf16.msra.mxu0 %v912
    %1077 = vmatprep.subr.bf16.mxu0 0
    %1078 = vmatpush2.bf16.msra.mxu0 %v911
    %1079 = vmatprep.mubr.bf16.mxu0 %v472
    %1080 = vmatmul.mubr.bf16.gmra.mxu0 %v471
    %v1081 = vpop.f32.mrf.mxu0
    %v1082 = vadd.f32 %v245, %v1081
    %v1083 = vpop.f32.mrf.mxu0
    %v1084 = vpop.f32.mrf.mxu0
    %v1085 = vadd.f32 %v245, %v1084
    %v1086 = vpop.f32.mrf.mxu0
    %1087 = vmatprep.mubr.bf16.mxu0 %v481
    %1088 = vmatmul.mubr.bf16.gmra.mxu0 %v480
    %v1089 = vpop.f32.mrf.mxu0
    %v1090 = vadd.f32 %v245, %v1089
    %v1091 = vpop.f32.mrf.mxu0
    %v1092 = vpop.f32.mrf.mxu0
    %v1093 = vadd.f32 %v245, %v1092
    %v1094 = vpop.f32.mrf.mxu0
    %1095 = vmatprep.mubr.bf16.mxu0 %v490
    %1096 = vmatmul.mubr.bf16.gmra.mxu0 %v489
    %v1097 = vpop.f32.mrf.mxu0
    %v1098 = vadd.f32 %v245, %v1097
    %v1099 = vpop.f32.mrf.mxu0
    %v1100 = vpop.f32.mrf.mxu0
    %v1101 = vadd.f32 %v245, %v1100
    %v1102 = vpop.f32.mrf.mxu0
    %1103 = vmatprep.mubr.bf16.mxu0 %v499
    %1104 = vmatmul.mubr.bf16.gmra.mxu0 %v498
    %v1105 = vpop.f32.mrf.mxu0
    %v1106 = vadd.f32 %v245, %v1105
    %v1107 = vpop.f32.mrf.mxu0
    %v1108 = vpop.f32.mrf.mxu0
    %v1109 = vadd.f32 %v245, %v1108
    %v1110 = vpop.f32.mrf.mxu0
    %1111 = vmatprep.mubr.bf16.mxu0 %v508
    %1112 = vmatmul.mubr.bf16.gmra.mxu0 %v507
    %v1113 = vpop.f32.mrf.mxu0
    %v1114 = vadd.f32 %v245, %v1113
    %v1115 = vpop.f32.mrf.mxu0
    %v1116 = vpop.f32.mrf.mxu0
    %v1117 = vadd.f32 %v245, %v1116
    %v1118 = vpop.f32.mrf.mxu0
    %1119 = vmatprep.mubr.bf16.mxu0 %v517
    %1120 = vmatmul.mubr.bf16.gmra.mxu0 %v516
    %v1121 = vpop.f32.mrf.mxu0
    %v1122 = vadd.f32 %v245, %v1121
    %v1123 = vpop.f32.mrf.mxu0
    %v1124 = vpop.f32.mrf.mxu0
    %v1125 = vadd.f32 %v245, %v1124
    %v1126 = vpop.f32.mrf.mxu0
    %1127 = vmatprep.mubr.bf16.mxu0 %v526
    %1128 = vmatmul.mubr.bf16.gmra.mxu0 %v525
    %v1129 = vpop.f32.mrf.mxu0
    %v1130 = vadd.f32 %v245, %v1129
    %v1131 = vpop.f32.mrf.mxu0
    %v1132 = vpop.f32.mrf.mxu0
    %v1133 = vadd.f32 %v245, %v1132
    %v1134 = vpop.f32.mrf.mxu0
    %1135 = vmatprep.mubr.bf16.mxu0 %v535
    %1136 = vmatmul.mubr.bf16.gmra.mxu0 %v534
    %v1137 = vpop.f32.mrf.mxu0
    %v1138 = vadd.f32 %v245, %v1137
    %v1139 = vpop.f32.mrf.mxu0
    %v1140 = vpop.f32.mrf.mxu0
    %v1141 = vadd.f32 %v245, %v1140
    %v1142 = vpop.f32.mrf.mxu0
    %1143 = vdwg.mxu0
    %1144 = vmatprep.subr.bf16.mxu0 0
    %1145 = vmatpush1.bf16.msra.mxu0 %v926
    %1146 = vmatprep.subr.bf16.mxu0 0
    %1147 = vmatpush1.bf16.msra.mxu0 %v925
    %1148 = vmatprep.subr.bf16.mxu0 0
    %1149 = vmatpush1.bf16.msra.mxu0 %v924
    %1150 = vmatprep.subr.bf16.mxu0 0
    %1151 = vmatpush1.bf16.msra.mxu0 %v923
    %1152 = vmatprep.subr.bf16.mxu0 0
    %1153 = vmatpush1.bf16.msra.mxu0 %v922
    %1154 = vmatprep.subr.bf16.mxu0 0
    %1155 = vmatpush1.bf16.msra.mxu0 %v921
    %1156 = vmatprep.subr.bf16.mxu0 0
    %1157 = vmatpush1.bf16.msra.mxu0 %v920
    %1158 = vmatprep.subr.bf16.mxu0 0
    %1159 = vmatpush1.bf16.msra.mxu0 %v919
    %1160 = vmatprep.subr.bf16.mxu0 0
    %1161 = vmatpush2.bf16.msra.mxu0 %v934
    %1162 = vmatprep.subr.bf16.mxu0 0
    %1163 = vmatpush2.bf16.msra.mxu0 %v933
    %1164 = vmatprep.subr.bf16.mxu0 0
    %1165 = vmatpush2.bf16.msra.mxu0 %v932
    %1166 = vmatprep.subr.bf16.mxu0 0
    %1167 = vmatpush2.bf16.msra.mxu0 %v931
    %1168 = vmatprep.subr.bf16.mxu0 0
    %1169 = vmatpush2.bf16.msra.mxu0 %v930
    %1170 = vmatprep.subr.bf16.mxu0 0
    %1171 = vmatpush2.bf16.msra.mxu0 %v929
    %1172 = vmatprep.subr.bf16.mxu0 0
    %1173 = vmatpush2.bf16.msra.mxu0 %v928
    %1174 = vmatprep.subr.bf16.mxu0 0
    %1175 = vmatpush2.bf16.msra.mxu0 %v927
    %1176 = vmatprep.mubr.bf16.mxu0 %v474
    %1177 = vmatmul.mubr.bf16.gmra.mxu0 %v473
    %v1178 = vpop.f32.mrf.mxu0
    %v1179 = vadd.f32 %v1082, %v1178
    %v1180 = vpop.f32.mrf.mxu0
    %v1181 = vpop.f32.mrf.mxu0
    %v1182 = vadd.f32 %v1085, %v1181
    %v1183 = vpop.f32.mrf.mxu0
    %1184 = vmatprep.mubr.bf16.mxu0 %v483
    %1185 = vmatmul.mubr.bf16.gmra.mxu0 %v482
    %v1186 = vpop.f32.mrf.mxu0
    %v1187 = vadd.f32 %v1090, %v1186
    %v1188 = vpop.f32.mrf.mxu0
    %v1189 = vpop.f32.mrf.mxu0
    %v1190 = vadd.f32 %v1093, %v1189
    %v1191 = vpop.f32.mrf.mxu0
    %1192 = vmatprep.mubr.bf16.mxu0 %v492
    %1193 = vmatmul.mubr.bf16.gmra.mxu0 %v491
    %v1194 = vpop.f32.mrf.mxu0
    %v1195 = vadd.f32 %v1098, %v1194
    %v1196 = vpop.f32.mrf.mxu0
    %v1197 = vpop.f32.mrf.mxu0
    %v1198 = vadd.f32 %v1101, %v1197
    %v1199 = vpop.f32.mrf.mxu0
    %1200 = vmatprep.mubr.bf16.mxu0 %v501
    %1201 = vmatmul.mubr.bf16.gmra.mxu0 %v500
    %v1202 = vpop.f32.mrf.mxu0
    %v1203 = vadd.f32 %v1106, %v1202
    %v1204 = vpop.f32.mrf.mxu0
    %v1205 = vpop.f32.mrf.mxu0
    %v1206 = vadd.f32 %v1109, %v1205
    %v1207 = vpop.f32.mrf.mxu0
    %1208 = vmatprep.mubr.bf16.mxu0 %v510
    %1209 = vmatmul.mubr.bf16.gmra.mxu0 %v509
    %v1210 = vpop.f32.mrf.mxu0
    %v1211 = vadd.f32 %v1114, %v1210
    %v1212 = vpop.f32.mrf.mxu0
    %v1213 = vpop.f32.mrf.mxu0
    %v1214 = vadd.f32 %v1117, %v1213
    %v1215 = vpop.f32.mrf.mxu0
    %1216 = vmatprep.mubr.bf16.mxu0 %v519
    %1217 = vmatmul.mubr.bf16.gmra.mxu0 %v518
    %v1218 = vpop.f32.mrf.mxu0
    %v1219 = vadd.f32 %v1122, %v1218
    %v1220 = vpop.f32.mrf.mxu0
    %v1221 = vpop.f32.mrf.mxu0
    %v1222 = vadd.f32 %v1125, %v1221
    %v1223 = vpop.f32.mrf.mxu0
    %1224 = vmatprep.mubr.bf16.mxu0 %v528
    %1225 = vmatmul.mubr.bf16.gmra.mxu0 %v527
    %v1226 = vpop.f32.mrf.mxu0
    %v1227 = vadd.f32 %v1130, %v1226
    %v1228 = vpop.f32.mrf.mxu0
    %v1229 = vpop.f32.mrf.mxu0
    %v1230 = vadd.f32 %v1133, %v1229
    %v1231 = vpop.f32.mrf.mxu0
    %1232 = vmatprep.mubr.bf16.mxu0 %v537
    %1233 = vmatmul.mubr.bf16.gmra.mxu0 %v536
    %v1234 = vpop.f32.mrf.mxu0
    %v1235 = vadd.f32 %v1138, %v1234
    %v1236 = vpop.f32.mrf.mxu0
    %v1237 = vpop.f32.mrf.mxu0
    %v1238 = vadd.f32 %v1141, %v1237
    %v1239 = vpop.f32.mrf.mxu0
    %1240 = vdwg.mxu0
    %1241 = vmatprep.subr.bf16.mxu0 0
    %1242 = vmatpush1.bf16.msra.mxu0 %v942
    %1243 = vmatprep.subr.bf16.mxu0 0
    %1244 = vmatpush1.bf16.msra.mxu0 %v941
    %1245 = vmatprep.subr.bf16.mxu0 0
    %1246 = vmatpush1.bf16.msra.mxu0 %v940
    %1247 = vmatprep.subr.bf16.mxu0 0
    %1248 = vmatpush1.bf16.msra.mxu0 %v939
    %1249 = vmatprep.subr.bf16.mxu0 0
    %1250 = vmatpush1.bf16.msra.mxu0 %v938
    %1251 = vmatprep.subr.bf16.mxu0 0
    %1252 = vmatpush1.bf16.msra.mxu0 %v937
    %1253 = vmatprep.subr.bf16.mxu0 0
    %1254 = vmatpush1.bf16.msra.mxu0 %v936
    %1255 = vmatprep.subr.bf16.mxu0 0
    %1256 = vmatpush1.bf16.msra.mxu0 %v935
    %1257 = vmatprep.subr.bf16.mxu0 0
    %1258 = vmatpush2.bf16.msra.mxu0 %v950
    %1259 = vmatprep.subr.bf16.mxu0 0
    %1260 = vmatpush2.bf16.msra.mxu0 %v949
    %1261 = vmatprep.subr.bf16.mxu0 0
    %1262 = vmatpush2.bf16.msra.mxu0 %v948
    %1263 = vmatprep.subr.bf16.mxu0 0
    %1264 = vmatpush2.bf16.msra.mxu0 %v947
    %1265 = vmatprep.subr.bf16.mxu0 0
    %1266 = vmatpush2.bf16.msra.mxu0 %v946
    %1267 = vmatprep.subr.bf16.mxu0 0
    %1268 = vmatpush2.bf16.msra.mxu0 %v945
    %1269 = vmatprep.subr.bf16.mxu0 0
    %1270 = vmatpush2.bf16.msra.mxu0 %v944
    %1271 = vmatprep.subr.bf16.mxu0 0
    %1272 = vmatpush2.bf16.msra.mxu0 %v943
    %1273 = vmatprep.mubr.bf16.mxu0 %v476
    %1274 = vmatmul.mubr.bf16.gmra.mxu0 %v475
    %v1275 = vpop.f32.mrf.mxu0
    %v1276 = vadd.f32 %v1179, %v1275
    %v1277 = vpop.f32.mrf.mxu0
    %v1278 = vpop.f32.mrf.mxu0
    %v1279 = vadd.f32 %v1182, %v1278
    %v1280 = vpop.f32.mrf.mxu0
    %1281 = vmatprep.mubr.bf16.mxu0 %v485
    %1282 = vmatmul.mubr.bf16.gmra.mxu0 %v484
    %v1283 = vpop.f32.mrf.mxu0
    %v1284 = vadd.f32 %v1187, %v1283
    %v1285 = vpop.f32.mrf.mxu0
    %v1286 = vpop.f32.mrf.mxu0
    %v1287 = vadd.f32 %v1190, %v1286
    %v1288 = vpop.f32.mrf.mxu0
    %1289 = vmatprep.mubr.bf16.mxu0 %v494
    %1290 = vmatmul.mubr.bf16.gmra.mxu0 %v493
    %v1291 = vpop.f32.mrf.mxu0
    %v1292 = vadd.f32 %v1195, %v1291
    %v1293 = vpop.f32.mrf.mxu0
    %v1294 = vpop.f32.mrf.mxu0
    %v1295 = vadd.f32 %v1198, %v1294
    %v1296 = vpop.f32.mrf.mxu0
    %1297 = vmatprep.mubr.bf16.mxu0 %v503
    %1298 = vmatmul.mubr.bf16.gmra.mxu0 %v502
    %v1299 = vpop.f32.mrf.mxu0
    %v1300 = vadd.f32 %v1203, %v1299
    %v1301 = vpop.f32.mrf.mxu0
    %v1302 = vpop.f32.mrf.mxu0
    %v1303 = vadd.f32 %v1206, %v1302
    %v1304 = vpop.f32.mrf.mxu0
    %1305 = vmatprep.mubr.bf16.mxu0 %v512
    %1306 = vmatmul.mubr.bf16.gmra.mxu0 %v511
    %v1307 = vpop.f32.mrf.mxu0
    %v1308 = vadd.f32 %v1211, %v1307
    %v1309 = vpop.f32.mrf.mxu0
    %v1310 = vpop.f32.mrf.mxu0
    %v1311 = vadd.f32 %v1214, %v1310
    %v1312 = vpop.f32.mrf.mxu0
    %1313 = vmatprep.mubr.bf16.mxu0 %v521
    %1314 = vmatmul.mubr.bf16.gmra.mxu0 %v520
    %v1315 = vpop.f32.mrf.mxu0
    %v1316 = vadd.f32 %v1219, %v1315
    %v1317 = vpop.f32.mrf.mxu0
    %v1318 = vpop.f32.mrf.mxu0
    %v1319 = vadd.f32 %v1222, %v1318
    %v1320 = vpop.f32.mrf.mxu0
    %1321 = vmatprep.mubr.bf16.mxu0 %v530
    %1322 = vmatmul.mubr.bf16.gmra.mxu0 %v529
    %v1323 = vpop.f32.mrf.mxu0
    %v1324 = vadd.f32 %v1227, %v1323
    %v1325 = vpop.f32.mrf.mxu0
    %v1326 = vpop.f32.mrf.mxu0
    %v1327 = vadd.f32 %v1230, %v1326
    %v1328 = vpop.f32.mrf.mxu0
    %1329 = vmatprep.mubr.bf16.mxu0 %v539
    %1330 = vmatmul.mubr.bf16.gmra.mxu0 %v538
    %v1331 = vpop.f32.mrf.mxu0
    %v1332 = vadd.f32 %v1235, %v1331
    %v1333 = vpop.f32.mrf.mxu0
    %v1334 = vpop.f32.mrf.mxu0
    %v1335 = vadd.f32 %v1238, %v1334
    %v1336 = vpop.f32.mrf.mxu0
    %1337 = vdwg.mxu0
    %1338 = vmatprep.subr.bf16.mxu0 0
    %1339 = vmatpush1.bf16.msra.mxu0 %v958
    %1340 = vmatprep.subr.bf16.mxu0 0
    %1341 = vmatpush1.bf16.msra.mxu0 %v957
    %1342 = vmatprep.subr.bf16.mxu0 0
    %1343 = vmatpush1.bf16.msra.mxu0 %v956
    %1344 = vmatprep.subr.bf16.mxu0 0
    %1345 = vmatpush1.bf16.msra.mxu0 %v955
    %1346 = vmatprep.subr.bf16.mxu0 0
    %1347 = vmatpush1.bf16.msra.mxu0 %v954
    %1348 = vmatprep.subr.bf16.mxu0 0
    %1349 = vmatpush1.bf16.msra.mxu0 %v953
    %1350 = vmatprep.subr.bf16.mxu0 0
    %1351 = vmatpush1.bf16.msra.mxu0 %v952
    %1352 = vmatprep.subr.bf16.mxu0 0
    %1353 = vmatpush1.bf16.msra.mxu0 %v951
    %1354 = vmatprep.subr.bf16.mxu0 0
    %1355 = vmatpush2.bf16.msra.mxu0 %v966
    %1356 = vmatprep.subr.bf16.mxu0 0
    %1357 = vmatpush2.bf16.msra.mxu0 %v965
    %1358 = vmatprep.subr.bf16.mxu0 0
    %1359 = vmatpush2.bf16.msra.mxu0 %v964
    %1360 = vmatprep.subr.bf16.mxu0 0
    %1361 = vmatpush2.bf16.msra.mxu0 %v963
    %1362 = vmatprep.subr.bf16.mxu0 0
    %1363 = vmatpush2.bf16.msra.mxu0 %v962
    %1364 = vmatprep.subr.bf16.mxu0 0
    %1365 = vmatpush2.bf16.msra.mxu0 %v961
    %1366 = vmatprep.subr.bf16.mxu0 0
    %1367 = vmatpush2.bf16.msra.mxu0 %v960
    %1368 = vmatprep.subr.bf16.mxu0 0
    %1369 = vmatpush2.bf16.msra.mxu0 %v959
    %1370 = vmatprep.mubr.bf16.mxu0 %v478
    %1371 = vmatmul.mubr.bf16.gmra.mxu0 %v477
    %v1372 = vpop.f32.mrf.mxu0
    %v1373 = vadd.f32 %v1276, %v1372
    %v1374 = vpop.f32.mrf.mxu0
    %v1375 = vpop.f32.mrf.mxu0
    %v1376 = vadd.f32 %v1279, %v1375
    %v1377 = vpop.f32.mrf.mxu0
    %1378 = vmatprep.mubr.bf16.mxu0 %v487
    %1379 = vmatmul.mubr.bf16.gmra.mxu0 %v486
    %v1380 = vpop.f32.mrf.mxu0
    %v1381 = vadd.f32 %v1284, %v1380
    %v1382 = vpop.f32.mrf.mxu0
    %v1383 = vpop.f32.mrf.mxu0
    %v1384 = vadd.f32 %v1287, %v1383
    %v1385 = vpop.f32.mrf.mxu0
    %1386 = vmatprep.mubr.bf16.mxu0 %v496
    %1387 = vmatmul.mubr.bf16.gmra.mxu0 %v495
    %v1388 = vpop.f32.mrf.mxu0
    %v1389 = vadd.f32 %v1292, %v1388
    %v1390 = vpop.f32.mrf.mxu0
    %v1391 = vpop.f32.mrf.mxu0
    %v1392 = vadd.f32 %v1295, %v1391
    %v1393 = vpop.f32.mrf.mxu0
    %1394 = vmatprep.mubr.bf16.mxu0 %v505
    %1395 = vmatmul.mubr.bf16.gmra.mxu0 %v504
    %v1396 = vpop.f32.mrf.mxu0
    %v1397 = vadd.f32 %v1300, %v1396
    %v1398 = vpop.f32.mrf.mxu0
    %v1399 = vpop.f32.mrf.mxu0
    %v1400 = vadd.f32 %v1303, %v1399
    %v1401 = vpop.f32.mrf.mxu0
    %1402 = vmatprep.mubr.bf16.mxu0 %v514
    %1403 = vmatmul.mubr.bf16.gmra.mxu0 %v513
    %v1404 = vpop.f32.mrf.mxu0
    %v1405 = vadd.f32 %v1308, %v1404
    %v1406 = vpop.f32.mrf.mxu0
    %v1407 = vpop.f32.mrf.mxu0
    %v1408 = vadd.f32 %v1311, %v1407
    %v1409 = vpop.f32.mrf.mxu0
    %1410 = vmatprep.mubr.bf16.mxu0 %v523
    %1411 = vmatmul.mubr.bf16.gmra.mxu0 %v522
    %v1412 = vpop.f32.mrf.mxu0
    %v1413 = vadd.f32 %v1316, %v1412
    %v1414 = vpop.f32.mrf.mxu0
    %v1415 = vpop.f32.mrf.mxu0
    %v1416 = vadd.f32 %v1319, %v1415
    %v1417 = vpop.f32.mrf.mxu0
    %1418 = vmatprep.mubr.bf16.mxu0 %v532
    %1419 = vmatmul.mubr.bf16.gmra.mxu0 %v531
    %v1420 = vpop.f32.mrf.mxu0
    %v1421 = vadd.f32 %v1324, %v1420
    %v1422 = vpop.f32.mrf.mxu0
    %v1423 = vpop.f32.mrf.mxu0
    %v1424 = vadd.f32 %v1327, %v1423
    %v1425 = vpop.f32.mrf.mxu0
    %1426 = vmatprep.mubr.bf16.mxu0 %v541
    %1427 = vmatmul.mubr.bf16.gmra.mxu0 %v540
    %v1428 = vpop.f32.mrf.mxu0
    %v1429 = vadd.f32 %v1332, %v1428
    %v1430 = vpop.f32.mrf.mxu0
    %v1431 = vpop.f32.mrf.mxu0
    %v1432 = vadd.f32 %v1335, %v1431
    %v1433 = vpop.f32.mrf.mxu0
    %1434 = vdwg.mxu0
    %1435 = vmatprep.subr.bf16.mxu0 0
    %1436 = vmatpush1.bf16.msra.mxu0 %v974
    %1437 = vmatprep.subr.bf16.mxu0 0
    %1438 = vmatpush1.bf16.msra.mxu0 %v973
    %1439 = vmatprep.subr.bf16.mxu0 0
    %1440 = vmatpush1.bf16.msra.mxu0 %v972
    %1441 = vmatprep.subr.bf16.mxu0 0
    %1442 = vmatpush1.bf16.msra.mxu0 %v971
    %1443 = vmatprep.subr.bf16.mxu0 0
    %1444 = vmatpush1.bf16.msra.mxu0 %v970
    %1445 = vmatprep.subr.bf16.mxu0 0
    %1446 = vmatpush1.bf16.msra.mxu0 %v969
    %1447 = vmatprep.subr.bf16.mxu0 0
    %1448 = vmatpush1.bf16.msra.mxu0 %v968
    %1449 = vmatprep.subr.bf16.mxu0 0
    %1450 = vmatpush1.bf16.msra.mxu0 %v967
    %1451 = vmatprep.subr.bf16.mxu0 0
    %1452 = vmatpush2.bf16.msra.mxu0 0
    %1453 = vmatprep.subr.bf16.mxu0 0
    %1454 = vmatpush2.bf16.msra.mxu0 0
    %1455 = vmatprep.subr.bf16.mxu0 0
    %1456 = vmatpush2.bf16.msra.mxu0 0
    %1457 = vmatprep.subr.bf16.mxu0 0
    %1458 = vmatpush2.bf16.msra.mxu0 0
    %1459 = vmatprep.subr.bf16.mxu0 0
    %1460 = vmatpush2.bf16.msra.mxu0 0
    %1461 = vmatprep.subr.bf16.mxu0 0
    %1462 = vmatpush2.bf16.msra.mxu0 0
    %1463 = vmatprep.subr.bf16.mxu0 0
    %1464 = vmatpush2.bf16.msra.mxu0 0
    %1465 = vmatprep.subr.bf16.mxu0 0
    %1466 = vmatpush2.bf16.msra.mxu0 0
    %1467 = vmatprep.mubr.bf16.mxu0 0
    %1468 = vmatmul.mubr.bf16.gmra.mxu0 %v479
    %v1469 = vpop.f32.mrf.mxu0
    %v1470 = vadd.f32 %v1373, %v1469
    %v1471 = vpop.f32.mrf.mxu0
    %v1472 = vpop.f32.mrf.mxu0
    %v1473 = vadd.f32 %v1376, %v1472
    %v1474 = vpop.f32.mrf.mxu0
    %1475 = vmatprep.mubr.bf16.mxu0 0
    %1476 = vmatmul.mubr.bf16.gmra.mxu0 %v488
    %v1477 = vpop.f32.mrf.mxu0
    %v1478 = vadd.f32 %v1381, %v1477
    %v1479 = vpop.f32.mrf.mxu0
    %v1480 = vpop.f32.mrf.mxu0
    %v1481 = vadd.f32 %v1384, %v1480
    %v1482 = vpop.f32.mrf.mxu0
    %1483 = vmatprep.mubr.bf16.mxu0 0
    %1484 = vmatmul.mubr.bf16.gmra.mxu0 %v497
    %v1485 = vpop.f32.mrf.mxu0
    %v1486 = vadd.f32 %v1389, %v1485
    %v1487 = vpop.f32.mrf.mxu0
    %v1488 = vpop.f32.mrf.mxu0
    %v1489 = vadd.f32 %v1392, %v1488
    %v1490 = vpop.f32.mrf.mxu0
    %1491 = vmatprep.mubr.bf16.mxu0 0
    %1492 = vmatmul.mubr.bf16.gmra.mxu0 %v506
    %v1493 = vpop.f32.mrf.mxu0
    %v1494 = vadd.f32 %v1397, %v1493
    %v1495 = vpop.f32.mrf.mxu0
    %v1496 = vpop.f32.mrf.mxu0
    %v1497 = vadd.f32 %v1400, %v1496
    %v1498 = vpop.f32.mrf.mxu0
    %1499 = vmatprep.mubr.bf16.mxu0 0
    %1500 = vmatmul.mubr.bf16.gmra.mxu0 %v515
    %v1501 = vpop.f32.mrf.mxu0
    %v1502 = vadd.f32 %v1405, %v1501
    %v1503 = vpop.f32.mrf.mxu0
    %v1504 = vpop.f32.mrf.mxu0
    %v1505 = vadd.f32 %v1408, %v1504
    %v1506 = vpop.f32.mrf.mxu0
    %1507 = vmatprep.mubr.bf16.mxu0 0
    %1508 = vmatmul.mubr.bf16.gmra.mxu0 %v524
    %v1509 = vpop.f32.mrf.mxu0
    %v1510 = vadd.f32 %v1413, %v1509
    %v1511 = vpop.f32.mrf.mxu0
    %v1512 = vpop.f32.mrf.mxu0
    %v1513 = vadd.f32 %v1416, %v1512
    %v1514 = vpop.f32.mrf.mxu0
    %1515 = vmatprep.mubr.bf16.mxu0 0
    %1516 = vmatmul.mubr.bf16.gmra.mxu0 %v533
    %v1517 = vpop.f32.mrf.mxu0
    %v1518 = vadd.f32 %v1421, %v1517
    %v1519 = vpop.f32.mrf.mxu0
    %v1520 = vpop.f32.mrf.mxu0
    %v1521 = vadd.f32 %v1424, %v1520
    %v1522 = vpop.f32.mrf.mxu0
    %1523 = vmatprep.mubr.bf16.mxu0 0
    %1524 = vmatmul.mubr.bf16.gmra.mxu0 %v542
    %v1525 = vpop.f32.mrf.mxu0
    %v1526 = vadd.f32 %v1429, %v1525
    %v1527 = vpop.f32.mrf.mxu0
    %v1528 = vpop.f32.mrf.mxu0
    %v1529 = vadd.f32 %v1432, %v1528
    %v1530 = vpop.f32.mrf.mxu0
    %1531 = vdwg.mxu0
    %v1532 = vmax.f32 %v1470, 0.0
    %v1533 = vmax.f32 %v1473, 0.0
    %v1534 = vmax.f32 %v1478, 0.0
    %v1535 = vmax.f32 %v1481, 0.0
    %v1536 = vmax.f32 %v1486, 0.0
    %v1537 = vmax.f32 %v1489, 0.0
    %v1538 = vmax.f32 %v1494, 0.0
    %v1539 = vmax.f32 %v1497, 0.0
    %v1540 = vmax.f32 %v1502, 0.0
    %v1541 = vmax.f32 %v1505, 0.0
    %v1542 = vmax.f32 %v1510, 0.0
    %v1543 = vmax.f32 %v1513, 0.0
    %v1544 = vmax.f32 %v1518, 0.0
    %v1545 = vmax.f32 %v1521, 0.0
    %v1546 = vmax.f32 %v1526, 0.0
    %v1547 = vmax.f32 %v1529, 0.0
    %1548 = vst [vmem:[#allocation2] sm:$0xff] %v1532
    %1549 = vst [vmem:[#allocation2 + $0x8] sm:$0xff] %v1533
    %1550 = vst [vmem:[#allocation2 + $0x10] sm:$0xff] %v1534
    %1551 = vst [vmem:[#allocation2 + $0x18] sm:$0xff] %v1535
    %1552 = vst [vmem:[#allocation2 + $0x20] sm:$0xff] %v1536
    %1553 = vst [vmem:[#allocation2 + $0x28] sm:$0xff] %v1537
    %1554 = vst [vmem:[#allocation2 + $0x30] sm:$0xff] %v1538
    %1555 = vst [vmem:[#allocation2 + $0x38] sm:$0xff] %v1539
    %1556 = vst [vmem:[#allocation2 + $0x40] sm:$0xff] %v1540
    %1557 = vst [vmem:[#allocation2 + $0x48] sm:$0xff] %v1541
    %1558 = vst [vmem:[#allocation2 + $0x50] sm:$0xff] %v1542
    %1559 = vst [vmem:[#allocation2 + $0x58] sm:$0xff] %v1543
    %1560 = vst [vmem:[#allocation2 + $0x60] sm:$0xff] %v1544
    %1561 = vst [vmem:[#allocation2 + $0x68] sm:$0xff] %v1545
    %1562 = vst [vmem:[#allocation2 + $0x70] sm:$0xff] %v1546
    %1563 = vst [vmem:[#allocation2 + $0x78] sm:$0xff] %v1547
    // Predicated region
    $region14: #{conv_frontend_forward.7} parent=1 // pred_check
      _
    $region15: #{conv_frontend_forward.7} parent=1 // pred_check_branch
      %1565 = sbr.rel (0) target = $region17
    $region16: #{conv_frontend_forward.7} parent=1 // pred_region
      %s1567 = ssub.s32 2048, 2048
      %1568 = vsyncadd [#allocation3], %s1567
      %s1569 = sshll.u32 [#allocation2], 4
      %s1570 = int_to_ptr.vmem [resolvable:$true] %s1569
      %1575 = dma.vmem_to_hbm [thread:$0]  %s1570, 2048, %s3, [#allocation3], 128, 128, 8
    $region17: #{conv_frontend_forward.7} parent=1 // pred_fallthru
      _
    // Predicated region
    $region18: #{conv_frontend_forward.7} parent=1 // pred_check
      _
    $region19: #{conv_frontend_forward.7} parent=1 // pred_check_branch
      %1577 = sbr.rel (0) target = $region21
    $region20: #{conv_frontend_forward.7} parent=1 // pred_region
      %1578 = dma.done [#allocation3], 2048
    $region21: #{conv_frontend_forward.7} parent=1 // pred_fallthru
      _
    %1579 = vsyncpa [#allocation3], 1

// kernel: conv_frontend_forward.6
$region0: #{conv_frontend_forward.6}
  #allocation0 [shape = 'u32[]', space=smem, size = 0x4, offset = 0x4, fixed_abs, tag = 'smem constant byte address 0x4 - core index']
  #allocation1 [shape = 'u32[144,128]{1,0:T(1,128)}', space=vmem, size = 0x12000, scoped, tag = 'internal scratch']
  %s0 = inlined_call_operand.vmem [shape: bf16[128,1152], index: 0, kind: input, shape index: {}]
  %s1 = inlined_call_operand.vmem [shape: bf16[1152,128], index: 1, kind: input, shape index: {}]
  %s2 = inlined_call_operand.vmem [shape: f32[1,128], index: 2, kind: input, shape index: {}]
  %s3 = inlined_call_operand.vmem [shape: bf16[128,128], index: 3, kind: output, shape index: {}]
  %s4 = sld [smem:[#allocation0]]
  $region22: #{conv_frontend_forward.6} parent=0
    _
  %s6 = ssub.s32 1, %s4
  %s7 = scalar_select 0, %s6, %s4
  // Predicated region
  $region2: #{conv_frontend_forward.6} parent=0 // pred_check
    _
  $region3: #{conv_frontend_forward.6} parent=0 // pred_check_branch
    %9 = sbr.rel (0) target = $region5
  $region4: #{conv_frontend_forward.6} parent=0 // pred_region
    _
  $region5: #{conv_frontend_forward.6} parent=0 // pred_fallthru
    _
  // Predicated region
  $region6: #{conv_frontend_forward.6} parent=0 // pred_check
    _
  $region7: #{conv_frontend_forward.6} parent=0 // pred_check_branch
    %11 = sbr.rel (0) target = $region9
  $region8: #{conv_frontend_forward.6} parent=0 // pred_region
    _
  $region9: #{conv_frontend_forward.6} parent=0 // pred_fallthru
    _
  // Predicated region
  $region10: #{conv_frontend_forward.6} parent=0 // pred_check
    _
  $region11: #{conv_frontend_forward.6} parent=0 // pred_check_branch
    %13 = sbr.rel (0) target = $region13
  $region12: #{conv_frontend_forward.6} parent=0 // pred_region
    _
  $region13: #{conv_frontend_forward.6} parent=0 // pred_fallthru
    _
  %v15 = vld [vmem:[%s0] sm:$0xff]
  %v16 = vld [vmem:[%s0 + $0x8] sm:$0xff]
  %v17 = vld [vmem:[%s0 + $0x10] sm:$0xff]
  %v18 = vld [vmem:[%s0 + $0x18] sm:$0xff]
  %v19 = vld [vmem:[%s0 + $0x20] sm:$0xf]
  %v20 = vld [vmem:[%s0 + $0x24] sm:$0xff]
  %v21 = vld [vmem:[%s0 + $0x2c] sm:$0xff]
  %v22 = vld [vmem:[%s0 + $0x34] sm:$0xff]
  %v23 = vld [vmem:[%s0 + $0x3c] sm:$0xff]
  %v24 = vld [vmem:[%s0 + $0x44] sm:$0xf]
  %v25 = vld [vmem:[%s0 + $0x48] sm:$0xff]
  %v26 = vld [vmem:[%s0 + $0x50] sm:$0xff]
  %v27 = vld [vmem:[%s0 + $0x58] sm:$0xff]
  %v28 = vld [vmem:[%s0 + $0x60] sm:$0xff]
  %v29 = vld [vmem:[%s0 + $0x68] sm:$0xf]
  %v30 = vld [vmem:[%s0 + $0x6c] sm:$0xff]
  %v31 = vld [vmem:[%s0 + $0x74] sm:$0xff]
  %v32 = vld [vmem:[%s0 + $0x7c] sm:$0xff]
  %v33 = vld [vmem:[%s0 + $0x84] sm:$0xff]
  %v34 = vld [vmem:[%s0 + $0x8c] sm:$0xf]
  %v35 = vld [vmem:[%s0 + $0x90] sm:$0xff]
  %v36 = vld [vmem:[%s0 + $0x98] sm:$0xff]
  %v37 = vld [vmem:[%s0 + $0xa0] sm:$0xff]
  %v38 = vld [vmem:[%s0 + $0xa8] sm:$0xff]
  %v39 = vld [vmem:[%s0 + $0xb0] sm:$0xf]
  %v40 = vld [vmem:[%s0 + $0xb4] sm:$0xff]
  %v41 = vld [vmem:[%s0 + $0xbc] sm:$0xff]
  %v42 = vld [vmem:[%s0 + $0xc4] sm:$0xff]
  %v43 = vld [vmem:[%s0 + $0xcc] sm:$0xff]
  %v44 = vld [vmem:[%s0 + $0xd4] sm:$0xf]
  %v45 = vld [vmem:[%s0 + $0xd8] sm:$0xff]
  %v46 = vld [vmem:[%s0 + $0xe0] sm:$0xff]
  %v47 = vld [vmem:[%s0 + $0xe8] sm:$0xff]
  %v48 = vld [vmem:[%s0 + $0xf0] sm:$0xff]
  %v49 = vld [vmem:[%s0 + $0xf8] sm:$0xf]
  %v50 = vld [vmem:[%s0 + $0xfc] sm:$0xff]
  %v51 = vld [vmem:[%s0 + $0x104] sm:$0xff]
  %v52 = vld [vmem:[%s0 + $0x10c] sm:$0xff]
  %v53 = vld [vmem:[%s0 + $0x114] sm:$0xff]
  %v54 = vld [vmem:[%s0 + $0x11c] sm:$0xf]
  %v55 = vld [vmem:[%s0 + $0x120] sm:$0xff]
  %v56 = vld [vmem:[%s0 + $0x128] sm:$0xff]
  %v57 = vld [vmem:[%s0 + $0x130] sm:$0xff]
  %v58 = vld [vmem:[%s0 + $0x138] sm:$0xff]
  %v59 = vld [vmem:[%s0 + $0x140] sm:$0xf]
  %v60 = vld [vmem:[%s0 + $0x144] sm:$0xff]
  %v61 = vld [vmem:[%s0 + $0x14c] sm:$0xff]
  %v62 = vld [vmem:[%s0 + $0x154] sm:$0xff]
  %v63 = vld [vmem:[%s0 + $0x15c] sm:$0xff]
  %v64 = vld [vmem:[%s0 + $0x164] sm:$0xf]
  %v65 = vld [vmem:[%s0 + $0x168] sm:$0xff]
  %v66 = vld [vmem:[%s0 + $0x170] sm:$0xff]
  %v67 = vld [vmem:[%s0 + $0x178] sm:$0xff]
  %v68 = vld [vmem:[%s0 + $0x180] sm:$0xff]
  %v69 = vld [vmem:[%s0 + $0x188] sm:$0xf]
  %v70 = vld [vmem:[%s0 + $0x18c] sm:$0xff]
  %v71 = vld [vmem:[%s0 + $0x194] sm:$0xff]
  %v72 = vld [vmem:[%s0 + $0x19c] sm:$0xff]
  %v73 = vld [vmem:[%s0 + $0x1a4] sm:$0xff]
  %v74 = vld [vmem:[%s0 + $0x1ac] sm:$0xf]
  %v75 = vld [vmem:[%s0 + $0x1b0] sm:$0xff]
  %v76 = vld [vmem:[%s0 + $0x1b8] sm:$0xff]
  %v77 = vld [vmem:[%s0 + $0x1c0] sm:$0xff]
  %v78 = vld [vmem:[%s0 + $0x1c8] sm:$0xff]
  %v79 = vld [vmem:[%s0 + $0x1d0] sm:$0xf]
  %v80 = vld [vmem:[%s0 + $0x1d4] sm:$0xff]
  %v81 = vld [vmem:[%s0 + $0x1dc] sm:$0xff]
  %v82 = vld [vmem:[%s0 + $0x1e4] sm:$0xff]
  %v83 = vld [vmem:[%s0 + $0x1ec] sm:$0xff]
  %v84 = vld [vmem:[%s0 + $0x1f4] sm:$0xf]
  %v85 = vld [vmem:[%s0 + $0x1f8] sm:$0xff]
  %v86 = vld [vmem:[%s0 + $0x200] sm:$0xff]
  %v87 = vld [vmem:[%s0 + $0x208] sm:$0xff]
  %v88 = vld [vmem:[%s0 + $0x210] sm:$0xff]
  %v89 = vld [vmem:[%s0 + $0x218] sm:$0xf]
  %v90 = vld [vmem:[%s0 + $0x21c] sm:$0xff]
  %v91 = vld [vmem:[%s0 + $0x224] sm:$0xff]
  %v92 = vld [vmem:[%s0 + $0x22c] sm:$0xff]
  %v93 = vld [vmem:[%s0 + $0x234] sm:$0xff]
  %v94 = vld [vmem:[%s0 + $0x23c] sm:$0xf]
  %v95 = vld [vmem:[%s1] sm:$0xf]
  %v96 = vld [vmem:[%s1 + $0x4] sm:$0xf]
  %v97 = vld [vmem:[%s1 + $0x8] sm:$0xf]
  %v98 = vld [vmem:[%s1 + $0xc] sm:$0xf]
  %v99 = vld [vmem:[%s1 + $0x10] sm:$0xf]
  %v100 = vld [vmem:[%s1 + $0x14] sm:$0xf]
  %v101 = vld [vmem:[%s1 + $0x18] sm:$0xf]
  %v102 = vld [vmem:[%s1 + $0x1c] sm:$0xf]
  %v103 = vld [vmem:[%s1 + $0x20] sm:$0xf]
  %v104 = vld [vmem:[%s1 + $0x24] sm:$0xf]
  %v105 = vld [vmem:[%s1 + $0x28] sm:$0xf]
  %v106 = vld [vmem:[%s1 + $0x2c] sm:$0xf]
  %v107 = vld [vmem:[%s1 + $0x30] sm:$0xf]
  %v108 = vld [vmem:[%s1 + $0x34] sm:$0xf]
  %v109 = vld [vmem:[%s1 + $0x38] sm:$0xf]
  %v110 = vld [vmem:[%s1 + $0x3c] sm:$0xf]
  %v111 = vld [vmem:[%s1 + $0x40] sm:$0xf]
  %v112 = vld [vmem:[%s1 + $0x44] sm:$0xf]
  %v113 = vld [vmem:[%s1 + $0x48] sm:$0xf]
  %v114 = vld [vmem:[%s1 + $0x4c] sm:$0xf]
  %v115 = vld [vmem:[%s1 + $0x50] sm:$0xf]
  %v116 = vld [vmem:[%s1 + $0x54] sm:$0xf]
  %v117 = vld [vmem:[%s1 + $0x58] sm:$0xf]
  %v118 = vld [vmem:[%s1 + $0x5c] sm:$0xf]
  %v119 = vld [vmem:[%s1 + $0x60] sm:$0xf]
  %v120 = vld [vmem:[%s1 + $0x64] sm:$0xf]
  %v121 = vld [vmem:[%s1 + $0x68] sm:$0xf]
  %v122 = vld [vmem:[%s1 + $0x6c] sm:$0xf]
  %v123 = vld [vmem:[%s1 + $0x70] sm:$0xf]
  %v124 = vld [vmem:[%s1 + $0x74] sm:$0xf]
  %v125 = vld [vmem:[%s1 + $0x78] sm:$0xf]
  %v126 = vld [vmem:[%s1 + $0x7c] sm:$0xf]
  %v127 = vld [vmem:[%s1 + $0x80] sm:$0xf]
  %v128 = vld [vmem:[%s1 + $0x84] sm:$0xf]
  %v129 = vld [vmem:[%s1 + $0x88] sm:$0xf]
  %v130 = vld [vmem:[%s1 + $0x8c] sm:$0xf]
  %v131 = vld [vmem:[%s1 + $0x90] sm:$0xf]
  %v132 = vld [vmem:[%s1 + $0x94] sm:$0xf]
  %v133 = vld [vmem:[%s1 + $0x98] sm:$0xf]
  %v134 = vld [vmem:[%s1 + $0x9c] sm:$0xf]
  %v135 = vld [vmem:[%s1 + $0xa0] sm:$0xf]
  %v136 = vld [vmem:[%s1 + $0xa4] sm:$0xf]
  %v137 = vld [vmem:[%s1 + $0xa8] sm:$0xf]
  %v138 = vld [vmem:[%s1 + $0xac] sm:$0xf]
  %v139 = vld [vmem:[%s1 + $0xb0] sm:$0xf]
  %v140 = vld [vmem:[%s1 + $0xb4] sm:$0xf]
  %v141 = vld [vmem:[%s1 + $0xb8] sm:$0xf]
  %v142 = vld [vmem:[%s1 + $0xbc] sm:$0xf]
  %v143 = vld [vmem:[%s1 + $0xc0] sm:$0xf]
  %v144 = vld [vmem:[%s1 + $0xc4] sm:$0xf]
  %v145 = vld [vmem:[%s1 + $0xc8] sm:$0xf]
  %v146 = vld [vmem:[%s1 + $0xcc] sm:$0xf]
  %v147 = vld [vmem:[%s1 + $0xd0] sm:$0xf]
  %v148 = vld [vmem:[%s1 + $0xd4] sm:$0xf]
  %v149 = vld [vmem:[%s1 + $0xd8] sm:$0xf]
  %v150 = vld [vmem:[%s1 + $0xdc] sm:$0xf]
  %v151 = vld [vmem:[%s1 + $0xe0] sm:$0xf]
  %v152 = vld [vmem:[%s1 + $0xe4] sm:$0xf]
  %v153 = vld [vmem:[%s1 + $0xe8] sm:$0xf]
  %v154 = vld [vmem:[%s1 + $0xec] sm:$0xf]
  %v155 = vld [vmem:[%s1 + $0xf0] sm:$0xf]
  %v156 = vld [vmem:[%s1 + $0xf4] sm:$0xf]
  %v157 = vld [vmem:[%s1 + $0xf8] sm:$0xf]
  %v158 = vld [vmem:[%s1 + $0xfc] sm:$0xf]
  %v159 = vld [vmem:[%s1 + $0x100] sm:$0xf]
  %v160 = vld [vmem:[%s1 + $0x104] sm:$0xf]
  %v161 = vld [vmem:[%s1 + $0x108] sm:$0xf]
  %v162 = vld [vmem:[%s1 + $0x10c] sm:$0xf]
  %v163 = vld [vmem:[%s1 + $0x110] sm:$0xf]
  %v164 = vld [vmem:[%s1 + $0x114] sm:$0xf]
  %v165 = vld [vmem:[%s1 + $0x118] sm:$0xf]
  %v166 = vld [vmem:[%s1 + $0x11c] sm:$0xf]
  %v167 = vld [vmem:[%s1 + $0x120] sm:$0xf]
  %v168 = vld [vmem:[%s1 + $0x124] sm:$0xf]
  %v169 = vld [vmem:[%s1 + $0x128] sm:$0xf]
  %v170 = vld [vmem:[%s1 + $0x12c] sm:$0xf]
  %v171 = vld [vmem:[%s1 + $0x130] sm:$0xf]
  %v172 = vld [vmem:[%s1 + $0x134] sm:$0xf]
  %v173 = vld [vmem:[%s1 + $0x138] sm:$0xf]
  %v174 = vld [vmem:[%s1 + $0x13c] sm:$0xf]
  %v175 = vld [vmem:[%s1 + $0x140] sm:$0xf]
  %v176 = vld [vmem:[%s1 + $0x144] sm:$0xf]
  %v177 = vld [vmem:[%s1 + $0x148] sm:$0xf]
  %v178 = vld [vmem:[%s1 + $0x14c] sm:$0xf]
  %v179 = vld [vmem:[%s1 + $0x150] sm:$0xf]
  %v180 = vld [vmem:[%s1 + $0x154] sm:$0xf]
  %v181 = vld [vmem:[%s1 + $0x158] sm:$0xf]
  %v182 = vld [vmem:[%s1 + $0x15c] sm:$0xf]
  %v183 = vld [vmem:[%s1 + $0x160] sm:$0xf]
  %v184 = vld [vmem:[%s1 + $0x164] sm:$0xf]
  %v185 = vld [vmem:[%s1 + $0x168] sm:$0xf]
  %v186 = vld [vmem:[%s1 + $0x16c] sm:$0xf]
  %v187 = vld [vmem:[%s1 + $0x170] sm:$0xf]
  %v188 = vld [vmem:[%s1 + $0x174] sm:$0xf]
  %v189 = vld [vmem:[%s1 + $0x178] sm:$0xf]
  %v190 = vld [vmem:[%s1 + $0x17c] sm:$0xf]
  %v191 = vld [vmem:[%s1 + $0x180] sm:$0xf]
  %v192 = vld [vmem:[%s1 + $0x184] sm:$0xf]
  %v193 = vld [vmem:[%s1 + $0x188] sm:$0xf]
  %v194 = vld [vmem:[%s1 + $0x18c] sm:$0xf]
  %v195 = vld [vmem:[%s1 + $0x190] sm:$0xf]
  %v196 = vld [vmem:[%s1 + $0x194] sm:$0xf]
  %v197 = vld [vmem:[%s1 + $0x198] sm:$0xf]
  %v198 = vld [vmem:[%s1 + $0x19c] sm:$0xf]
  %v199 = vld [vmem:[%s1 + $0x1a0] sm:$0xf]
  %v200 = vld [vmem:[%s1 + $0x1a4] sm:$0xf]
  %v201 = vld [vmem:[%s1 + $0x1a8] sm:$0xf]
  %v202 = vld [vmem:[%s1 + $0x1ac] sm:$0xf]
  %v203 = vld [vmem:[%s1 + $0x1b0] sm:$0xf]
  %v204 = vld [vmem:[%s1 + $0x1b4] sm:$0xf]
  %v205 = vld [vmem:[%s1 + $0x1b8] sm:$0xf]
  %v206 = vld [vmem:[%s1 + $0x1bc] sm:$0xf]
  %v207 = vld [vmem:[%s1 + $0x1c0] sm:$0xf]
  %v208 = vld [vmem:[%s1 + $0x1c4] sm:$0xf]
  %v209 = vld [vmem:[%s1 + $0x1c8] sm:$0xf]
  %v210 = vld [vmem:[%s1 + $0x1cc] sm:$0xf]
  %v211 = vld [vmem:[%s1 + $0x1d0] sm:$0xf]
  %v212 = vld [vmem:[%s1 + $0x1d4] sm:$0xf]
  %v213 = vld [vmem:[%s1 + $0x1d8] sm:$0xf]
  %v214 = vld [vmem:[%s1 + $0x1dc] sm:$0xf]
  %v215 = vld [vmem:[%s1 + $0x1e0] sm:$0xf]
  %v216 = vld [vmem:[%s1 + $0x1e4] sm:$0xf]
  %v217 = vld [vmem:[%s1 + $0x1e8] sm:$0xf]
  %v218 = vld [vmem:[%s1 + $0x1ec] sm:$0xf]
  %v219 = vld [vmem:[%s1 + $0x1f0] sm:$0xf]
  %v220 = vld [vmem:[%s1 + $0x1f4] sm:$0xf]
  %v221 = vld [vmem:[%s1 + $0x1f8] sm:$0xf]
  %v222 = vld [vmem:[%s1 + $0x1fc] sm:$0xf]
  %v223 = vld [vmem:[%s1 + $0x200] sm:$0xf]
  %v224 = vld [vmem:[%s1 + $0x204] sm:$0xf]
  %v225 = vld [vmem:[%s1 + $0x208] sm:$0xf]
  %v226 = vld [vmem:[%s1 + $0x20c] sm:$0xf]
  %v227 = vld [vmem:[%s1 + $0x210] sm:$0xf]
  %v228 = vld [vmem:[%s1 + $0x214] sm:$0xf]
  %v229 = vld [vmem:[%s1 + $0x218] sm:$0xf]
  %v230 = vld [vmem:[%s1 + $0x21c] sm:$0xf]
  %v231 = vld [vmem:[%s1 + $0x220] sm:$0xf]
  %v232 = vld [vmem:[%s1 + $0x224] sm:$0xf]
  %v233 = vld [vmem:[%s1 + $0x228] sm:$0xf]
  %v234 = vld [vmem:[%s1 + $0x22c] sm:$0xf]
  %v235 = vld [vmem:[%s1 + $0x230] sm:$0xf]
  %v236 = vld [vmem:[%s1 + $0x234] sm:$0xf]
  %v237 = vld [vmem:[%s1 + $0x238] sm:$0xf]
  %v238 = vld [vmem:[%s1 + $0x23c] sm:$0xf]
  %v239 = vld [vmem:[%s2] sm:$0x1]
  %v241 = vlaneseq
  %v242 = vshrl.u32 %v241, 7
  %v243 = vsub.s32 0, %v242
  %v244 = vrot.slane %v239, %v243
  %v326 = vunpack.c.l.b16 %v15
  %v327 = vunpack.c.h.b16 %v15
  %v328 = vunpack.c.l.b16 %v16
  %v329 = vunpack.c.h.b16 %v16
  %v330 = vunpack.c.l.b16 %v17
  %v331 = vunpack.c.h.b16 %v17
  %v332 = vunpack.c.l.b16 %v18
  %v333 = vunpack.c.h.b16 %v18
  %v334 = vunpack.c.l.b16 %v19
  %v335 = vunpack.c.l.b16 %v20
  %v336 = vunpack.c.h.b16 %v20
  %v337 = vunpack.c.l.b16 %v21
  %v338 = vunpack.c.h.b16 %v21
  %v339 = vunpack.c.l.b16 %v22
  %v340 = vunpack.c.h.b16 %v22
  %v341 = vunpack.c.l.b16 %v23
  %v342 = vunpack.c.h.b16 %v23
  %v343 = vunpack.c.l.b16 %v24
  %v344 = vunpack.c.l.b16 %v25
  %v345 = vunpack.c.h.b16 %v25
  %v346 = vunpack.c.l.b16 %v26
  %v347 = vunpack.c.h.b16 %v26
  %v348 = vunpack.c.l.b16 %v27
  %v349 = vunpack.c.h.b16 %v27
  %v350 = vunpack.c.l.b16 %v28
  %v351 = vunpack.c.h.b16 %v28
  %v352 = vunpack.c.l.b16 %v29
  %v353 = vunpack.c.l.b16 %v30
  %v354 = vunpack.c.h.b16 %v30
  %v355 = vunpack.c.l.b16 %v31
  %v356 = vunpack.c.h.b16 %v31
  %v357 = vunpack.c.l.b16 %v32
  %v358 = vunpack.c.h.b16 %v32
  %v359 = vunpack.c.l.b16 %v33
  %v360 = vunpack.c.h.b16 %v33
  %v361 = vunpack.c.l.b16 %v34
  %v362 = vunpack.c.l.b16 %v35
  %v363 = vunpack.c.h.b16 %v35
  %v364 = vunpack.c.l.b16 %v36
  %v365 = vunpack.c.h.b16 %v36
  %v366 = vunpack.c.l.b16 %v37
  %v367 = vunpack.c.h.b16 %v37
  %v368 = vunpack.c.l.b16 %v38
  %v369 = vunpack.c.h.b16 %v38
  %v370 = vunpack.c.l.b16 %v39
  %v371 = vunpack.c.l.b16 %v40
  %v372 = vunpack.c.h.b16 %v40
  %v373 = vunpack.c.l.b16 %v41
  %v374 = vunpack.c.h.b16 %v41
  %v375 = vunpack.c.l.b16 %v42
  %v376 = vunpack.c.h.b16 %v42
  %v377 = vunpack.c.l.b16 %v43
  %v378 = vunpack.c.h.b16 %v43
  %v379 = vunpack.c.l.b16 %v44
  %v380 = vunpack.c.l.b16 %v45
  %v381 = vunpack.c.h.b16 %v45
  %v382 = vunpack.c.l.b16 %v46
  %v383 = vunpack.c.h.b16 %v46
  %v384 = vunpack.c.l.b16 %v47
  %v385 = vunpack.c.h.b16 %v47
  %v386 = vunpack.c.l.b16 %v48
  %v387 = vunpack.c.h.b16 %v48
  %v388 = vunpack.c.l.b16 %v49
  %v389 = vunpack.c.l.b16 %v50
  %v390 = vunpack.c.h.b16 %v50
  %v391 = vunpack.c.l.b16 %v51
  %v392 = vunpack.c.h.b16 %v51
  %v393 = vunpack.c.l.b16 %v52
  %v394 = vunpack.c.h.b16 %v52
  %v395 = vunpack.c.l.b16 %v53
  %v396 = vunpack.c.h.b16 %v53
  %v397 = vunpack.c.l.b16 %v54
  %v398 = vunpack.c.l.b16 %v55
  %v399 = vunpack.c.h.b16 %v55
  %v400 = vunpack.c.l.b16 %v56
  %v401 = vunpack.c.h.b16 %v56
  %v402 = vunpack.c.l.b16 %v57
  %v403 = vunpack.c.h.b16 %v57
  %v404 = vunpack.c.l.b16 %v58
  %v405 = vunpack.c.h.b16 %v58
  %v406 = vunpack.c.l.b16 %v59
  %v407 = vunpack.c.l.b16 %v60
  %v408 = vunpack.c.h.b16 %v60
  %v409 = vunpack.c.l.b16 %v61
  %v410 = vunpack.c.h.b16 %v61
  %v411 = vunpack.c.l.b16 %v62
  %v412 = vunpack.c.h.b16 %v62
  %v413 = vunpack.c.l.b16 %v63
  %v414 = vunpack.c.h.b16 %v63
  %v415 = vunpack.c.l.b16 %v64
  %v416 = vunpack.c.l.b16 %v65
  %v417 = vunpack.c.h.b16 %v65
  %v418 = vunpack.c.l.b16 %v66
  %v419 = vunpack.c.h.b16 %v66
  %v420 = vunpack.c.l.b16 %v67
  %v421 = vunpack.c.h.b16 %v67
  %v422 = vunpack.c.l.b16 %v68
  %v423 = vunpack.c.h.b16 %v68
  %v424 = vunpack.c.l.b16 %v69
  %v425 = vunpack.c.l.b16 %v70
  %v426 = vunpack.c.h.b16 %v70
  %v427 = vunpack.c.l.b16 %v71
  %v428 = vunpack.c.h.b16 %v71
  %v429 = vunpack.c.l.b16 %v72
  %v430 = vunpack.c.h.b16 %v72
  %v431 = vunpack.c.l.b16 %v73
  %v432 = vunpack.c.h.b16 %v73
  %v433 = vunpack.c.l.b16 %v74
  %v434 = vunpack.c.l.b16 %v75
  %v435 = vunpack.c.h.b16 %v75
  %v436 = vunpack.c.l.b16 %v76
  %v437 = vunpack.c.h.b16 %v76
  %v438 = vunpack.c.l.b16 %v77
  %v439 = vunpack.c.h.b16 %v77
  %v440 = vunpack.c.l.b16 %v78
  %v441 = vunpack.c.h.b16 %v78
  %v442 = vunpack.c.l.b16 %v79
  %v443 = vunpack.c.l.b16 %v80
  %v444 = vunpack.c.h.b16 %v80
  %v445 = vunpack.c.l.b16 %v81
  %v446 = vunpack.c.h.b16 %v81
  %v447 = vunpack.c.l.b16 %v82
  %v448 = vunpack.c.h.b16 %v82
  %v449 = vunpack.c.l.b16 %v83
  %v450 = vunpack.c.h.b16 %v83
  %v451 = vunpack.c.l.b16 %v84
  %v452 = vunpack.c.l.b16 %v85
  %v453 = vunpack.c.h.b16 %v85
  %v454 = vunpack.c.l.b16 %v86
  %v455 = vunpack.c.h.b16 %v86
  %v456 = vunpack.c.l.b16 %v87
  %v457 = vunpack.c.h.b16 %v87
  %v458 = vunpack.c.l.b16 %v88
  %v459 = vunpack.c.h.b16 %v88
  %v460 = vunpack.c.l.b16 %v89
  %v461 = vunpack.c.l.b16 %v90
  %v462 = vunpack.c.h.b16 %v90
  %v463 = vunpack.c.l.b16 %v91
  %v464 = vunpack.c.h.b16 %v91
  %v465 = vunpack.c.l.b16 %v92
  %v466 = vunpack.c.h.b16 %v92
  %v467 = vunpack.c.l.b16 %v93
  %v468 = vunpack.c.h.b16 %v93
  %v469 = vunpack.c.l.b16 %v94
  %v470 = vpack.c.b16 %v335, %v326
  %v471 = vpack.c.b16 %v336, %v327
  %v472 = vpack.c.b16 %v337, %v328
  %v473 = vpack.c.b16 %v338, %v329
  %v474 = vpack.c.b16 %v339, %v330
  %v475 = vpack.c.b16 %v340, %v331
  %v476 = vpack.c.b16 %v341, %v332
  %v477 = vpack.c.b16 %v342, %v333
  %v478 = vpack.c.b16 %v343, %v334
  %v479 = vpack.c.b16 %v353, %v344
  %v480 = vpack.c.b16 %v354, %v345
  %v481 = vpack.c.b16 %v355, %v346
  %v482 = vpack.c.b16 %v356, %v347
  %v483 = vpack.c.b16 %v357, %v348
  %v484 = vpack.c.b16 %v358, %v349
  %v485 = vpack.c.b16 %v359, %v350
  %v486 = vpack.c.b16 %v360, %v351
  %v487 = vpack.c.b16 %v361, %v352
  %v488 = vpack.c.b16 %v371, %v362
  %v489 = vpack.c.b16 %v372, %v363
  %v490 = vpack.c.b16 %v373, %v364
  %v491 = vpack.c.b16 %v374, %v365
  %v492 = vpack.c.b16 %v375, %v366
  %v493 = vpack.c.b16 %v376, %v367
  %v494 = vpack.c.b16 %v377, %v368
  %v495 = vpack.c.b16 %v378, %v369
  %v496 = vpack.c.b16 %v379, %v370
  %v497 = vpack.c.b16 %v389, %v380
  %v498 = vpack.c.b16 %v390, %v381
  %v499 = vpack.c.b16 %v391, %v382
  %v500 = vpack.c.b16 %v392, %v383
  %v501 = vpack.c.b16 %v393, %v384
  %v502 = vpack.c.b16 %v394, %v385
  %v503 = vpack.c.b16 %v395, %v386
  %v504 = vpack.c.b16 %v396, %v387
  %v505 = vpack.c.b16 %v397, %v388
  %v506 = vpack.c.b16 %v407, %v398
  %v507 = vpack.c.b16 %v408, %v399
  %v508 = vpack.c.b16 %v409, %v400
  %v509 = vpack.c.b16 %v410, %v401
  %v510 = vpack.c.b16 %v411, %v402
  %v511 = vpack.c.b16 %v412, %v403
  %v512 = vpack.c.b16 %v413, %v404
  %v513 = vpack.c.b16 %v414, %v405
  %v514 = vpack.c.b16 %v415, %v406
  %v515 = vpack.c.b16 %v425, %v416
  %v516 = vpack.c.b16 %v426, %v417
  %v517 = vpack.c.b16 %v427, %v418
  %v518 = vpack.c.b16 %v428, %v419
  %v519 = vpack.c.b16 %v429, %v420
  %v520 = vpack.c.b16 %v430, %v421
  %v521 = vpack.c.b16 %v431, %v422
  %v522 = vpack.c.b16 %v432, %v423
  %v523 = vpack.c.b16 %v433, %v424
  %v524 = vpack.c.b16 %v443, %v434
  %v525 = vpack.c.b16 %v444, %v435
  %v526 = vpack.c.b16 %v445, %v436
  %v527 = vpack.c.b16 %v446, %v437
  %v528 = vpack.c.b16 %v447, %v438
  %v529 = vpack.c.b16 %v448, %v439
  %v530 = vpack.c.b16 %v449, %v440
  %v531 = vpack.c.b16 %v450, %v441
  %v532 = vpack.c.b16 %v451, %v442
  %v533 = vpack.c.b16 %v461, %v452
  %v534 = vpack.c.b16 %v462, %v453
  %v535 = vpack.c.b16 %v463, %v454
  %v536 = vpack.c.b16 %v464, %v455
  %v537 = vpack.c.b16 %v465, %v456
  %v538 = vpack.c.b16 %v466, %v457
  %v539 = vpack.c.b16 %v467, %v458
  %v540 = vpack.c.b16 %v468, %v459
  %v541 = vpack.c.b16 %v469, %v460
  %v758 = vunpack.c.l.b16 %v95
  %v759 = vunpack.c.l.b16 %v96
  %v760 = vunpack.c.l.b16 %v97
  %v761 = vunpack.c.l.b16 %v98
  %v762 = vunpack.c.l.b16 %v99
  %v763 = vunpack.c.l.b16 %v100
  %v764 = vunpack.c.l.b16 %v101
  %v765 = vunpack.c.l.b16 %v102
  %v766 = vunpack.c.l.b16 %v103
  %v767 = vunpack.c.l.b16 %v104
  %v768 = vunpack.c.l.b16 %v105
  %v769 = vunpack.c.l.b16 %v106
  %v770 = vunpack.c.l.b16 %v107
  %v771 = vunpack.c.l.b16 %v108
  %v772 = vunpack.c.l.b16 %v109
  %v773 = vunpack.c.l.b16 %v110
  %v774 = vunpack.c.l.b16 %v111
  %v775 = vunpack.c.l.b16 %v112
  %v776 = vunpack.c.l.b16 %v113
  %v777 = vunpack.c.l.b16 %v114
  %v778 = vunpack.c.l.b16 %v115
  %v779 = vunpack.c.l.b16 %v116
  %v780 = vunpack.c.l.b16 %v117
  %v781 = vunpack.c.l.b16 %v118
  %v782 = vunpack.c.l.b16 %v119
  %v783 = vunpack.c.l.b16 %v120
  %v784 = vunpack.c.l.b16 %v121
  %v785 = vunpack.c.l.b16 %v122
  %v786 = vunpack.c.l.b16 %v123
  %v787 = vunpack.c.l.b16 %v124
  %v788 = vunpack.c.l.b16 %v125
  %v789 = vunpack.c.l.b16 %v126
  %v790 = vunpack.c.l.b16 %v127
  %v791 = vunpack.c.l.b16 %v128
  %v792 = vunpack.c.l.b16 %v129
  %v793 = vunpack.c.l.b16 %v130
  %v794 = vunpack.c.l.b16 %v131
  %v795 = vunpack.c.l.b16 %v132
  %v796 = vunpack.c.l.b16 %v133
  %v797 = vunpack.c.l.b16 %v134
  %v798 = vunpack.c.l.b16 %v135
  %v799 = vunpack.c.l.b16 %v136
  %v800 = vunpack.c.l.b16 %v137
  %v801 = vunpack.c.l.b16 %v138
  %v802 = vunpack.c.l.b16 %v139
  %v803 = vunpack.c.l.b16 %v140
  %v804 = vunpack.c.l.b16 %v141
  %v805 = vunpack.c.l.b16 %v142
  %v806 = vunpack.c.l.b16 %v143
  %v807 = vunpack.c.l.b16 %v144
  %v808 = vunpack.c.l.b16 %v145
  %v809 = vunpack.c.l.b16 %v146
  %v810 = vunpack.c.l.b16 %v147
  %v811 = vunpack.c.l.b16 %v148
  %v812 = vunpack.c.l.b16 %v149
  %v813 = vunpack.c.l.b16 %v150
  %v814 = vunpack.c.l.b16 %v151
  %v815 = vunpack.c.l.b16 %v152
  %v816 = vunpack.c.l.b16 %v153
  %v817 = vunpack.c.l.b16 %v154
  %v818 = vunpack.c.l.b16 %v155
  %v819 = vunpack.c.l.b16 %v156
  %v820 = vunpack.c.l.b16 %v157
  %v821 = vunpack.c.l.b16 %v158
  %v822 = vunpack.c.l.b16 %v159
  %v823 = vunpack.c.l.b16 %v160
  %v824 = vunpack.c.l.b16 %v161
  %v825 = vunpack.c.l.b16 %v162
  %v826 = vunpack.c.l.b16 %v163
  %v827 = vunpack.c.l.b16 %v164
  %v828 = vunpack.c.l.b16 %v165
  %v829 = vunpack.c.l.b16 %v166
  %v830 = vunpack.c.l.b16 %v167
  %v831 = vunpack.c.l.b16 %v168
  %v832 = vunpack.c.l.b16 %v169
  %v833 = vunpack.c.l.b16 %v170
  %v834 = vunpack.c.l.b16 %v171
  %v835 = vunpack.c.l.b16 %v172
  %v836 = vunpack.c.l.b16 %v173
  %v837 = vunpack.c.l.b16 %v174
  %v838 = vunpack.c.l.b16 %v175
  %v839 = vunpack.c.l.b16 %v176
  %v840 = vunpack.c.l.b16 %v177
  %v841 = vunpack.c.l.b16 %v178
  %v842 = vunpack.c.l.b16 %v179
  %v843 = vunpack.c.l.b16 %v180
  %v844 = vunpack.c.l.b16 %v181
  %v845 = vunpack.c.l.b16 %v182
  %v846 = vunpack.c.l.b16 %v183
  %v847 = vunpack.c.l.b16 %v184
  %v848 = vunpack.c.l.b16 %v185
  %v849 = vunpack.c.l.b16 %v186
  %v850 = vunpack.c.l.b16 %v187
  %v851 = vunpack.c.l.b16 %v188
  %v852 = vunpack.c.l.b16 %v189
  %v853 = vunpack.c.l.b16 %v190
  %v854 = vunpack.c.l.b16 %v191
  %v855 = vunpack.c.l.b16 %v192
  %v856 = vunpack.c.l.b16 %v193
  %v857 = vunpack.c.l.b16 %v194
  %v858 = vunpack.c.l.b16 %v195
  %v859 = vunpack.c.l.b16 %v196
  %v860 = vunpack.c.l.b16 %v197
  %v861 = vunpack.c.l.b16 %v198
  %v862 = vunpack.c.l.b16 %v199
  %v863 = vunpack.c.l.b16 %v200
  %v864 = vunpack.c.l.b16 %v201
  %v865 = vunpack.c.l.b16 %v202
  %v866 = vunpack.c.l.b16 %v203
  %v867 = vunpack.c.l.b16 %v204
  %v868 = vunpack.c.l.b16 %v205
  %v869 = vunpack.c.l.b16 %v206
  %v870 = vunpack.c.l.b16 %v207
  %v871 = vunpack.c.l.b16 %v208
  %v872 = vunpack.c.l.b16 %v209
  %v873 = vunpack.c.l.b16 %v210
  %v874 = vunpack.c.l.b16 %v211
  %v875 = vunpack.c.l.b16 %v212
  %v876 = vunpack.c.l.b16 %v213
  %v877 = vunpack.c.l.b16 %v214
  %v878 = vunpack.c.l.b16 %v215
  %v879 = vunpack.c.l.b16 %v216
  %v880 = vunpack.c.l.b16 %v217
  %v881 = vunpack.c.l.b16 %v218
  %v882 = vunpack.c.l.b16 %v219
  %v883 = vunpack.c.l.b16 %v220
  %v884 = vunpack.c.l.b16 %v221
  %v885 = vunpack.c.l.b16 %v222
  %v886 = vunpack.c.l.b16 %v223
  %v887 = vunpack.c.l.b16 %v224
  %v888 = vunpack.c.l.b16 %v225
  %v889 = vunpack.c.l.b16 %v226
  %v890 = vunpack.c.l.b16 %v227
  %v891 = vunpack.c.l.b16 %v228
  %v892 = vunpack.c.l.b16 %v229
  %v893 = vunpack.c.l.b16 %v230
  %v894 = vunpack.c.l.b16 %v231
  %v895 = vunpack.c.l.b16 %v232
  %v896 = vunpack.c.l.b16 %v233
  %v897 = vunpack.c.l.b16 %v234
  %v898 = vunpack.c.l.b16 %v235
  %v899 = vunpack.c.l.b16 %v236
  %v900 = vunpack.c.l.b16 %v237
  %v901 = vunpack.c.l.b16 %v238
  %v902 = vpack.c.b16 %v759, %v758
  %v903 = vpack.c.b16 %v761, %v760
  %v904 = vpack.c.b16 %v763, %v762
  %v905 = vpack.c.b16 %v765, %v764
  %v906 = vpack.c.b16 %v767, %v766
  %v907 = vpack.c.b16 %v769, %v768
  %v908 = vpack.c.b16 %v771, %v770
  %v909 = vpack.c.b16 %v773, %v772
  %v910 = vpack.c.b16 %v775, %v774
  %v911 = vpack.c.b16 %v777, %v776
  %v912 = vpack.c.b16 %v779, %v778
  %v913 = vpack.c.b16 %v781, %v780
  %v914 = vpack.c.b16 %v783, %v782
  %v915 = vpack.c.b16 %v785, %v784
  %v916 = vpack.c.b16 %v787, %v786
  %v917 = vpack.c.b16 %v789, %v788
  %v918 = vpack.c.b16 %v791, %v790
  %v919 = vpack.c.b16 %v793, %v792
  %v920 = vpack.c.b16 %v795, %v794
  %v921 = vpack.c.b16 %v797, %v796
  %v922 = vpack.c.b16 %v799, %v798
  %v923 = vpack.c.b16 %v801, %v800
  %v924 = vpack.c.b16 %v803, %v802
  %v925 = vpack.c.b16 %v805, %v804
  %v926 = vpack.c.b16 %v807, %v806
  %v927 = vpack.c.b16 %v809, %v808
  %v928 = vpack.c.b16 %v811, %v810
  %v929 = vpack.c.b16 %v813, %v812
  %v930 = vpack.c.b16 %v815, %v814
  %v931 = vpack.c.b16 %v817, %v816
  %v932 = vpack.c.b16 %v819, %v818
  %v933 = vpack.c.b16 %v821, %v820
  %v934 = vpack.c.b16 %v823, %v822
  %v935 = vpack.c.b16 %v825, %v824
  %v936 = vpack.c.b16 %v827, %v826
  %v937 = vpack.c.b16 %v829, %v828
  %v938 = vpack.c.b16 %v831, %v830
  %v939 = vpack.c.b16 %v833, %v832
  %v940 = vpack.c.b16 %v835, %v834
  %v941 = vpack.c.b16 %v837, %v836
  %v942 = vpack.c.b16 %v839, %v838
  %v943 = vpack.c.b16 %v841, %v840
  %v944 = vpack.c.b16 %v843, %v842
  %v945 = vpack.c.b16 %v845, %v844
  %v946 = vpack.c.b16 %v847, %v846
  %v947 = vpack.c.b16 %v849, %v848
  %v948 = vpack.c.b16 %v851, %v850
  %v949 = vpack.c.b16 %v853, %v852
  %v950 = vpack.c.b16 %v855, %v854
  %v951 = vpack.c.b16 %v857, %v856
  %v952 = vpack.c.b16 %v859, %v858
  %v953 = vpack.c.b16 %v861, %v860
  %v954 = vpack.c.b16 %v863, %v862
  %v955 = vpack.c.b16 %v865, %v864
  %v956 = vpack.c.b16 %v867, %v866
  %v957 = vpack.c.b16 %v869, %v868
  %v958 = vpack.c.b16 %v871, %v870
  %v959 = vpack.c.b16 %v873, %v872
  %v960 = vpack.c.b16 %v875, %v874
  %v961 = vpack.c.b16 %v877, %v876
  %v962 = vpack.c.b16 %v879, %v878
  %v963 = vpack.c.b16 %v881, %v880
  %v964 = vpack.c.b16 %v883, %v882
  %v965 = vpack.c.b16 %v885, %v884
  %v966 = vpack.c.b16 %v887, %v886
  %v967 = vpack.c.b16 %v889, %v888
  %v968 = vpack.c.b16 %v891, %v890
  %v969 = vpack.c.b16 %v893, %v892
  %v970 = vpack.c.b16 %v895, %v894
  %v971 = vpack.c.b16 %v897, %v896
  %v972 = vpack.c.b16 %v899, %v898
  %v973 = vpack.c.b16 %v901, %v900
  %1046 = vmatprep.subr.bf16.mxu0 0
  %1047 = vmatpush1.bf16.msra.mxu0 %v909
  %1048 = vmatprep.subr.bf16.mxu0 0
  %1049 = vmatpush1.bf16.msra.mxu0 %v908
  %1050 = vmatprep.subr.bf16.mxu0 0
  %1051 = vmatpush1.bf16.msra.mxu0 %v907
  %1052 = vmatprep.subr.bf16.mxu0 0
  %1053 = vmatpush1.bf16.msra.mxu0 %v906
  %1054 = vmatprep.subr.bf16.mxu0 0
  %1055 = vmatpush1.bf16.msra.mxu0 %v905
  %1056 = vmatprep.subr.bf16.mxu0 0
  %1057 = vmatpush1.bf16.msra.mxu0 %v904
  %1058 = vmatprep.subr.bf16.mxu0 0
  %1059 = vmatpush1.bf16.msra.mxu0 %v903
  %1060 = vmatprep.subr.bf16.mxu0 0
  %1061 = vmatpush1.bf16.msra.mxu0 %v902
  %1062 = vmatprep.subr.bf16.mxu0 0
  %1063 = vmatpush2.bf16.msra.mxu0 %v917
  %1064 = vmatprep.subr.bf16.mxu0 0
  %1065 = vmatpush2.bf16.msra.mxu0 %v916
  %1066 = vmatprep.subr.bf16.mxu0 0
  %1067 = vmatpush2.bf16.msra.mxu0 %v915
  %1068 = vmatprep.subr.bf16.mxu0 0
  %1069 = vmatpush2.bf16.msra.mxu0 %v914
  %1070 = vmatprep.subr.bf16.mxu0 0
  %1071 = vmatpush2.bf16.msra.mxu0 %v913
  %1072 = vmatprep.subr.bf16.mxu0 0
  %1073 = vmatpush2.bf16.msra.mxu0 %v912
  %1074 = vmatprep.subr.bf16.mxu0 0
  %1075 = vmatpush2.bf16.msra.mxu0 %v911
  %1076 = vmatprep.subr.bf16.mxu0 0
  %1077 = vmatpush2.bf16.msra.mxu0 %v910
  %1078 = vmatprep.mubr.bf16.mxu0 %v471
  %1079 = vmatmul.mubr.bf16.gmra.mxu0 %v470
  %v1080 = vpop.f32.mrf.mxu0
  %v1081 = vadd.f32 %v244, %v1080
  %v1082 = vpop.f32.mrf.mxu0
  %v1083 = vpop.f32.mrf.mxu0
  %v1084 = vadd.f32 %v244, %v1083
  %v1085 = vpop.f32.mrf.mxu0
  %1086 = vmatprep.mubr.bf16.mxu0 %v480
  %1087 = vmatmul.mubr.bf16.gmra.mxu0 %v479
  %v1088 = vpop.f32.mrf.mxu0
  %v1089 = vadd.f32 %v244, %v1088
  %v1090 = vpop.f32.mrf.mxu0
  %v1091 = vpop.f32.mrf.mxu0
  %v1092 = vadd.f32 %v244, %v1091
  %v1093 = vpop.f32.mrf.mxu0
  %1094 = vmatprep.mubr.bf16.mxu0 %v489
  %1095 = vmatmul.mubr.bf16.gmra.mxu0 %v488
  %v1096 = vpop.f32.mrf.mxu0
  %v1097 = vadd.f32 %v244, %v1096
  %v1098 = vpop.f32.mrf.mxu0
  %v1099 = vpop.f32.mrf.mxu0
  %v1100 = vadd.f32 %v244, %v1099
  %v1101 = vpop.f32.mrf.mxu0
  %1102 = vmatprep.mubr.bf16.mxu0 %v498
  %1103 = vmatmul.mubr.bf16.gmra.mxu0 %v497
  %v1104 = vpop.f32.mrf.mxu0
  %v1105 = vadd.f32 %v244, %v1104
  %v1106 = vpop.f32.mrf.mxu0
  %v1107 = vpop.f32.mrf.mxu0
  %v1108 = vadd.f32 %v244, %v1107
  %v1109 = vpop.f32.mrf.mxu0
  %1110 = vmatprep.mubr.bf16.mxu0 %v507
  %1111 = vmatmul.mubr.bf16.gmra.mxu0 %v506
  %v1112 = vpop.f32.mrf.mxu0
  %v1113 = vadd.f32 %v244, %v1112
  %v1114 = vpop.f32.mrf.mxu0
  %v1115 = vpop.f32.mrf.mxu0
  %v1116 = vadd.f32 %v244, %v1115
  %v1117 = vpop.f32.mrf.mxu0
  %1118 = vmatprep.mubr.bf16.mxu0 %v516
  %1119 = vmatmul.mubr.bf16.gmra.mxu0 %v515
  %v1120 = vpop.f32.mrf.mxu0
  %v1121 = vadd.f32 %v244, %v1120
  %v1122 = vpop.f32.mrf.mxu0
  %v1123 = vpop.f32.mrf.mxu0
  %v1124 = vadd.f32 %v244, %v1123
  %v1125 = vpop.f32.mrf.mxu0
  %1126 = vmatprep.mubr.bf16.mxu0 %v525
  %1127 = vmatmul.mubr.bf16.gmra.mxu0 %v524
  %v1128 = vpop.f32.mrf.mxu0
  %v1129 = vadd.f32 %v244, %v1128
  %v1130 = vpop.f32.mrf.mxu0
  %v1131 = vpop.f32.mrf.mxu0
  %v1132 = vadd.f32 %v244, %v1131
  %v1133 = vpop.f32.mrf.mxu0
  %1134 = vmatprep.mubr.bf16.mxu0 %v534
  %1135 = vmatmul.mubr.bf16.gmra.mxu0 %v533
  %v1136 = vpop.f32.mrf.mxu0
  %v1137 = vadd.f32 %v244, %v1136
  %v1138 = vpop.f32.mrf.mxu0
  %v1139 = vpop.f32.mrf.mxu0
  %v1140 = vadd.f32 %v244, %v1139
  %v1141 = vpop.f32.mrf.mxu0
  %1142 = vdwg.mxu0
  %1143 = vmatprep.subr.bf16.mxu0 0
  %1144 = vmatpush1.bf16.msra.mxu0 %v925
  %1145 = vmatprep.subr.bf16.mxu0 0
  %1146 = vmatpush1.bf16.msra.mxu0 %v924
  %1147 = vmatprep.subr.bf16.mxu0 0
  %1148 = vmatpush1.bf16.msra.mxu0 %v923
  %1149 = vmatprep.subr.bf16.mxu0 0
  %1150 = vmatpush1.bf16.msra.mxu0 %v922
  %1151 = vmatprep.subr.bf16.mxu0 0
  %1152 = vmatpush1.bf16.msra.mxu0 %v921
  %1153 = vmatprep.subr.bf16.mxu0 0
  %1154 = vmatpush1.bf16.msra.mxu0 %v920
  %1155 = vmatprep.subr.bf16.mxu0 0
  %1156 = vmatpush1.bf16.msra.mxu0 %v919
  %1157 = vmatprep.subr.bf16.mxu0 0
  %1158 = vmatpush1.bf16.msra.mxu0 %v918
  %1159 = vmatprep.subr.bf16.mxu0 0
  %1160 = vmatpush2.bf16.msra.mxu0 %v933
  %1161 = vmatprep.subr.bf16.mxu0 0
  %1162 = vmatpush2.bf16.msra.mxu0 %v932
  %1163 = vmatprep.subr.bf16.mxu0 0
  %1164 = vmatpush2.bf16.msra.mxu0 %v931
  %1165 = vmatprep.subr.bf16.mxu0 0
  %1166 = vmatpush2.bf16.msra.mxu0 %v930
  %1167 = vmatprep.subr.bf16.mxu0 0
  %1168 = vmatpush2.bf16.msra.mxu0 %v929
  %1169 = vmatprep.subr.bf16.mxu0 0
  %1170 = vmatpush2.bf16.msra.mxu0 %v928
  %1171 = vmatprep.subr.bf16.mxu0 0
  %1172 = vmatpush2.bf16.msra.mxu0 %v927
  %1173 = vmatprep.subr.bf16.mxu0 0
  %1174 = vmatpush2.bf16.msra.mxu0 %v926
  %1175 = vmatprep.mubr.bf16.mxu0 %v473
  %1176 = vmatmul.mubr.bf16.gmra.mxu0 %v472
  %v1177 = vpop.f32.mrf.mxu0
  %v1178 = vadd.f32 %v1081, %v1177
  %v1179 = vpop.f32.mrf.mxu0
  %v1180 = vpop.f32.mrf.mxu0
  %v1181 = vadd.f32 %v1084, %v1180
  %v1182 = vpop.f32.mrf.mxu0
  %1183 = vmatprep.mubr.bf16.mxu0 %v482
  %1184 = vmatmul.mubr.bf16.gmra.mxu0 %v481
  %v1185 = vpop.f32.mrf.mxu0
  %v1186 = vadd.f32 %v1089, %v1185
  %v1187 = vpop.f32.mrf.mxu0
  %v1188 = vpop.f32.mrf.mxu0
  %v1189 = vadd.f32 %v1092, %v1188
  %v1190 = vpop.f32.mrf.mxu0
  %1191 = vmatprep.mubr.bf16.mxu0 %v491
  %1192 = vmatmul.mubr.bf16.gmra.mxu0 %v490
  %v1193 = vpop.f32.mrf.mxu0
  %v1194 = vadd.f32 %v1097, %v1193
  %v1195 = vpop.f32.mrf.mxu0
  %v1196 = vpop.f32.mrf.mxu0
  %v1197 = vadd.f32 %v1100, %v1196
  %v1198 = vpop.f32.mrf.mxu0
  %1199 = vmatprep.mubr.bf16.mxu0 %v500
  %1200 = vmatmul.mubr.bf16.gmra.mxu0 %v499
  %v1201 = vpop.f32.mrf.mxu0
  %v1202 = vadd.f32 %v1105, %v1201
  %v1203 = vpop.f32.mrf.mxu0
  %v1204 = vpop.f32.mrf.mxu0
  %v1205 = vadd.f32 %v1108, %v1204
  %v1206 = vpop.f32.mrf.mxu0
  %1207 = vmatprep.mubr.bf16.mxu0 %v509
  %1208 = vmatmul.mubr.bf16.gmra.mxu0 %v508
  %v1209 = vpop.f32.mrf.mxu0
  %v1210 = vadd.f32 %v1113, %v1209
  %v1211 = vpop.f32.mrf.mxu0
  %v1212 = vpop.f32.mrf.mxu0
  %v1213 = vadd.f32 %v1116, %v1212
  %v1214 = vpop.f32.mrf.mxu0
  %1215 = vmatprep.mubr.bf16.mxu0 %v518
  %1216 = vmatmul.mubr.bf16.gmra.mxu0 %v517
  %v1217 = vpop.f32.mrf.mxu0
  %v1218 = vadd.f32 %v1121, %v1217
  %v1219 = vpop.f32.mrf.mxu0
  %v1220 = vpop.f32.mrf.mxu0
  %v1221 = vadd.f32 %v1124, %v1220
  %v1222 = vpop.f32.mrf.mxu0
  %1223 = vmatprep.mubr.bf16.mxu0 %v527
  %1224 = vmatmul.mubr.bf16.gmra.mxu0 %v526
  %v1225 = vpop.f32.mrf.mxu0
  %v1226 = vadd.f32 %v1129, %v1225
  %v1227 = vpop.f32.mrf.mxu0
  %v1228 = vpop.f32.mrf.mxu0
  %v1229 = vadd.f32 %v1132, %v1228
  %v1230 = vpop.f32.mrf.mxu0
  %1231 = vmatprep.mubr.bf16.mxu0 %v536
  %1232 = vmatmul.mubr.bf16.gmra.mxu0 %v535
  %v1233 = vpop.f32.mrf.mxu0
  %v1234 = vadd.f32 %v1137, %v1233
  %v1235 = vpop.f32.mrf.mxu0
  %v1236 = vpop.f32.mrf.mxu0
  %v1237 = vadd.f32 %v1140, %v1236
  %v1238 = vpop.f32.mrf.mxu0
  %1239 = vdwg.mxu0
  %1240 = vmatprep.subr.bf16.mxu0 0
  %1241 = vmatpush1.bf16.msra.mxu0 %v941
  %1242 = vmatprep.subr.bf16.mxu0 0
  %1243 = vmatpush1.bf16.msra.mxu0 %v940
  %1244 = vmatprep.subr.bf16.mxu0 0
  %1245 = vmatpush1.bf16.msra.mxu0 %v939
  %1246 = vmatprep.subr.bf16.mxu0 0
  %1247 = vmatpush1.bf16.msra.mxu0 %v938
  %1248 = vmatprep.subr.bf16.mxu0 0
  %1249 = vmatpush1.bf16.msra.mxu0 %v937
  %1250 = vmatprep.subr.bf16.mxu0 0
  %1251 = vmatpush1.bf16.msra.mxu0 %v936
  %1252 = vmatprep.subr.bf16.mxu0 0
  %1253 = vmatpush1.bf16.msra.mxu0 %v935
  %1254 = vmatprep.subr.bf16.mxu0 0
  %1255 = vmatpush1.bf16.msra.mxu0 %v934
  %1256 = vmatprep.subr.bf16.mxu0 0
  %1257 = vmatpush2.bf16.msra.mxu0 %v949
  %1258 = vmatprep.subr.bf16.mxu0 0
  %1259 = vmatpush2.bf16.msra.mxu0 %v948
  %1260 = vmatprep.subr.bf16.mxu0 0
  %1261 = vmatpush2.bf16.msra.mxu0 %v947
  %1262 = vmatprep.subr.bf16.mxu0 0
  %1263 = vmatpush2.bf16.msra.mxu0 %v946
  %1264 = vmatprep.subr.bf16.mxu0 0
  %1265 = vmatpush2.bf16.msra.mxu0 %v945
  %1266 = vmatprep.subr.bf16.mxu0 0
  %1267 = vmatpush2.bf16.msra.mxu0 %v944
  %1268 = vmatprep.subr.bf16.mxu0 0
  %1269 = vmatpush2.bf16.msra.mxu0 %v943
  %1270 = vmatprep.subr.bf16.mxu0 0
  %1271 = vmatpush2.bf16.msra.mxu0 %v942
  %1272 = vmatprep.mubr.bf16.mxu0 %v475
  %1273 = vmatmul.mubr.bf16.gmra.mxu0 %v474
  %v1274 = vpop.f32.mrf.mxu0
  %v1275 = vadd.f32 %v1178, %v1274
  %v1276 = vpop.f32.mrf.mxu0
  %v1277 = vpop.f32.mrf.mxu0
  %v1278 = vadd.f32 %v1181, %v1277
  %v1279 = vpop.f32.mrf.mxu0
  %1280 = vmatprep.mubr.bf16.mxu0 %v484
  %1281 = vmatmul.mubr.bf16.gmra.mxu0 %v483
  %v1282 = vpop.f32.mrf.mxu0
  %v1283 = vadd.f32 %v1186, %v1282
  %v1284 = vpop.f32.mrf.mxu0
  %v1285 = vpop.f32.mrf.mxu0
  %v1286 = vadd.f32 %v1189, %v1285
  %v1287 = vpop.f32.mrf.mxu0
  %1288 = vmatprep.mubr.bf16.mxu0 %v493
  %1289 = vmatmul.mubr.bf16.gmra.mxu0 %v492
  %v1290 = vpop.f32.mrf.mxu0
  %v1291 = vadd.f32 %v1194, %v1290
  %v1292 = vpop.f32.mrf.mxu0
  %v1293 = vpop.f32.mrf.mxu0
  %v1294 = vadd.f32 %v1197, %v1293
  %v1295 = vpop.f32.mrf.mxu0
  %1296 = vmatprep.mubr.bf16.mxu0 %v502
  %1297 = vmatmul.mubr.bf16.gmra.mxu0 %v501
  %v1298 = vpop.f32.mrf.mxu0
  %v1299 = vadd.f32 %v1202, %v1298
  %v1300 = vpop.f32.mrf.mxu0
  %v1301 = vpop.f32.mrf.mxu0
  %v1302 = vadd.f32 %v1205, %v1301
  %v1303 = vpop.f32.mrf.mxu0
  %1304 = vmatprep.mubr.bf16.mxu0 %v511
  %1305 = vmatmul.mubr.bf16.gmra.mxu0 %v510
  %v1306 = vpop.f32.mrf.mxu0
  %v1307 = vadd.f32 %v1210, %v1306
  %v1308 = vpop.f32.mrf.mxu0
  %v1309 = vpop.f32.mrf.mxu0
  %v1310 = vadd.f32 %v1213, %v1309
  %v1311 = vpop.f32.mrf.mxu0
  %1312 = vmatprep.mubr.bf16.mxu0 %v520
  %1313 = vmatmul.mubr.bf16.gmra.mxu0 %v519
  %v1314 = vpop.f32.mrf.mxu0
  %v1315 = vadd.f32 %v1218, %v1314
  %v1316 = vpop.f32.mrf.mxu0
  %v1317 = vpop.f32.mrf.mxu0
  %v1318 = vadd.f32 %v1221, %v1317
  %v1319 = vpop.f32.mrf.mxu0
  %1320 = vmatprep.mubr.bf16.mxu0 %v529
  %1321 = vmatmul.mubr.bf16.gmra.mxu0 %v528
  %v1322 = vpop.f32.mrf.mxu0
  %v1323 = vadd.f32 %v1226, %v1322
  %v1324 = vpop.f32.mrf.mxu0
  %v1325 = vpop.f32.mrf.mxu0
  %v1326 = vadd.f32 %v1229, %v1325
  %v1327 = vpop.f32.mrf.mxu0
  %1328 = vmatprep.mubr.bf16.mxu0 %v538
  %1329 = vmatmul.mubr.bf16.gmra.mxu0 %v537
  %v1330 = vpop.f32.mrf.mxu0
  %v1331 = vadd.f32 %v1234, %v1330
  %v1332 = vpop.f32.mrf.mxu0
  %v1333 = vpop.f32.mrf.mxu0
  %v1334 = vadd.f32 %v1237, %v1333
  %v1335 = vpop.f32.mrf.mxu0
  %1336 = vdwg.mxu0
  %1337 = vmatprep.subr.bf16.mxu0 0
  %1338 = vmatpush1.bf16.msra.mxu0 %v957
  %1339 = vmatprep.subr.bf16.mxu0 0
  %1340 = vmatpush1.bf16.msra.mxu0 %v956
  %1341 = vmatprep.subr.bf16.mxu0 0
  %1342 = vmatpush1.bf16.msra.mxu0 %v955
  %1343 = vmatprep.subr.bf16.mxu0 0
  %1344 = vmatpush1.bf16.msra.mxu0 %v954
  %1345 = vmatprep.subr.bf16.mxu0 0
  %1346 = vmatpush1.bf16.msra.mxu0 %v953
  %1347 = vmatprep.subr.bf16.mxu0 0
  %1348 = vmatpush1.bf16.msra.mxu0 %v952
  %1349 = vmatprep.subr.bf16.mxu0 0
  %1350 = vmatpush1.bf16.msra.mxu0 %v951
  %1351 = vmatprep.subr.bf16.mxu0 0
  %1352 = vmatpush1.bf16.msra.mxu0 %v950
  %1353 = vmatprep.subr.bf16.mxu0 0
  %1354 = vmatpush2.bf16.msra.mxu0 %v965
  %1355 = vmatprep.subr.bf16.mxu0 0
  %1356 = vmatpush2.bf16.msra.mxu0 %v964
  %1357 = vmatprep.subr.bf16.mxu0 0
  %1358 = vmatpush2.bf16.msra.mxu0 %v963
  %1359 = vmatprep.subr.bf16.mxu0 0
  %1360 = vmatpush2.bf16.msra.mxu0 %v962
  %1361 = vmatprep.subr.bf16.mxu0 0
  %1362 = vmatpush2.bf16.msra.mxu0 %v961
  %1363 = vmatprep.subr.bf16.mxu0 0
  %1364 = vmatpush2.bf16.msra.mxu0 %v960
  %1365 = vmatprep.subr.bf16.mxu0 0
  %1366 = vmatpush2.bf16.msra.mxu0 %v959
  %1367 = vmatprep.subr.bf16.mxu0 0
  %1368 = vmatpush2.bf16.msra.mxu0 %v958
  %1369 = vmatprep.mubr.bf16.mxu0 %v477
  %1370 = vmatmul.mubr.bf16.gmra.mxu0 %v476
  %v1371 = vpop.f32.mrf.mxu0
  %v1372 = vadd.f32 %v1275, %v1371
  %v1373 = vpop.f32.mrf.mxu0
  %v1374 = vpop.f32.mrf.mxu0
  %v1375 = vadd.f32 %v1278, %v1374
  %v1376 = vpop.f32.mrf.mxu0
  %1377 = vmatprep.mubr.bf16.mxu0 %v486
  %1378 = vmatmul.mubr.bf16.gmra.mxu0 %v485
  %v1379 = vpop.f32.mrf.mxu0
  %v1380 = vadd.f32 %v1283, %v1379
  %v1381 = vpop.f32.mrf.mxu0
  %v1382 = vpop.f32.mrf.mxu0
  %v1383 = vadd.f32 %v1286, %v1382
  %v1384 = vpop.f32.mrf.mxu0
  %1385 = vmatprep.mubr.bf16.mxu0 %v495
  %1386 = vmatmul.mubr.bf16.gmra.mxu0 %v494
  %v1387 = vpop.f32.mrf.mxu0
  %v1388 = vadd.f32 %v1291, %v1387
  %v1389 = vpop.f32.mrf.mxu0
  %v1390 = vpop.f32.mrf.mxu0
  %v1391 = vadd.f32 %v1294, %v1390
  %v1392 = vpop.f32.mrf.mxu0
  %1393 = vmatprep.mubr.bf16.mxu0 %v504
  %1394 = vmatmul.mubr.bf16.gmra.mxu0 %v503
  %v1395 = vpop.f32.mrf.mxu0
  %v1396 = vadd.f32 %v1299, %v1395
  %v1397 = vpop.f32.mrf.mxu0
  %v1398 = vpop.f32.mrf.mxu0
  %v1399 = vadd.f32 %v1302, %v1398
  %v1400 = vpop.f32.mrf.mxu0
  %1401 = vmatprep.mubr.bf16.mxu0 %v513
  %1402 = vmatmul.mubr.bf16.gmra.mxu0 %v512
  %v1403 = vpop.f32.mrf.mxu0
  %v1404 = vadd.f32 %v1307, %v1403
  %v1405 = vpop.f32.mrf.mxu0
  %v1406 = vpop.f32.mrf.mxu0
  %v1407 = vadd.f32 %v1310, %v1406
  %v1408 = vpop.f32.mrf.mxu0
  %1409 = vmatprep.mubr.bf16.mxu0 %v522
  %1410 = vmatmul.mubr.bf16.gmra.mxu0 %v521
  %v1411 = vpop.f32.mrf.mxu0
  %v1412 = vadd.f32 %v1315, %v1411
  %v1413 = vpop.f32.mrf.mxu0
  %v1414 = vpop.f32.mrf.mxu0
  %v1415 = vadd.f32 %v1318, %v1414
  %v1416 = vpop.f32.mrf.mxu0
  %1417 = vmatprep.mubr.bf16.mxu0 %v531
  %1418 = vmatmul.mubr.bf16.gmra.mxu0 %v530
  %v1419 = vpop.f32.mrf.mxu0
  %v1420 = vadd.f32 %v1323, %v1419
  %v1421 = vpop.f32.mrf.mxu0
  %v1422 = vpop.f32.mrf.mxu0
  %v1423 = vadd.f32 %v1326, %v1422
  %v1424 = vpop.f32.mrf.mxu0
  %1425 = vmatprep.mubr.bf16.mxu0 %v540
  %1426 = vmatmul.mubr.bf16.gmra.mxu0 %v539
  %v1427 = vpop.f32.mrf.mxu0
  %v1428 = vadd.f32 %v1331, %v1427
  %v1429 = vpop.f32.mrf.mxu0
  %v1430 = vpop.f32.mrf.mxu0
  %v1431 = vadd.f32 %v1334, %v1430
  %v1432 = vpop.f32.mrf.mxu0
  %1433 = vdwg.mxu0
  %1434 = vmatprep.subr.bf16.mxu0 0
  %1435 = vmatpush1.bf16.msra.mxu0 %v973
  %1436 = vmatprep.subr.bf16.mxu0 0
  %1437 = vmatpush1.bf16.msra.mxu0 %v972
  %1438 = vmatprep.subr.bf16.mxu0 0
  %1439 = vmatpush1.bf16.msra.mxu0 %v971
  %1440 = vmatprep.subr.bf16.mxu0 0
  %1441 = vmatpush1.bf16.msra.mxu0 %v970
  %1442 = vmatprep.subr.bf16.mxu0 0
  %1443 = vmatpush1.bf16.msra.mxu0 %v969
  %1444 = vmatprep.subr.bf16.mxu0 0
  %1445 = vmatpush1.bf16.msra.mxu0 %v968
  %1446 = vmatprep.subr.bf16.mxu0 0
  %1447 = vmatpush1.bf16.msra.mxu0 %v967
  %1448 = vmatprep.subr.bf16.mxu0 0
  %1449 = vmatpush1.bf16.msra.mxu0 %v966
  %1450 = vmatprep.subr.bf16.mxu0 0
  %1451 = vmatpush2.bf16.msra.mxu0 0
  %1452 = vmatprep.subr.bf16.mxu0 0
  %1453 = vmatpush2.bf16.msra.mxu0 0
  %1454 = vmatprep.subr.bf16.mxu0 0
  %1455 = vmatpush2.bf16.msra.mxu0 0
  %1456 = vmatprep.subr.bf16.mxu0 0
  %1457 = vmatpush2.bf16.msra.mxu0 0
  %1458 = vmatprep.subr.bf16.mxu0 0
  %1459 = vmatpush2.bf16.msra.mxu0 0
  %1460 = vmatprep.subr.bf16.mxu0 0
  %1461 = vmatpush2.bf16.msra.mxu0 0
  %1462 = vmatprep.subr.bf16.mxu0 0
  %1463 = vmatpush2.bf16.msra.mxu0 0
  %1464 = vmatprep.subr.bf16.mxu0 0
  %1465 = vmatpush2.bf16.msra.mxu0 0
  %1466 = vmatprep.mubr.bf16.mxu0 0
  %1467 = vmatmul.mubr.bf16.gmra.mxu0 %v478
  %v1468 = vpop.f32.mrf.mxu0
  %v1469 = vadd.f32 %v1372, %v1468
  %v1470 = vpop.f32.mrf.mxu0
  %v1471 = vpop.f32.mrf.mxu0
  %v1472 = vadd.f32 %v1375, %v1471
  %v1473 = vpop.f32.mrf.mxu0
  %1474 = vmatprep.mubr.bf16.mxu0 0
  %1475 = vmatmul.mubr.bf16.gmra.mxu0 %v487
  %v1476 = vpop.f32.mrf.mxu0
  %v1477 = vadd.f32 %v1380, %v1476
  %v1478 = vpop.f32.mrf.mxu0
  %v1479 = vpop.f32.mrf.mxu0
  %v1480 = vadd.f32 %v1383, %v1479
  %v1481 = vpop.f32.mrf.mxu0
  %1482 = vmatprep.mubr.bf16.mxu0 0
  %1483 = vmatmul.mubr.bf16.gmra.mxu0 %v496
  %v1484 = vpop.f32.mrf.mxu0
  %v1485 = vadd.f32 %v1388, %v1484
  %v1486 = vpop.f32.mrf.mxu0
  %v1487 = vpop.f32.mrf.mxu0
  %v1488 = vadd.f32 %v1391, %v1487
  %v1489 = vpop.f32.mrf.mxu0
  %1490 = vmatprep.mubr.bf16.mxu0 0
  %1491 = vmatmul.mubr.bf16.gmra.mxu0 %v505
  %v1492 = vpop.f32.mrf.mxu0
  %v1493 = vadd.f32 %v1396, %v1492
  %v1494 = vpop.f32.mrf.mxu0
  %v1495 = vpop.f32.mrf.mxu0
  %v1496 = vadd.f32 %v1399, %v1495
  %v1497 = vpop.f32.mrf.mxu0
  %1498 = vmatprep.mubr.bf16.mxu0 0
  %1499 = vmatmul.mubr.bf16.gmra.mxu0 %v514
  %v1500 = vpop.f32.mrf.mxu0
  %v1501 = vadd.f32 %v1404, %v1500
  %v1502 = vpop.f32.mrf.mxu0
  %v1503 = vpop.f32.mrf.mxu0
  %v1504 = vadd.f32 %v1407, %v1503
  %v1505 = vpop.f32.mrf.mxu0
  %1506 = vmatprep.mubr.bf16.mxu0 0
  %1507 = vmatmul.mubr.bf16.gmra.mxu0 %v523
  %v1508 = vpop.f32.mrf.mxu0
  %v1509 = vadd.f32 %v1412, %v1508
  %v1510 = vpop.f32.mrf.mxu0
  %v1511 = vpop.f32.mrf.mxu0
  %v1512 = vadd.f32 %v1415, %v1511
  %v1513 = vpop.f32.mrf.mxu0
  %1514 = vmatprep.mubr.bf16.mxu0 0
  %1515 = vmatmul.mubr.bf16.gmra.mxu0 %v532
  %v1516 = vpop.f32.mrf.mxu0
  %v1517 = vadd.f32 %v1420, %v1516
  %v1518 = vpop.f32.mrf.mxu0
  %v1519 = vpop.f32.mrf.mxu0
  %v1520 = vadd.f32 %v1423, %v1519
  %v1521 = vpop.f32.mrf.mxu0
  %1522 = vmatprep.mubr.bf16.mxu0 0
  %1523 = vmatmul.mubr.bf16.gmra.mxu0 %v541
  %v1524 = vpop.f32.mrf.mxu0
  %v1525 = vadd.f32 %v1428, %v1524
  %v1526 = vpop.f32.mrf.mxu0
  %v1527 = vpop.f32.mrf.mxu0
  %v1528 = vadd.f32 %v1431, %v1527
  %v1529 = vpop.f32.mrf.mxu0
  %1530 = vdwg.mxu0
  %v1531 = vmax.f32 %v1469, 0.0
  %v1532 = vmax.f32 %v1472, 0.0
  %v1533 = vmax.f32 %v1477, 0.0
  %v1534 = vmax.f32 %v1480, 0.0
  %v1535 = vmax.f32 %v1485, 0.0
  %v1536 = vmax.f32 %v1488, 0.0
  %v1537 = vmax.f32 %v1493, 0.0
  %v1538 = vmax.f32 %v1496, 0.0
  %v1539 = vmax.f32 %v1501, 0.0
  %v1540 = vmax.f32 %v1504, 0.0
  %v1541 = vmax.f32 %v1509, 0.0
  %v1542 = vmax.f32 %v1512, 0.0
  %v1543 = vmax.f32 %v1517, 0.0
  %v1544 = vmax.f32 %v1520, 0.0
  %v1545 = vmax.f32 %v1525, 0.0
  %v1546 = vmax.f32 %v1528, 0.0
  %v1547 = vpack.c.bf16 %v1532, %v1531
  %v1548 = vpack.c.bf16 %v1534, %v1533
  %v1549 = vpack.c.bf16 %v1536, %v1535
  %v1550 = vpack.c.bf16 %v1538, %v1537
  %v1551 = vpack.c.bf16 %v1540, %v1539
  %v1552 = vpack.c.bf16 %v1542, %v1541
  %v1553 = vpack.c.bf16 %v1544, %v1543
  %v1554 = vpack.c.bf16 %v1546, %v1545
  %v1563 = vunpack.c.l.b16 %v1547
  %v1564 = vunpack.c.h.b16 %v1547
  %v1565 = vunpack.c.l.b16 %v1548
  %v1566 = vunpack.c.h.b16 %v1548
  %v1567 = vunpack.c.l.b16 %v1549
  %v1568 = vunpack.c.h.b16 %v1549
  %v1569 = vunpack.c.l.b16 %v1550
  %v1570 = vunpack.c.h.b16 %v1550
  %v1571 = vunpack.c.l.b16 %v1551
  %v1572 = vunpack.c.h.b16 %v1551
  %v1573 = vunpack.c.l.b16 %v1552
  %v1574 = vunpack.c.h.b16 %v1552
  %v1575 = vunpack.c.l.b16 %v1553
  %v1576 = vunpack.c.h.b16 %v1553
  %v1577 = vunpack.c.l.b16 %v1554
  %v1578 = vunpack.c.h.b16 %v1554
  %v1579 = vpack.c.b16 %v1563, %v1563
  %v1580 = vpack.c.b16 %v1564, %v1564
  %v1581 = vpack.c.b16 %v1565, %v1565
  %v1582 = vpack.c.b16 %v1566, %v1566
  %v1583 = vpack.c.b16 %v1567, %v1567
  %v1584 = vpack.c.b16 %v1568, %v1568
  %v1585 = vpack.c.b16 %v1569, %v1569
  %v1586 = vpack.c.b16 %v1570, %v1570
  %v1587 = vpack.c.b16 %v1571, %v1571
  %v1588 = vpack.c.b16 %v1572, %v1572
  %v1589 = vpack.c.b16 %v1573, %v1573
  %v1590 = vpack.c.b16 %v1574, %v1574
  %v1591 = vpack.c.b16 %v1575, %v1575
  %v1592 = vpack.c.b16 %v1576, %v1576
  %v1593 = vpack.c.b16 %v1577, %v1577
  %v1594 = vpack.c.b16 %v1578, %v1578
  %1611 = vst [vmem:[%s3] sm:$0xf] %v1579
  %1612 = vst [vmem:[%s3 + $0x4] sm:$0xf] %v1580
  %1613 = vst [vmem:[%s3 + $0x8] sm:$0xf] %v1581
  %1614 = vst [vmem:[%s3 + $0xc] sm:$0xf] %v1582
  %1615 = vst [vmem:[%s3 + $0x10] sm:$0xf] %v1583
  %1616 = vst [vmem:[%s3 + $0x14] sm:$0xf] %v1584
  %1617 = vst [vmem:[%s3 + $0x18] sm:$0xf] %v1585
  %1618 = vst [vmem:[%s3 + $0x1c] sm:$0xf] %v1586
  %1619 = vst [vmem:[%s3 + $0x20] sm:$0xf] %v1587
  %1620 = vst [vmem:[%s3 + $0x24] sm:$0xf] %v1588
  %1621 = vst [vmem:[%s3 + $0x28] sm:$0xf] %v1589
  %1622 = vst [vmem:[%s3 + $0x2c] sm:$0xf] %v1590
  %1623 = vst [vmem:[%s3 + $0x30] sm:$0xf] %v1591
  %1624 = vst [vmem:[%s3 + $0x34] sm:$0xf] %v1592
  %1625 = vst [vmem:[%s3 + $0x38] sm:$0xf] %v1593
  %1626 = vst [vmem:[%s3 + $0x3c] sm:$0xf] %v1594
  // Predicated region
  $region14: #{conv_frontend_forward.6} parent=0 // pred_check
    _
  $region15: #{conv_frontend_forward.6} parent=0 // pred_check_branch
    %1628 = sbr.rel (0) target = $region17
  $region16: #{conv_frontend_forward.6} parent=0 // pred_region
    _
  $region17: #{conv_frontend_forward.6} parent=0 // pred_fallthru
    _
  // Predicated region
  $region18: #{conv_frontend_forward.6} parent=0 // pred_check
    _
  $region19: #{conv_frontend_forward.6} parent=0 // pred_check_branch
    %1630 = sbr.rel (0) target = $region21
  $region20: #{conv_frontend_forward.6} parent=0 // pred_region
    _
  $region21: #{conv_frontend_forward.6} parent=0 // pred_fallthru
    _

</llo_original>
